<compile_context>
chip_gen: v5e
topology: v5e:2x2
jax: 0.10.0
libtpu: 0.0.40
codegen_flags: <defaults>
</compile_context>

<pallas_src>
import functools

import numpy as np
import jax
import jax.numpy as jnp
from jax.experimental import pallas as pl
from jax.experimental.pallas import tpu as pltpu


# ----------------------------- fused Pallas kernel ---------------------------

def _gwnet_fused_kernel(static,
                        x_ref,               # [Cin, M0]           f32, M0 = T*B*N
                        mask_ref,            # [M0, M0]            f32 block-diag 0/1
                        nv1_ref, nv2_ref,    # [N, apt], [apt, N]  f32 node embeddings
                        sw_ref, sb_ref,      # start conv: [Cr, Cin] bf16, [Cr, 1] f32
                        wl_ref, wr_ref,      # [L, 2*Cd, Cr] bf16  (filter|gate stacked)
                        bfg_ref,             # [L, 2*Cd, 1]  f32
                        wms_ref,             # [L, 3*Cr+Csk, Cd] bf16 (gcn blocks + skip)
                        bml_ref, bsk_ref,    # [L, Cr, 1], [L, Csk, 1] f32
                        rsc_ref,             # [L, Cr, 1]  f32  (BN scale for residual)
                        e1w_ref, e1b_ref,    # [Cend, Csk] bf16, [Cend, 1] f32
                        e2w_ref, e2b_ref,    # [Cout, Cend] bf16, [Cout, 1] f32
                        o_ref,               # [Cout, t_out*B*N]   f32
                        ak_ref):             # scratch: [M0, M0] bf16 kron adjacency
    B, N, dilations = static
    f32, bf16 = jnp.float32, jnp.bfloat16
    BN = B * N
    M0 = x_ref.shape[1]
    Q = M0 // N                      # number of (time, batch) diagonal blocks
    Cr = wl_ref.shape[2]
    Cd = wl_ref.shape[1] // 2
    Csk = bsk_ref.shape[1]

    # ---- adaptive adjacency adp = softmax(relu(E1 @ E2), axis=1), built in-kernel ----
    logits = jnp.dot(nv1_ref[...], nv2_ref[...], preferred_element_type=f32)   # [N, N]
    logits = jnp.maximum(logits, 0.0)
    logits = logits - jnp.max(logits, axis=1, keepdims=True)
    ex = jnp.exp(logits)
    adp = ex / jnp.sum(ex, axis=1, keepdims=True)                              # [N, N]

    # ---- ak = kron(I_Q, adp): block-diagonal node mixer for the flattened
    # (time, batch, node) column axis.  Built once into VMEM scratch, sliced per layer.
    row = jnp.concatenate([adp] * Q, axis=1)           # [N, M0]
    dense = jnp.concatenate([row] * Q, axis=0)         # [M0, M0]  every block = adp
    ak_ref[...] = (dense * mask_ref[...]).astype(bf16)

    # ---- start 1x1 conv, all time steps in one dot ----
    h = (jnp.dot(sw_ref[...], x_ref[...].astype(bf16), preferred_element_type=f32)
         + sb_ref[...])                                                        # [Cr, M0]

    skip = None
    m_cur = M0
    for li, d in enumerate(dilations):
        m_new = m_cur - d * BN
        # dilated kernel-(1,2) taps: static lane-range slices of the resident h tile
        hl = h[:, :m_new]
        hr = h[:, d * BN: d * BN + m_new]

        # gated temporal conv: filter & gate stacked on output channels -> 2 dots/layer
        pre = (jnp.dot(wl_ref[li], hl.astype(bf16), preferred_element_type=f32)
               + jnp.dot(wr_ref[li], hr.astype(bf16), preferred_element_type=f32)
               + bfg_ref[li])                                                  # [2Cd, m]
        z = jnp.tanh(pre[:Cd]) * jax.nn.sigmoid(pre[Cd:])                      # [Cd, m]

        # one dot for {gcn-MLP row blocks (eval-BN folded), skip conv}
        v = jnp.dot(wms_ref[li], z.astype(bf16), preferred_element_type=f32)   # [3Cr+Csk, m]
        u0 = v[0 * Cr:1 * Cr]
        u1 = v[1 * Cr:2 * Cr]
        u2 = v[2 * Cr:3 * Cr]
        s_new = v[3 * Cr:] + bsk_ref[li]                                       # skip conv

        # order-2 graph diffusion, batched over all (t, b) blocks:
        #   u1 @ A + u2 @ A^2 == (u1 + u2 @ A) @ A   with A = kron(I, adp)
        aks = ak_ref[:m_new, :m_new]
        t1 = jnp.dot(u2.astype(bf16), aks, preferred_element_type=f32)
        g = (u0
             + jnp.dot((u1 + t1).astype(bf16), aks, preferred_element_type=f32)
             + bml_ref[li])                                                    # [Cr, m]

        # residual add + eval-mode BatchNorm (scale/shift folded into wms/bml; the
        # residual tap still needs the per-channel scale)
        h = g + rsc_ref[li] * hr

        # end-aligned skip accumulation: skip = s + skip[..., -t_new:]
        skip = s_new if skip is None else s_new + skip[:, skip.shape[1] - m_new:]
        m_cur = m_new

    # ---- relu -> end 1x1 convs, one dot each over all output time steps ----
    r = jnp.maximum(skip, 0.0)
    r = jnp.maximum(jnp.dot(e1w_ref[...], r.astype(bf16), preferred_element_type=f32)
                    + e1b_ref[...], 0.0)
    out = jnp.dot(e2w_ref[...], r.astype(bf16), preferred_element_type=f32) + e2b_ref[...]
    o_ref[...] = out.astype(o_ref.dtype)


# ------------------------------ model params ---------------------------------

def init_params(key):
    cfg = dict(num_nodes=16, in_dim=2, out_dim=4, residual=16, dilation=16,
               skip=32, end=32, blocks=2, layers=2, kernel=2, order=2, apt_dim=10)
    keys = list(jax.random.split(key, 256))
    k_iter = iter(keys)

    def w(shape, scale=0.1):
        return (scale * jax.random.normal(next(k_iter), shape)).astype(jnp.float32)

    params = {}
    params["start_w"] = w((cfg["in_dim"], cfg["residual"]))
    params["start_b"] = w((cfg["residual"],))
    params["nodevec1"] = w((cfg["num_nodes"], cfg["apt_dim"]), 1.0)
    params["nodevec2"] = w((cfg["apt_dim"], cfg["num_nodes"]), 1.0)

    support_len = 1  # adaptive adjacency only
    layers = []
    receptive_field = 1
    for _ in range(cfg["blocks"]):
        additional_scope = cfg["kernel"] - 1
        dil = 1
        for _ in range(cfg["layers"]):
            Cr, Cd, Csk = cfg["residual"], cfg["dilation"], cfg["skip"]
            layers.append(dict(
                dilation=dil,
                wf0=w((Cr, Cd)), wf1=w((Cr, Cd)), bf=w((Cd,)),
                wg0=w((Cr, Cd)), wg1=w((Cr, Cd)), bg=w((Cd,)),
                wskip=w((Cd, Csk)), bskip=w((Csk,)),
                wmlp=w(((cfg["order"] * support_len + 1) * Cd, Cr)),
                bmlp=w((Cr,)),
                bn_gamma=jnp.ones((Cr,), jnp.float32),
                bn_beta=jnp.zeros((Cr,), jnp.float32),
                bn_mean=jnp.zeros((Cr,), jnp.float32),
                bn_var=jnp.ones((Cr,), jnp.float32),
            ))
            dil *= 2
            receptive_field += additional_scope
            additional_scope *= 2
    params["layers"] = layers
    params["end1_w"] = w((cfg["skip"], cfg["end"]))
    params["end1_b"] = w((cfg["end"],))
    params["end2_w"] = w((cfg["end"], cfg["out_dim"]))
    params["end2_b"] = w((cfg["out_dim"],))
    cfg["receptive_field"] = receptive_field
    params["cfg"] = cfg
    return params


def pack_params(params):
    """Pack per-layer weights into stacked, channels-first, bf16 kernel-ready arrays."""
    cfg = dict(params["cfg"])
    layers = params["layers"]
    cfg["dilations"] = tuple(int(l["dilation"]) for l in layers)
    Cd = cfg["dilation"]
    eps = 1e-5
    f32, bf16 = jnp.float32, jnp.bfloat16

    def bn_scale(l):
        return (l["bn_gamma"] / jnp.sqrt(l["bn_var"] + eps)).astype(f32)

    def bn_shift(l):
        return (l["bn_beta"] - l["bn_mean"] * bn_scale(l)).astype(f32)

    def col(v):
        return v.reshape(-1, 1).astype(f32)

    wl, wr, bfg, wms, bml, bsk, rsc = [], [], [], [], [], [], []
    for l in layers:
        sc, sh = bn_scale(l), bn_shift(l)
        # dilated conv, channels-first: out = Wtap0^T @ h[t] + Wtap1^T @ h[t+d]
        wl.append(jnp.concatenate([l["wf0"].T, l["wg0"].T], axis=0))     # [2Cd, Cr]
        wr.append(jnp.concatenate([l["wf1"].T, l["wg1"].T], axis=0))     # [2Cd, Cr]
        bfg.append(jnp.concatenate([l["bf"], l["bg"]]).reshape(-1, 1))   # [2Cd, 1]
        # gcn MLP split into [x | xA | xA^2] blocks, transposed, eval-BN scale folded
        m = l["wmlp"]
        b0 = m[0 * Cd:1 * Cd].T * sc[:, None]
        b1 = m[1 * Cd:2 * Cd].T * sc[:, None]
        b2 = m[2 * Cd:3 * Cd].T * sc[:, None]
        wms.append(jnp.concatenate([b0, b1, b2, l["wskip"].T], axis=0))  # [3Cr+Csk, Cd]
        bml.append((l["bmlp"] * sc + sh).reshape(-1, 1))                 # [Cr, 1]
        bsk.append(l["bskip"].reshape(-1, 1))                            # [Csk, 1]
        rsc.append(sc.reshape(-1, 1))                                    # [Cr, 1]

    weights = dict(
        nv1=params["nodevec1"].astype(f32),
        nv2=params["nodevec2"].astype(f32),
        sw=params["start_w"].T.astype(bf16),
        sb=col(params["start_b"]),
        wl=jnp.stack(wl).astype(bf16),
        wr=jnp.stack(wr).astype(bf16),
        bfg=jnp.stack(bfg).astype(f32),
        wms=jnp.stack(wms).astype(bf16),
        bml=jnp.stack(bml).astype(f32),
        bsk=jnp.stack(bsk).astype(f32),
        rsc=jnp.stack(rsc).astype(f32),
        e1w=params["end1_w"].T.astype(bf16),
        e1b=col(params["end1_b"]),
        e2w=params["end2_w"].T.astype(bf16),
        e2b=col(params["end2_b"]),
    )
    return weights, cfg


# -------------------------------- forward ------------------------------------

def graph_wavenet_forward(cfg, weights, x):
    B, Cin, N, T = x.shape
    rf = cfg["receptive_field"]
    if T < rf:  # left-pad time to the receptive field, as in the reference
        x = jnp.pad(x, ((0, 0), (0, 0), (0, 0), (rf - T, 0)))
        T = rf

    dil = cfg["dilations"]
    t_out = T - sum(dil)
    assert t_out >= 1
    BN = B * N
    M0 = T * BN
    M_out = t_out * BN
    c_out = weights["e2w"].shape[0]

    # Only wrapper-side input data movement: NCHW -> channels-first, node-fastest
    # columns: x_cf[c, (t*B + b)*N + n] = x[b, c, n, t].
    x_cf = jnp.transpose(x, (1, 3, 0, 2)).reshape(Cin, M0).astype(jnp.float32)

    # Shape-only constant (folded at trace time, no runtime wrapper op): block-diagonal
    # 0/1 mask selecting the per-(time, batch) node blocks of the kron'd adjacency.
    q_idx = np.arange(M0) // N
    blockdiag_mask = jnp.asarray((q_idx[:, None] == q_idx[None, :]).astype(np.float32))

    args = (x_cf, blockdiag_mask,
            weights["nv1"], weights["nv2"], weights["sw"], weights["sb"],
            weights["wl"], weights["wr"], weights["bfg"],
            weights["wms"], weights["bml"], weights["bsk"], weights["rsc"],
            weights["e1w"], weights["e1b"], weights["e2w"], weights["e2b"])

    out_cf = pl.pallas_call(
        functools.partial(_gwnet_fused_kernel, (B, N, dil)),
        out_shape=jax.ShapeDtypeStruct((c_out, M_out), jnp.float32),
        in_specs=[pl.BlockSpec(memory_space=pltpu.MemorySpace.VMEM) for _ in args],
        out_specs=pl.BlockSpec(memory_space=pltpu.MemorySpace.VMEM),
        scratch_shapes=[pltpu.VMEM((M0, M0), jnp.bfloat16)],   # kron(I, adp) lives here
        # Total resident footprint is <1 MiB; 32 MiB is within the scoped default on
        # v5e/v6e and within v7x's 64 MiB physical VMEM.
        compiler_params=pltpu.CompilerParams(vmem_limit_bytes=32 * 1024 * 1024),
    )(*args)

    # Only wrapper-side output data movement: channels-first columns -> NCHW.
    return jnp.transpose(out_cf.reshape(c_out, t_out, B, N), (2, 0, 3, 1))


if __name__ == "__main__":
    key = jax.random.PRNGKey(0)
    pkey, xkey = jax.random.split(key)
    params = init_params(pkey)
    weights, cfg = pack_params(params)

    # [B, in_dim, num_nodes, T] = [2, 2, 16, 8]
    x = jax.random.normal(xkey, (2, 2, 16, 8), dtype=jnp.float32)

    fwd = jax.jit(functools.partial(graph_wavenet_forward, cfg))
    out = jax.block_until_ready(fwd(weights, x))

    assert out.shape == (2, 4, 16, 2), out.shape
    assert bool(jnp.all(jnp.isfinite(out)))
    print("KERNEL_OK")
</pallas_src>

<mosaic_0001>
module attributes {stable_mosaic.version = 11 : i64} {
  func.func @_gwnet_fused_kernel(%arg0: memref<2x256xf32, #tpu.memory_space<vmem>>, %arg1: memref<256x256xf32, #tpu.memory_space<vmem>>, %arg2: memref<16x10xf32, #tpu.memory_space<vmem>>, %arg3: memref<10x16xf32, #tpu.memory_space<vmem>>, %arg4: memref<16x2xbf16, #tpu.memory_space<vmem>>, %arg5: memref<16x1xf32, #tpu.memory_space<vmem>>, %arg6: memref<4x32x16xbf16, #tpu.memory_space<vmem>>, %arg7: memref<4x32x16xbf16, #tpu.memory_space<vmem>>, %arg8: memref<4x32x1xf32, #tpu.memory_space<vmem>>, %arg9: memref<4x80x16xbf16, #tpu.memory_space<vmem>>, %arg10: memref<4x16x1xf32, #tpu.memory_space<vmem>>, %arg11: memref<4x32x1xf32, #tpu.memory_space<vmem>>, %arg12: memref<4x16x1xf32, #tpu.memory_space<vmem>>, %arg13: memref<32x32xbf16, #tpu.memory_space<vmem>>, %arg14: memref<32x1xf32, #tpu.memory_space<vmem>>, %arg15: memref<4x32xbf16, #tpu.memory_space<vmem>>, %arg16: memref<4x1xf32, #tpu.memory_space<vmem>>, %arg17: memref<4x64xf32, #tpu.memory_space<vmem>>, %arg18: memref<256x256xbf16, #tpu.memory_space<vmem>>) attributes {dimension_semantics = [], scalar_prefetch = 0 : i64, scratch_operands = 1 : i64, tpu.core_type = #tpu.core_type<tc>} {
    %c0 = arith.constant 0 : index
    %c0_0 = arith.constant 0 : index
    %0 = vector.load %arg2[%c0, %c0_0] : memref<16x10xf32, #tpu.memory_space<vmem>>, vector<16x10xf32>
    %c0_1 = arith.constant 0 : index
    %c0_2 = arith.constant 0 : index
    %1 = vector.load %arg3[%c0_1, %c0_2] : memref<10x16xf32, #tpu.memory_space<vmem>>, vector<10x16xf32>
    %cst = arith.constant dense<0.000000e+00> : vector<16x16xf32>
    %2 = tpu.matmul %0, %1, %cst {dimension_numbers = #tpu.dot_dimension_numbers<[1], [0], [0], [1], [0, 0, 1, 1], [], []>} : vector<16x10xf32>, vector<10x16xf32>, vector<16x16xf32> -> vector<16x16xf32>
    %cst_3 = arith.constant 0.000000e+00 : f32
    %3 = vector.broadcast %cst_3 : f32 to vector<16x16xf32>
    %4 = arith.maximumf %2, %3 : vector<16x16xf32>
    %cst_4 = arith.constant dense<0xFF800000> : vector<16xf32>
    %5 = vector.multi_reduction <maximumf>, %4, %cst_4 [1] : vector<16x16xf32> to vector<16xf32>
    %6 = vector.shape_cast %5 : vector<16xf32> to vector<16x1xf32>
    %7 = vector.broadcast %6 : vector<16x1xf32> to vector<16x16xf32>
    %8 = arith.subf %4, %7 : vector<16x16xf32>
    %9 = math.exp %8 : vector<16x16xf32>
    %cst_5 = arith.constant dense<0.000000e+00> : vector<16xf32>
    %10 = vector.multi_reduction <add>, %9, %cst_5 [1] : vector<16x16xf32> to vector<16xf32>
    %11 = vector.shape_cast %10 : vector<16xf32> to vector<16x1xf32>
    %12 = vector.broadcast %11 : vector<16x1xf32> to vector<16x16xf32>
    %13 = arith.divf %9, %12 : vector<16x16xf32>
    %14 = tpu.concatenate %13, %13, %13, %13, %13, %13, %13, %13, %13, %13, %13, %13, %13, %13, %13, %13 in 1 : vector<16x16xf32>, vector<16x16xf32>, vector<16x16xf32>, vector<16x16xf32>, vector<16x16xf32>, vector<16x16xf32>, vector<16x16xf32>, vector<16x16xf32>, vector<16x16xf32>, vector<16x16xf32>, vector<16x16xf32>, vector<16x16xf32>, vector<16x16xf32>, vector<16x16xf32>, vector<16x16xf32>, vector<16x16xf32> -> vector<16x256xf32>
    %15 = tpu.concatenate %14, %14, %14, %14, %14, %14, %14, %14, %14, %14, %14, %14, %14, %14, %14, %14 in 0 : vector<16x256xf32>, vector<16x256xf32>, vector<16x256xf32>, vector<16x256xf32>, vector<16x256xf32>, vector<16x256xf32>, vector<16x256xf32>, vector<16x256xf32>, vector<16x256xf32>, vector<16x256xf32>, vector<16x256xf32>, vector<16x256xf32>, vector<16x256xf32>, vector<16x256xf32>, vector<16x256xf32>, vector<16x256xf32> -> vector<256x256xf32>
    %c0_6 = arith.constant 0 : index
    %c0_7 = arith.constant 0 : index
    %16 = vector.load %arg1[%c0_6, %c0_7] : memref<256x256xf32, #tpu.memory_space<vmem>>, vector<256x256xf32>
    %17 = arith.mulf %15, %16 : vector<256x256xf32>
    %18 = arith.truncf %17 : vector<256x256xf32> to vector<256x256xbf16>
    %c0_8 = arith.constant 0 : index
    %c0_9 = arith.constant 0 : index
    %19 = vector.load %arg18[%c0_8, %c0_9] : memref<256x256xbf16, #tpu.memory_space<vmem>>, vector<256x256xbf16>
    tpu.vector_store %arg18[%c0_8, %c0_9], %18 {strides = array<i32>} : memref<256x256xbf16, #tpu.memory_space<vmem>>, vector<256x256xbf16>,
    %c0_10 = arith.constant 0 : index
    %c0_11 = arith.constant 0 : index
    %20 = vector.load %arg4[%c0_10, %c0_11] : memref<16x2xbf16, #tpu.memory_space<vmem>>, vector<16x2xbf16>
    %c0_12 = arith.constant 0 : index
    %c0_13 = arith.constant 0 : index
    %21 = vector.load %arg0[%c0_12, %c0_13] : memref<2x256xf32, #tpu.memory_space<vmem>>, vector<2x256xf32>
    %22 = arith.truncf %21 : vector<2x256xf32> to vector<2x256xbf16>
    %cst_14 = arith.constant dense<0.000000e+00> : vector<16x256xf32>
    %23 = tpu.matmul %20, %22, %cst_14 {dimension_numbers = #tpu.dot_dimension_numbers<[1], [0], [0], [1], [0, 0, 1, 1], [], []>} : vector<16x2xbf16>, vector<2x256xbf16>, vector<16x256xf32> -> vector<16x256xf32>
    %c0_15 = arith.constant 0 : index
    %c0_16 = arith.constant 0 : index
    %24 = vector.load %arg5[%c0_15, %c0_16] : memref<16x1xf32, #tpu.memory_space<vmem>>, vector<16x1xf32>
    %25 = vector.broadcast %24 : vector<16x1xf32> to vector<16x256xf32>
    %26 = arith.addf %23, %25 : vector<16x256xf32>
    %27 = vector.extract_strided_slice %26 {offsets = [0, 0], sizes = [16, 224], strides = [1, 1]} : vector<16x256xf32> to vector<16x224xf32>
    %28 = vector.extract_strided_slice %26 {offsets = [0, 32], sizes = [16, 224], strides = [1, 1]} : vector<16x256xf32> to vector<16x224xf32>
    %c0_17 = arith.constant 0 : index
    %c0_18 = arith.constant 0 : index
    %c0_19 = arith.constant 0 : index
    %29 = vector.load %arg6[%c0_17, %c0_18, %c0_19] : memref<4x32x16xbf16, #tpu.memory_space<vmem>>, vector<1x32x16xbf16>
    %30 = vector.shape_cast %29 : vector<1x32x16xbf16> to vector<32x16xbf16>
    %31 = arith.truncf %27 : vector<16x224xf32> to vector<16x224xbf16>
    %cst_20 = arith.constant dense<0.000000e+00> : vector<32x224xf32>
    %32 = tpu.matmul %30, %31, %cst_20 {dimension_numbers = #tpu.dot_dimension_numbers<[1], [0], [0], [1], [0, 0, 1, 1], [], []>} : vector<32x16xbf16>, vector<16x224xbf16>, vector<32x224xf32> -> vector<32x224xf32>
    %c0_21 = arith.constant 0 : index
    %c0_22 = arith.constant 0 : index
    %c0_23 = arith.constant 0 : index
    %33 = vector.load %arg7[%c0_21, %c0_22, %c0_23] : memref<4x32x16xbf16, #tpu.memory_space<vmem>>, vector<1x32x16xbf16>
    %34 = vector.shape_cast %33 : vector<1x32x16xbf16> to vector<32x16xbf16>
    %35 = arith.truncf %28 : vector<16x224xf32> to vector<16x224xbf16>
    %cst_24 = arith.constant dense<0.000000e+00> : vector<32x224xf32>
    %36 = tpu.matmul %34, %35, %cst_24 {dimension_numbers = #tpu.dot_dimension_numbers<[1], [0], [0], [1], [0, 0, 1, 1], [], []>} : vector<32x16xbf16>, vector<16x224xbf16>, vector<32x224xf32> -> vector<32x224xf32>
    %37 = arith.addf %32, %36 : vector<32x224xf32>
    %c0_25 = arith.constant 0 : index
    %c0_26 = arith.constant 0 : index
    %c0_27 = arith.constant 0 : index
    %38 = vector.load %arg8[%c0_25, %c0_26, %c0_27] : memref<4x32x1xf32, #tpu.memory_space<vmem>>, vector<1x32x1xf32>
    %39 = vector.shape_cast %38 : vector<1x32x1xf32> to vector<32x1xf32>
    %40 = vector.broadcast %39 : vector<32x1xf32> to vector<32x224xf32>
    %41 = arith.addf %37, %40 : vector<32x224xf32>
    %42 = vector.extract_strided_slice %41 {offsets = [0, 0], sizes = [16, 224], strides = [1, 1]} : vector<32x224xf32> to vector<16x224xf32>
    %43 = math.tanh %42 : vector<16x224xf32>
    %44 = vector.extract_strided_slice %41 {offsets = [16, 0], sizes = [16, 224], strides = [1, 1]} : vector<32x224xf32> to vector<16x224xf32>
    %45 = arith.negf %44 : vector<16x224xf32>
    %46 = math.exp %45 : vector<16x224xf32>
    %cst_28 = arith.constant 1.000000e+00 : f32
    %47 = vector.broadcast %cst_28 : f32 to vector<16x224xf32>
    %48 = arith.addf %47, %46 : vector<16x224xf32>
    %49 = arith.divf %47, %48 : vector<16x224xf32>
    %50 = arith.mulf %43, %49 : vector<16x224xf32>
    %c0_29 = arith.constant 0 : index
    %c0_30 = arith.constant 0 : index
    %c0_31 = arith.constant 0 : index
    %51 = vector.load %arg9[%c0_29, %c0_30, %c0_31] : memref<4x80x16xbf16, #tpu.memory_space<vmem>>, vector<1x80x16xbf16>
    %52 = vector.shape_cast %51 : vector<1x80x16xbf16> to vector<80x16xbf16>
    %53 = arith.truncf %50 : vector<16x224xf32> to vector<16x224xbf16>
    %cst_32 = arith.constant dense<0.000000e+00> : vector<80x224xf32>
    %54 = tpu.matmul %52, %53, %cst_32 {dimension_numbers = #tpu.dot_dimension_numbers<[1], [0], [0], [1], [0, 0, 1, 1], [], []>} : vector<80x16xbf16>, vector<16x224xbf16>, vector<80x224xf32> -> vector<80x224xf32>
    %55 = vector.extract_strided_slice %54 {offsets = [0, 0], sizes = [16, 224], strides = [1, 1]} : vector<80x224xf32> to vector<16x224xf32>
    %56 = vector.extract_strided_slice %54 {offsets = [16, 0], sizes = [16, 224], strides = [1, 1]} : vector<80x224xf32> to vector<16x224xf32>
    %57 = vector.extract_strided_slice %54 {offsets = [32, 0], sizes = [16, 224], strides = [1, 1]} : vector<80x224xf32> to vector<16x224xf32>
    %58 = vector.extract_strided_slice %54 {offsets = [48, 0], sizes = [32, 224], strides = [1, 1]} : vector<80x224xf32> to vector<32x224xf32>
    %c0_33 = arith.constant 0 : index
    %c0_34 = arith.constant 0 : index
    %c0_35 = arith.constant 0 : index
    %59 = vector.load %arg11[%c0_33, %c0_34, %c0_35] : memref<4x32x1xf32, #tpu.memory_space<vmem>>, vector<1x32x1xf32>
    %60 = vector.shape_cast %59 : vector<1x32x1xf32> to vector<32x1xf32>
    %61 = vector.broadcast %60 : vector<32x1xf32> to vector<32x224xf32>
    %62 = arith.addf %58, %61 : vector<32x224xf32>
    %c0_36 = arith.constant 0 : index
    %c0_37 = arith.constant 0 : index
    %63 = vector.load %arg18[%c0_36, %c0_37] : memref<256x256xbf16, #tpu.memory_space<vmem>>, vector<224x224xbf16>
    %64 = arith.truncf %57 : vector<16x224xf32> to vector<16x224xbf16>
    %cst_38 = arith.constant dense<0.000000e+00> : vector<16x224xf32>
    %65 = tpu.matmul %64, %63, %cst_38 {dimension_numbers = #tpu.dot_dimension_numbers<[1], [0], [0], [1], [0, 0, 1, 1], [], []>} : vector<16x224xbf16>, vector<224x224xbf16>, vector<16x224xf32> -> vector<16x224xf32>
    %66 = arith.addf %56, %65 : vector<16x224xf32>
    %67 = arith.truncf %66 : vector<16x224xf32> to vector<16x224xbf16>
    %cst_39 = arith.constant dense<0.000000e+00> : vector<16x224xf32>
    %68 = tpu.matmul %67, %63, %cst_39 {dimension_numbers = #tpu.dot_dimension_numbers<[1], [0], [0], [1], [0, 0, 1, 1], [], []>} : vector<16x224xbf16>, vector<224x224xbf16>, vector<16x224xf32> -> vector<16x224xf32>
    %69 = arith.addf %55, %68 : vector<16x224xf32>
    %c0_40 = arith.constant 0 : index
    %c0_41 = arith.constant 0 : index
    %c0_42 = arith.constant 0 : index
    %70 = vector.load %arg10[%c0_40, %c0_41, %c0_42] : memref<4x16x1xf32, #tpu.memory_space<vmem>>, vector<1x16x1xf32>
    %71 = vector.shape_cast %70 : vector<1x16x1xf32> to vector<16x1xf32>
    %72 = vector.broadcast %71 : vector<16x1xf32> to vector<16x224xf32>
    %73 = arith.addf %69, %72 : vector<16x224xf32>
    %c0_43 = arith.constant 0 : index
    %c0_44 = arith.constant 0 : index
    %c0_45 = arith.constant 0 : index
    %74 = vector.load %arg12[%c0_43, %c0_44, %c0_45] : memref<4x16x1xf32, #tpu.memory_space<vmem>>, vector<1x16x1xf32>
    %75 = vector.shape_cast %74 : vector<1x16x1xf32> to vector<16x1xf32>
    %76 = vector.broadcast %75 : vector<16x1xf32> to vector<16x224xf32>
    %77 = arith.mulf %76, %28 : vector<16x224xf32>
    %78 = arith.addf %73, %77 : vector<16x224xf32>
    %79 = vector.extract_strided_slice %78 {offsets = [0, 0], sizes = [16, 160], strides = [1, 1]} : vector<16x224xf32> to vector<16x160xf32>
    %80 = vector.extract_strided_slice %78 {offsets = [0, 64], sizes = [16, 160], strides = [1, 1]} : vector<16x224xf32> to vector<16x160xf32>
    %c1 = arith.constant 1 : index
    %c0_46 = arith.constant 0 : index
    %c0_47 = arith.constant 0 : index
    %81 = vector.load %arg6[%c1, %c0_46, %c0_47] : memref<4x32x16xbf16, #tpu.memory_space<vmem>>, vector<1x32x16xbf16>
    %82 = vector.shape_cast %81 : vector<1x32x16xbf16> to vector<32x16xbf16>
    %83 = arith.truncf %79 : vector<16x160xf32> to vector<16x160xbf16>
    %cst_48 = arith.constant dense<0.000000e+00> : vector<32x160xf32>
    %84 = tpu.matmul %82, %83, %cst_48 {dimension_numbers = #tpu.dot_dimension_numbers<[1], [0], [0], [1], [0, 0, 1, 1], [], []>} : vector<32x16xbf16>, vector<16x160xbf16>, vector<32x160xf32> -> vector<32x160xf32>
    %c1_49 = arith.constant 1 : index
    %c0_50 = arith.constant 0 : index
    %c0_51 = arith.constant 0 : index
    %85 = vector.load %arg7[%c1_49, %c0_50, %c0_51] : memref<4x32x16xbf16, #tpu.memory_space<vmem>>, vector<1x32x16xbf16>
    %86 = vector.shape_cast %85 : vector<1x32x16xbf16> to vector<32x16xbf16>
    %87 = arith.truncf %80 : vector<16x160xf32> to vector<16x160xbf16>
    %cst_52 = arith.constant dense<0.000000e+00> : vector<32x160xf32>
    %88 = tpu.matmul %86, %87, %cst_52 {dimension_numbers = #tpu.dot_dimension_numbers<[1], [0], [0], [1], [0, 0, 1, 1], [], []>} : vector<32x16xbf16>, vector<16x160xbf16>, vector<32x160xf32> -> vector<32x160xf32>
    %89 = arith.addf %84, %88 : vector<32x160xf32>
    %c1_53 = arith.constant 1 : index
    %c0_54 = arith.constant 0 : index
    %c0_55 = arith.constant 0 : index
    %90 = vector.load %arg8[%c1_53, %c0_54, %c0_55] : memref<4x32x1xf32, #tpu.memory_space<vmem>>, vector<1x32x1xf32>
    %91 = vector.shape_cast %90 : vector<1x32x1xf32> to vector<32x1xf32>
    %92 = vector.broadcast %91 : vector<32x1xf32> to vector<32x160xf32>
    %93 = arith.addf %89, %92 : vector<32x160xf32>
    %94 = vector.extract_strided_slice %93 {offsets = [0, 0], sizes = [16, 160], strides = [1, 1]} : vector<32x160xf32> to vector<16x160xf32>
    %95 = math.tanh %94 : vector<16x160xf32>
    %96 = vector.extract_strided_slice %93 {offsets = [16, 0], sizes = [16, 160], strides = [1, 1]} : vector<32x160xf32> to vector<16x160xf32>
    %97 = arith.negf %96 : vector<16x160xf32>
    %98 = math.exp %97 : vector<16x160xf32>
    %cst_56 = arith.constant 1.000000e+00 : f32
    %99 = vector.broadcast %cst_56 : f32 to vector<16x160xf32>
    %100 = arith.addf %99, %98 : vector<16x160xf32>
    %101 = arith.divf %99, %100 : vector<16x160xf32>
    %102 = arith.mulf %95, %101 : vector<16x160xf32>
    %c1_57 = arith.constant 1 : index
    %c0_58 = arith.constant 0 : index
    %c0_59 = arith.constant 0 : index
    %103 = vector.load %arg9[%c1_57, %c0_58, %c0_59] : memref<4x80x16xbf16, #tpu.memory_space<vmem>>, vector<1x80x16xbf16>
    %104 = vector.shape_cast %103 : vector<1x80x16xbf16> to vector<80x16xbf16>
    %105 = arith.truncf %102 : vector<16x160xf32> to vector<16x160xbf16>
    %cst_60 = arith.constant dense<0.000000e+00> : vector<80x160xf32>
    %106 = tpu.matmul %104, %105, %cst_60 {dimension_numbers = #tpu.dot_dimension_numbers<[1], [0], [0], [1], [0, 0, 1, 1], [], []>} : vector<80x16xbf16>, vector<16x160xbf16>, vector<80x160xf32> -> vector<80x160xf32>
    %107 = vector.extract_strided_slice %106 {offsets = [0, 0], sizes = [16, 160], strides = [1, 1]} : vector<80x160xf32> to vector<16x160xf32>
    %108 = vector.extract_strided_slice %106 {offsets = [16, 0], sizes = [16, 160], strides = [1, 1]} : vector<80x160xf32> to vector<16x160xf32>
    %109 = vector.extract_strided_slice %106 {offsets = [32, 0], sizes = [16, 160], strides = [1, 1]} : vector<80x160xf32> to vector<16x160xf32>
    %110 = vector.extract_strided_slice %106 {offsets = [48, 0], sizes = [32, 160], strides = [1, 1]} : vector<80x160xf32> to vector<32x160xf32>
    %c1_61 = arith.constant 1 : index
    %c0_62 = arith.constant 0 : index
    %c0_63 = arith.constant 0 : index
    %111 = vector.load %arg11[%c1_61, %c0_62, %c0_63] : memref<4x32x1xf32, #tpu.memory_space<vmem>>, vector<1x32x1xf32>
    %112 = vector.shape_cast %111 : vector<1x32x1xf32> to vector<32x1xf32>
    %113 = vector.broadcast %112 : vector<32x1xf32> to vector<32x160xf32>
    %114 = arith.addf %110, %113 : vector<32x160xf32>
    %c0_64 = arith.constant 0 : index
    %c0_65 = arith.constant 0 : index
    %115 = vector.load %arg18[%c0_64, %c0_65] : memref<256x256xbf16, #tpu.memory_space<vmem>>, vector<160x160xbf16>
    %116 = arith.truncf %109 : vector<16x160xf32> to vector<16x160xbf16>
    %cst_66 = arith.constant dense<0.000000e+00> : vector<16x160xf32>
    %117 = tpu.matmul %116, %115, %cst_66 {dimension_numbers = #tpu.dot_dimension_numbers<[1], [0], [0], [1], [0, 0, 1, 1], [], []>} : vector<16x160xbf16>, vector<160x160xbf16>, vector<16x160xf32> -> vector<16x160xf32>
    %118 = arith.addf %108, %117 : vector<16x160xf32>
    %119 = arith.truncf %118 : vector<16x160xf32> to vector<16x160xbf16>
    %cst_67 = arith.constant dense<0.000000e+00> : vector<16x160xf32>
    %120 = tpu.matmul %119, %115, %cst_67 {dimension_numbers = #tpu.dot_dimension_numbers<[1], [0], [0], [1], [0, 0, 1, 1], [], []>} : vector<16x160xbf16>, vector<160x160xbf16>, vector<16x160xf32> -> vector<16x160xf32>
    %121 = arith.addf %107, %120 : vector<16x160xf32>
    %c1_68 = arith.constant 1 : index
    %c0_69 = arith.constant 0 : index
    %c0_70 = arith.constant 0 : index
    %122 = vector.load %arg10[%c1_68, %c0_69, %c0_70] : memref<4x16x1xf32, #tpu.memory_space<vmem>>, vector<1x16x1xf32>
    %123 = vector.shape_cast %122 : vector<1x16x1xf32> to vector<16x1xf32>
    %124 = vector.broadcast %123 : vector<16x1xf32> to vector<16x160xf32>
    %125 = arith.addf %121, %124 : vector<16x160xf32>
    %c1_71 = arith.constant 1 : index
    %c0_72 = arith.constant 0 : index
    %c0_73 = arith.constant 0 : index
    %126 = vector.load %arg12[%c1_71, %c0_72, %c0_73] : memref<4x16x1xf32, #tpu.memory_space<vmem>>, vector<1x16x1xf32>
    %127 = vector.shape_cast %126 : vector<1x16x1xf32> to vector<16x1xf32>
    %128 = vector.broadcast %127 : vector<16x1xf32> to vector<16x160xf32>
    %129 = arith.mulf %128, %80 : vector<16x160xf32>
    %130 = arith.addf %125, %129 : vector<16x160xf32>
    %131 = vector.extract_strided_slice %62 {offsets = [0, 64], sizes = [32, 160], strides = [1, 1]} : vector<32x224xf32> to vector<32x160xf32>
    %132 = arith.addf %114, %131 : vector<32x160xf32>
    %133 = vector.extract_strided_slice %130 {offsets = [0, 0], sizes = [16, 128], strides = [1, 1]} : vector<16x160xf32> to vector<16x128xf32>
    %134 = vector.extract_strided_slice %130 {offsets = [0, 32], sizes = [16, 128], strides = [1, 1]} : vector<16x160xf32> to vector<16x128xf32>
    %c2 = arith.constant 2 : index
    %c0_74 = arith.constant 0 : index
    %c0_75 = arith.constant 0 : index
    %135 = vector.load %arg6[%c2, %c0_74, %c0_75] : memref<4x32x16xbf16, #tpu.memory_space<vmem>>, vector<1x32x16xbf16>
    %136 = vector.shape_cast %135 : vector<1x32x16xbf16> to vector<32x16xbf16>
    %137 = arith.truncf %133 : vector<16x128xf32> to vector<16x128xbf16>
    %cst_76 = arith.constant dense<0.000000e+00> : vector<32x128xf32>
    %138 = tpu.matmul %136, %137, %cst_76 {dimension_numbers = #tpu.dot_dimension_numbers<[1], [0], [0], [1], [0, 0, 1, 1], [], []>} : vector<32x16xbf16>, vector<16x128xbf16>, vector<32x128xf32> -> vector<32x128xf32>
    %c2_77 = arith.constant 2 : index
    %c0_78 = arith.constant 0 : index
    %c0_79 = arith.constant 0 : index
    %139 = vector.load %arg7[%c2_77, %c0_78, %c0_79] : memref<4x32x16xbf16, #tpu.memory_space<vmem>>, vector<1x32x16xbf16>
    %140 = vector.shape_cast %139 : vector<1x32x16xbf16> to vector<32x16xbf16>
    %141 = arith.truncf %134 : vector<16x128xf32> to vector<16x128xbf16>
    %cst_80 = arith.constant dense<0.000000e+00> : vector<32x128xf32>
    %142 = tpu.matmul %140, %141, %cst_80 {dimension_numbers = #tpu.dot_dimension_numbers<[1], [0], [0], [1], [0, 0, 1, 1], [], []>} : vector<32x16xbf16>, vector<16x128xbf16>, vector<32x128xf32> -> vector<32x128xf32>
    %143 = arith.addf %138, %142 : vector<32x128xf32>
    %c2_81 = arith.constant 2 : index
    %c0_82 = arith.constant 0 : index
    %c0_83 = arith.constant 0 : index
    %144 = vector.load %arg8[%c2_81, %c0_82, %c0_83] : memref<4x32x1xf32, #tpu.memory_space<vmem>>, vector<1x32x1xf32>
    %145 = vector.shape_cast %144 : vector<1x32x1xf32> to vector<32x1xf32>
    %146 = vector.broadcast %145 : vector<32x1xf32> to vector<32x128xf32>
    %147 = arith.addf %143, %146 : vector<32x128xf32>
    %148 = vector.extract_strided_slice %147 {offsets = [0, 0], sizes = [16, 128], strides = [1, 1]} : vector<32x128xf32> to vector<16x128xf32>
    %149 = math.tanh %148 : vector<16x128xf32>
    %150 = vector.extract_strided_slice %147 {offsets = [16, 0], sizes = [16, 128], strides = [1, 1]} : vector<32x128xf32> to vector<16x128xf32>
    %151 = arith.negf %150 : vector<16x128xf32>
    %152 = math.exp %151 : vector<16x128xf32>
    %cst_84 = arith.constant 1.000000e+00 : f32
    %153 = vector.broadcast %cst_84 : f32 to vector<16x128xf32>
    %154 = arith.addf %153, %152 : vector<16x128xf32>
    %155 = arith.divf %153, %154 : vector<16x128xf32>
    %156 = arith.mulf %149, %155 : vector<16x128xf32>
    %c2_85 = arith.constant 2 : index
    %c0_86 = arith.constant 0 : index
    %c0_87 = arith.constant 0 : index
    %157 = vector.load %arg9[%c2_85, %c0_86, %c0_87] : memref<4x80x16xbf16, #tpu.memory_space<vmem>>, vector<1x80x16xbf16>
    %158 = vector.shape_cast %157 : vector<1x80x16xbf16> to vector<80x16xbf16>
    %159 = arith.truncf %156 : vector<16x128xf32> to vector<16x128xbf16>
    %cst_88 = arith.constant dense<0.000000e+00> : vector<80x128xf32>
    %160 = tpu.matmul %158, %159, %cst_88 {dimension_numbers = #tpu.dot_dimension_numbers<[1], [0], [0], [1], [0, 0, 1, 1], [], []>} : vector<80x16xbf16>, vector<16x128xbf16>, vector<80x128xf32> -> vector<80x128xf32>
    %161 = vector.extract_strided_slice %160 {offsets = [0, 0], sizes = [16, 128], strides = [1, 1]} : vector<80x128xf32> to vector<16x128xf32>
    %162 = vector.extract_strided_slice %160 {offsets = [16, 0], sizes = [16, 128], strides = [1, 1]} : vector<80x128xf32> to vector<16x128xf32>
    %163 = vector.extract_strided_slice %160 {offsets = [32, 0], sizes = [16, 128], strides = [1, 1]} : vector<80x128xf32> to vector<16x128xf32>
    %164 = vector.extract_strided_slice %160 {offsets = [48, 0], sizes = [32, 128], strides = [1, 1]} : vector<80x128xf32> to vector<32x128xf32>
    %c2_89 = arith.constant 2 : index
    %c0_90 = arith.constant 0 : index
    %c0_91 = arith.constant 0 : index
    %165 = vector.load %arg11[%c2_89, %c0_90, %c0_91] : memref<4x32x1xf32, #tpu.memory_space<vmem>>, vector<1x32x1xf32>
    %166 = vector.shape_cast %165 : vector<1x32x1xf32> to vector<32x1xf32>
    %167 = vector.broadcast %166 : vector<32x1xf32> to vector<32x128xf32>
    %168 = arith.addf %164, %167 : vector<32x128xf32>
    %c0_92 = arith.constant 0 : index
    %c0_93 = arith.constant 0 : index
    %169 = vector.load %arg18[%c0_92, %c0_93] : memref<256x256xbf16, #tpu.memory_space<vmem>>, vector<128x128xbf16>
    %170 = arith.truncf %163 : vector<16x128xf32> to vector<16x128xbf16>
    %cst_94 = arith.constant dense<0.000000e+00> : vector<16x128xf32>
    %171 = tpu.matmul %170, %169, %cst_94 {dimension_numbers = #tpu.dot_dimension_numbers<[1], [0], [0], [1], [0, 0, 1, 1], [], []>} : vector<16x128xbf16>, vector<128x128xbf16>, vector<16x128xf32> -> vector<16x128xf32>
    %172 = arith.addf %162, %171 : vector<16x128xf32>
    %173 = arith.truncf %172 : vector<16x128xf32> to vector<16x128xbf16>
    %cst_95 = arith.constant dense<0.000000e+00> : vector<16x128xf32>
    %174 = tpu.matmul %173, %169, %cst_95 {dimension_numbers = #tpu.dot_dimension_numbers<[1], [0], [0], [1], [0, 0, 1, 1], [], []>} : vector<16x128xbf16>, vector<128x128xbf16>, vector<16x128xf32> -> vector<16x128xf32>
    %175 = arith.addf %161, %174 : vector<16x128xf32>
    %c2_96 = arith.constant 2 : index
    %c0_97 = arith.constant 0 : index
    %c0_98 = arith.constant 0 : index
    %176 = vector.load %arg10[%c2_96, %c0_97, %c0_98] : memref<4x16x1xf32, #tpu.memory_space<vmem>>, vector<1x16x1xf32>
    %177 = vector.shape_cast %176 : vector<1x16x1xf32> to vector<16x1xf32>
    %178 = vector.broadcast %177 : vector<16x1xf32> to vector<16x128xf32>
    %179 = arith.addf %175, %178 : vector<16x128xf32>
    %c2_99 = arith.constant 2 : index
    %c0_100 = arith.constant 0 : index
    %c0_101 = arith.constant 0 : index
    %180 = vector.load %arg12[%c2_99, %c0_100, %c0_101] : memref<4x16x1xf32, #tpu.memory_space<vmem>>, vector<1x16x1xf32>
    %181 = vector.shape_cast %180 : vector<1x16x1xf32> to vector<16x1xf32>
    %182 = vector.broadcast %181 : vector<16x1xf32> to vector<16x128xf32>
    %183 = arith.mulf %182, %134 : vector<16x128xf32>
    %184 = arith.addf %179, %183 : vector<16x128xf32>
    %185 = vector.extract_strided_slice %132 {offsets = [0, 32], sizes = [32, 128], strides = [1, 1]} : vector<32x160xf32> to vector<32x128xf32>
    %186 = arith.addf %168, %185 : vector<32x128xf32>
    %187 = vector.extract_strided_slice %184 {offsets = [0, 0], sizes = [16, 64], strides = [1, 1]} : vector<16x128xf32> to vector<16x64xf32>
    %188 = vector.extract_strided_slice %184 {offsets = [0, 64], sizes = [16, 64], strides = [1, 1]} : vector<16x128xf32> to vector<16x64xf32>
    %c3 = arith.constant 3 : index
    %c0_102 = arith.constant 0 : index
    %c0_103 = arith.constant 0 : index
    %189 = vector.load %arg6[%c3, %c0_102, %c0_103] : memref<4x32x16xbf16, #tpu.memory_space<vmem>>, vector<1x32x16xbf16>
    %190 = vector.shape_cast %189 : vector<1x32x16xbf16> to vector<32x16xbf16>
    %191 = arith.truncf %187 : vector<16x64xf32> to vector<16x64xbf16>
    %cst_104 = arith.constant dense<0.000000e+00> : vector<32x64xf32>
    %192 = tpu.matmul %190, %191, %cst_104 {dimension_numbers = #tpu.dot_dimension_numbers<[1], [0], [0], [1], [0, 0, 1, 1], [], []>} : vector<32x16xbf16>, vector<16x64xbf16>, vector<32x64xf32> -> vector<32x64xf32>
    %c3_105 = arith.constant 3 : index
    %c0_106 = arith.constant 0 : index
    %c0_107 = arith.constant 0 : index
    %193 = vector.load %arg7[%c3_105, %c0_106, %c0_107] : memref<4x32x16xbf16, #tpu.memory_space<vmem>>, vector<1x32x16xbf16>
    %194 = vector.shape_cast %193 : vector<1x32x16xbf16> to vector<32x16xbf16>
    %195 = arith.truncf %188 : vector<16x64xf32> to vector<16x64xbf16>
    %cst_108 = arith.constant dense<0.000000e+00> : vector<32x64xf32>
    %196 = tpu.matmul %194, %195, %cst_108 {dimension_numbers = #tpu.dot_dimension_numbers<[1], [0], [0], [1], [0, 0, 1, 1], [], []>} : vector<32x16xbf16>, vector<16x64xbf16>, vector<32x64xf32> -> vector<32x64xf32>
    %197 = arith.addf %192, %196 : vector<32x64xf32>
    %c3_109 = arith.constant 3 : index
    %c0_110 = arith.constant 0 : index
    %c0_111 = arith.constant 0 : index
    %198 = vector.load %arg8[%c3_109, %c0_110, %c0_111] : memref<4x32x1xf32, #tpu.memory_space<vmem>>, vector<1x32x1xf32>
    %199 = vector.shape_cast %198 : vector<1x32x1xf32> to vector<32x1xf32>
    %200 = vector.broadcast %199 : vector<32x1xf32> to vector<32x64xf32>
    %201 = arith.addf %197, %200 : vector<32x64xf32>
    %202 = vector.extract_strided_slice %201 {offsets = [0, 0], sizes = [16, 64], strides = [1, 1]} : vector<32x64xf32> to vector<16x64xf32>
    %203 = math.tanh %202 : vector<16x64xf32>
    %204 = vector.extract_strided_slice %201 {offsets = [16, 0], sizes = [16, 64], strides = [1, 1]} : vector<32x64xf32> to vector<16x64xf32>
    %205 = arith.negf %204 : vector<16x64xf32>
    %206 = math.exp %205 : vector<16x64xf32>
    %cst_112 = arith.constant 1.000000e+00 : f32
    %207 = vector.broadcast %cst_112 : f32 to vector<16x64xf32>
    %208 = arith.addf %207, %206 : vector<16x64xf32>
    %209 = arith.divf %207, %208 : vector<16x64xf32>
    %210 = arith.mulf %203, %209 : vector<16x64xf32>
    %c3_113 = arith.constant 3 : index
    %c0_114 = arith.constant 0 : index
    %c0_115 = arith.constant 0 : index
    %211 = vector.load %arg9[%c3_113, %c0_114, %c0_115] : memref<4x80x16xbf16, #tpu.memory_space<vmem>>, vector<1x80x16xbf16>
    %212 = vector.shape_cast %211 : vector<1x80x16xbf16> to vector<80x16xbf16>
    %213 = arith.truncf %210 : vector<16x64xf32> to vector<16x64xbf16>
    %cst_116 = arith.constant dense<0.000000e+00> : vector<80x64xf32>
    %214 = tpu.matmul %212, %213, %cst_116 {dimension_numbers = #tpu.dot_dimension_numbers<[1], [0], [0], [1], [0, 0, 1, 1], [], []>} : vector<80x16xbf16>, vector<16x64xbf16>, vector<80x64xf32> -> vector<80x64xf32>
    %215 = vector.extract_strided_slice %214 {offsets = [48, 0], sizes = [32, 64], strides = [1, 1]} : vector<80x64xf32> to vector<32x64xf32>
    %c3_117 = arith.constant 3 : index
    %c0_118 = arith.constant 0 : index
    %c0_119 = arith.constant 0 : index
    %216 = vector.load %arg11[%c3_117, %c0_118, %c0_119] : memref<4x32x1xf32, #tpu.memory_space<vmem>>, vector<1x32x1xf32>
    %217 = vector.shape_cast %216 : vector<1x32x1xf32> to vector<32x1xf32>
    %218 = vector.broadcast %217 : vector<32x1xf32> to vector<32x64xf32>
    %219 = arith.addf %215, %218 : vector<32x64xf32>
    %220 = vector.extract_strided_slice %186 {offsets = [0, 64], sizes = [32, 64], strides = [1, 1]} : vector<32x128xf32> to vector<32x64xf32>
    %221 = arith.addf %219, %220 : vector<32x64xf32>
    %cst_120 = arith.constant 0.000000e+00 : f32
    %222 = vector.broadcast %cst_120 : f32 to vector<32x64xf32>
    %223 = arith.maximumf %221, %222 : vector<32x64xf32>
    %c0_121 = arith.constant 0 : index
    %c0_122 = arith.constant 0 : index
    %224 = vector.load %arg13[%c0_121, %c0_122] : memref<32x32xbf16, #tpu.memory_space<vmem>>, vector<32x32xbf16>
    %225 = arith.truncf %223 : vector<32x64xf32> to vector<32x64xbf16>
    %cst_123 = arith.constant dense<0.000000e+00> : vector<32x64xf32>
    %226 = tpu.matmul %224, %225, %cst_123 {dimension_numbers = #tpu.dot_dimension_numbers<[1], [0], [0], [1], [0, 0, 1, 1], [], []>} : vector<32x32xbf16>, vector<32x64xbf16>, vector<32x64xf32> -> vector<32x64xf32>
    %c0_124 = arith.constant 0 : index
    %c0_125 = arith.constant 0 : index
    %227 = vector.load %arg14[%c0_124, %c0_125] : memref<32x1xf32, #tpu.memory_space<vmem>>, vector<32x1xf32>
    %228 = vector.broadcast %227 : vector<32x1xf32> to vector<32x64xf32>
    %229 = arith.addf %226, %228 : vector<32x64xf32>
    %cst_126 = arith.constant 0.000000e+00 : f32
    %230 = vector.broadcast %cst_126 : f32 to vector<32x64xf32>
    %231 = arith.maximumf %229, %230 : vector<32x64xf32>
    %c0_127 = arith.constant 0 : index
    %c0_128 = arith.constant 0 : index
    %232 = vector.load %arg15[%c0_127, %c0_128] : memref<4x32xbf16, #tpu.memory_space<vmem>>, vector<4x32xbf16>
    %233 = arith.truncf %231 : vector<32x64xf32> to vector<32x64xbf16>
    %cst_129 = arith.constant dense<0.000000e+00> : vector<4x64xf32>
    %234 = tpu.matmul %232, %233, %cst_129 {dimension_numbers = #tpu.dot_dimension_numbers<[1], [0], [0], [1], [0, 0, 1, 1], [], []>} : vector<4x32xbf16>, vector<32x64xbf16>, vector<4x64xf32> -> vector<4x64xf32>
    %c0_130 = arith.constant 0 : index
    %c0_131 = arith.constant 0 : index
    %235 = vector.load %arg16[%c0_130, %c0_131] : memref<4x1xf32, #tpu.memory_space<vmem>>, vector<4x1xf32>
    %236 = vector.broadcast %235 : vector<4x1xf32> to vector<4x64xf32>
    %237 = arith.addf %234, %236 : vector<4x64xf32>
    %c0_132 = arith.constant 0 : index
    %c0_133 = arith.constant 0 : index
    %238 = vector.load %arg17[%c0_132, %c0_133] : memref<4x64xf32, #tpu.memory_space<vmem>>, vector<4x64xf32>
    tpu.vector_store %arg17[%c0_132, %c0_133], %237 {strides = array<i32>} : memref<4x64xf32, #tpu.memory_space<vmem>>, vector<4x64xf32>,
    return
  }
}

</mosaic_0001>

<llo_original>
// kernel: graph_wavenet_forward.1
$region0: #{graph_wavenet_forward.1}
  #allocation0 [shape = 'u32[]', space=smem, size = 0x4, offset = 0x4, fixed_abs, tag = 'smem constant byte address 0x4 - core index']
  #allocation1 [shape = 'u32[72,128]{1,0:T(1,128)}', space=vmem, size = 0x9000, scoped, tag = 'internal scratch']
  #allocation2 [shape = 'bf16[256,256]{1,0:T(8,128)(2,1)}', space=vmem, size = 0x20000, scoped, tag = 'scratch operand']
  %s0 = inlined_call_operand.vmem [shape: f32[2,256], index: 0, kind: input, shape index: {}]
  %s1 = inlined_call_operand.hbm [shape: f32[256,256], index: 1, kind: input, shape index: {}]
  %s2 = inlined_call_operand.vmem [shape: f32[16,10], index: 2, kind: input, shape index: {}]
  %s3 = inlined_call_operand.vmem [shape: f32[10,16], index: 3, kind: input, shape index: {}]
  %s4 = inlined_call_operand.vmem [shape: bf16[16,2], index: 4, kind: input, shape index: {}]
  %s5 = inlined_call_operand.vmem [shape: f32[16,1], index: 5, kind: input, shape index: {}]
  %s6 = inlined_call_operand.vmem [shape: bf16[4,32,16], index: 6, kind: input, shape index: {}]
  %s7 = inlined_call_operand.vmem [shape: bf16[4,32,16], index: 7, kind: input, shape index: {}]
  %s8 = inlined_call_operand.vmem [shape: f32[4,32,1], index: 8, kind: input, shape index: {}]
  %s9 = inlined_call_operand.vmem [shape: bf16[4,80,16], index: 9, kind: input, shape index: {}]
  %s10 = inlined_call_operand.vmem [shape: f32[4,16,1], index: 10, kind: input, shape index: {}]
  %s11 = inlined_call_operand.vmem [shape: f32[4,32,1], index: 11, kind: input, shape index: {}]
  %s12 = inlined_call_operand.vmem [shape: f32[4,16,1], index: 12, kind: input, shape index: {}]
  %s13 = inlined_call_operand.vmem [shape: bf16[32,32], index: 13, kind: input, shape index: {}]
  %s14 = inlined_call_operand.vmem [shape: f32[32,1], index: 14, kind: input, shape index: {}]
  %s15 = inlined_call_operand.vmem [shape: bf16[4,32], index: 15, kind: input, shape index: {}]
  %s16 = inlined_call_operand.vmem [shape: f32[4,1], index: 16, kind: input, shape index: {}]
  %s17 = inlined_call_operand.vmem [shape: f32[4,64], index: 17, kind: output, shape index: {}]
  %s18 = sld [smem:[#allocation0]]
  $region82: #{graph_wavenet_forward.1} parent=0
    _
  %s20 = ssub.s32 1, %s18
  %s21 = scalar_select 0, %s20, %s18
  $region1: #{graph_wavenet_forward.1} parent=0
    #allocation3 [shape = 'u8[262144]{0}', space=vmem, size = 0x40000, scoped, tag = 'input window, operand 1, single buffered']
    #allocation4 [shape = 's32[1]{0}', space=sflag, size = 0x4, scoped, tag = 'scoped memory for graph_wavenet_forward.1']
    %22 = vsyncpa [#allocation4], 0
    // Predicated region
    $region2: #{graph_wavenet_forward.1} parent=1 // pred_check
      _
    $region3: #{graph_wavenet_forward.1} parent=1 // pred_check_branch
      %24 = sbr.rel (0) target = $region5
    $region4: #{graph_wavenet_forward.1} parent=1 // pred_region
      _
    $region5: #{graph_wavenet_forward.1} parent=1 // pred_fallthru
      _
    // Predicated region
    $region6: #{graph_wavenet_forward.1} parent=1 // pred_check
      _
    $region7: #{graph_wavenet_forward.1} parent=1 // pred_check_branch
      %26 = sbr.rel (0) target = $region9
    $region8: #{graph_wavenet_forward.1} parent=1 // pred_region
      %28 = vsyncadd [#allocation4], 0
      %s29 = sshll.u32 %s1, 4
      %s30 = int_to_ptr.hbm [resolvable:$true] %s29
      %s31 = sshll.u32 [#allocation3], 4
      %s32 = int_to_ptr.vmem [resolvable:$true] %s31
      %37 = dma.hbm_to_vmem [thread:$0]  %s30, 8192, %s32, [#allocation4], 256, 256, 16
    $region9: #{graph_wavenet_forward.1} parent=1 // pred_fallthru
      _
    // Predicated region
    $region10: #{graph_wavenet_forward.1} parent=1 // pred_check
      _
    $region11: #{graph_wavenet_forward.1} parent=1 // pred_check_branch
      %39 = sbr.rel (0) target = $region13
    $region12: #{graph_wavenet_forward.1} parent=1 // pred_region
      _
    $region13: #{graph_wavenet_forward.1} parent=1 // pred_fallthru
      _
    // Predicated region
    $region14: #{graph_wavenet_forward.1} parent=1 // pred_check
      _
    $region15: #{graph_wavenet_forward.1} parent=1 // pred_check_branch
      %41 = sbr.rel (0) target = $region17
    $region16: #{graph_wavenet_forward.1} parent=1 // pred_region
      _
    $region17: #{graph_wavenet_forward.1} parent=1 // pred_fallthru
      _
    // Predicated region
    $region18: #{graph_wavenet_forward.1} parent=1 // pred_check
      _
    $region19: #{graph_wavenet_forward.1} parent=1 // pred_check_branch
      %43 = sbr.rel (0) target = $region21
    $region20: #{graph_wavenet_forward.1} parent=1 // pred_region
      _
    $region21: #{graph_wavenet_forward.1} parent=1 // pred_fallthru
      _
    // Predicated region
    $region22: #{graph_wavenet_forward.1} parent=1 // pred_check
      _
    $region23: #{graph_wavenet_forward.1} parent=1 // pred_check_branch
      %45 = sbr.rel (0) target = $region25
    $region24: #{graph_wavenet_forward.1} parent=1 // pred_region
      _
    $region25: #{graph_wavenet_forward.1} parent=1 // pred_fallthru
      _
    // Predicated region
    $region26: #{graph_wavenet_forward.1} parent=1 // pred_check
      _
    $region27: #{graph_wavenet_forward.1} parent=1 // pred_check_branch
      %47 = sbr.rel (0) target = $region29
    $region28: #{graph_wavenet_forward.1} parent=1 // pred_region
      _
    $region29: #{graph_wavenet_forward.1} parent=1 // pred_fallthru
      _
    // Predicated region
    $region30: #{graph_wavenet_forward.1} parent=1 // pred_check
      _
    $region31: #{graph_wavenet_forward.1} parent=1 // pred_check_branch
      %49 = sbr.rel (0) target = $region33
    $region32: #{graph_wavenet_forward.1} parent=1 // pred_region
      _
    $region33: #{graph_wavenet_forward.1} parent=1 // pred_fallthru
      _
    // Predicated region
    $region34: #{graph_wavenet_forward.1} parent=1 // pred_check
      _
    $region35: #{graph_wavenet_forward.1} parent=1 // pred_check_branch
      %51 = sbr.rel (0) target = $region37
    $region36: #{graph_wavenet_forward.1} parent=1 // pred_region
      _
    $region37: #{graph_wavenet_forward.1} parent=1 // pred_fallthru
      _
    // Predicated region
    $region38: #{graph_wavenet_forward.1} parent=1 // pred_check
      _
    $region39: #{graph_wavenet_forward.1} parent=1 // pred_check_branch
      %53 = sbr.rel (0) target = $region41
    $region40: #{graph_wavenet_forward.1} parent=1 // pred_region
      _
    $region41: #{graph_wavenet_forward.1} parent=1 // pred_fallthru
      _
    // Predicated region
    $region42: #{graph_wavenet_forward.1} parent=1 // pred_check
      _
    $region43: #{graph_wavenet_forward.1} parent=1 // pred_check_branch
      %55 = sbr.rel (0) target = $region45
    $region44: #{graph_wavenet_forward.1} parent=1 // pred_region
      _
    $region45: #{graph_wavenet_forward.1} parent=1 // pred_fallthru
      _
    // Predicated region
    $region46: #{graph_wavenet_forward.1} parent=1 // pred_check
      _
    $region47: #{graph_wavenet_forward.1} parent=1 // pred_check_branch
      %57 = sbr.rel (0) target = $region49
    $region48: #{graph_wavenet_forward.1} parent=1 // pred_region
      _
    $region49: #{graph_wavenet_forward.1} parent=1 // pred_fallthru
      _
    // Predicated region
    $region50: #{graph_wavenet_forward.1} parent=1 // pred_check
      _
    $region51: #{graph_wavenet_forward.1} parent=1 // pred_check_branch
      %59 = sbr.rel (0) target = $region53
    $region52: #{graph_wavenet_forward.1} parent=1 // pred_region
      _
    $region53: #{graph_wavenet_forward.1} parent=1 // pred_fallthru
      _
    // Predicated region
    $region54: #{graph_wavenet_forward.1} parent=1 // pred_check
      _
    $region55: #{graph_wavenet_forward.1} parent=1 // pred_check_branch
      %61 = sbr.rel (0) target = $region57
    $region56: #{graph_wavenet_forward.1} parent=1 // pred_region
      _
    $region57: #{graph_wavenet_forward.1} parent=1 // pred_fallthru
      _
    // Predicated region
    $region58: #{graph_wavenet_forward.1} parent=1 // pred_check
      _
    $region59: #{graph_wavenet_forward.1} parent=1 // pred_check_branch
      %63 = sbr.rel (0) target = $region61
    $region60: #{graph_wavenet_forward.1} parent=1 // pred_region
      _
    $region61: #{graph_wavenet_forward.1} parent=1 // pred_fallthru
      _
    // Predicated region
    $region62: #{graph_wavenet_forward.1} parent=1 // pred_check
      _
    $region63: #{graph_wavenet_forward.1} parent=1 // pred_check_branch
      %65 = sbr.rel (0) target = $region65
    $region64: #{graph_wavenet_forward.1} parent=1 // pred_region
      _
    $region65: #{graph_wavenet_forward.1} parent=1 // pred_fallthru
      _
    // Predicated region
    $region66: #{graph_wavenet_forward.1} parent=1 // pred_check
      _
    $region67: #{graph_wavenet_forward.1} parent=1 // pred_check_branch
      %67 = sbr.rel (0) target = $region69
    $region68: #{graph_wavenet_forward.1} parent=1 // pred_region
      _
    $region69: #{graph_wavenet_forward.1} parent=1 // pred_fallthru
      _
    // Predicated region
    $region70: #{graph_wavenet_forward.1} parent=1 // pred_check
      _
    $region71: #{graph_wavenet_forward.1} parent=1 // pred_check_branch
      %69 = sbr.rel (0) target = $region73
    $region72: #{graph_wavenet_forward.1} parent=1 // pred_region
      %71 = dma.done [#allocation4], 8192
    $region73: #{graph_wavenet_forward.1} parent=1 // pred_fallthru
      _
    %v73 = vld [vmem:[%s2] sm:$0xff]
    %v74 = vld [vmem:[%s2 + $0x8] sm:$0xff]
    %v75 = vld [vmem:[%s3] sm:$0xff]
    %v76 = vld [vmem:[%s3 + $0x8] sm:$0x3]
    %vm77 = vcmask 80896
    %v79 = vsel %vm77, %v73, 0
    %v82 = vsel %vm77, %v74, 0
    %vm84 = vcmask 1041408
    %v86 = vsel %vm84, %v76, 0
    %88 = vmatpush.msra.mxu0 0.0
    %89 = vmatpush.msra.mxu0 0.0
    %90 = vmatpush.msra.mxu0 0.0
    %91 = vmatpush.msra.mxu0 0.0
    %92 = vmatpush.msra.mxu0 0.0
    %93 = vmatpush.msra.mxu0 0.0
    %94 = vmatpush.msra.mxu0 0.0
    %95 = vmatpush.msra.mxu0 0.0
    %96 = vmatpush.msra.mxu0 0.0
    %97 = vmatpush.msra.mxu0 0.0
    %98 = vmatpush.msra.mxu0 0.0
    %99 = vmatpush.msra.mxu0 0.0
    %100 = vmatpush.msra.mxu0 0.0
    %101 = vmatpush.msra.mxu0 0.0
    %102 = vmatpush.msra.mxu0 %v86
    %103 = vmatpush.msra.mxu0 %v75
    %104 = vmatmul.f32.gmra.mxu0 %v79
    %v105 = vpop.f32.mrf.mxu0
    %v106 = vadd.f32 0.0, %v105
    %107 = vmatmul.f32.gmra.mxu0 %v82
    %v108 = vpop.f32.mrf.mxu0
    %v109 = vadd.f32 0.0, %v108
    %110 = vdwg.mxu0
    %v111 = vmax.f32 %v106, 0.0
    %v112 = vmax.f32 %v109, 0.0
    %vm113 = vcmask 130048
    %v114 = vsel %vm113, %v111, -inf
    %115 = vmax.xlane.f32.xlu0 %v114
    %v116 = vpop.xlane.xlu0 %115
    %v117 = vsel %vm113, %v112, -inf
    %118 = vmax.xlane.f32.xlu0 %v117
    %v119 = vpop.xlane.xlu0 %118
    %v120 = vsub.f32 %v111, %v116
    %v121 = vsub.f32 %v112, %v119
    %v122 = vmul.f32 %v120, 1.442695
    %v123 = vpow.pop %v122
    %v124 = vmul.f32 %v121, 1.442695
    %v125 = vpow.pop %v124
    %v126 = vsel %vm113, %v123, 0.0
    %127 = vadd.xlane.f32.xlu0 %v126
    %v128 = vpop.xlane.xlu0 %127
    %v129 = vsel %vm113, %v125, 0.0
    %130 = vadd.xlane.f32.xlu0 %v129
    %v131 = vpop.xlane.xlu0 %130
    %v132 = vrcp.pop %v128
    %v133 = vmul.f32 %v128, %v132
    %v134 = vsub.f32 1.0, %v133
    %v135 = vmul.f32 %v132, %v134
    %v136 = vadd.f32 %v132, %v135
    %vm137 = vweird.f32 %v128
    %vm138 = vweird.f32 %v132
    %vm139 = vmor %vm137, %vm138
    %v140 = vsel %vm139, %v132, %v136
    %v141 = vand.u32 2147483647, %v128
    %vm142 = vcmp.eq.f32.partialorder %v141, 8.507059e+37
    %v143 = vand.u32 %v128, 2147483648
    %v144 = vor.u32 1.1754944e-38, %v143
    %v145 = vsel %vm142, %v144, %v140
    %v146 = vmul.f32 %v123, %v145
    %v147 = vrcp.pop %v131
    %v148 = vmul.f32 %v131, %v147
    %v149 = vsub.f32 1.0, %v148
    %v150 = vmul.f32 %v147, %v149
    %v151 = vadd.f32 %v147, %v150
    %vm152 = vweird.f32 %v131
    %vm153 = vweird.f32 %v147
    %vm154 = vmor %vm152, %vm153
    %v155 = vsel %vm154, %v147, %v151
    %v156 = vand.u32 2147483647, %v131
    %vm157 = vcmp.eq.f32.partialorder %v156, 8.507059e+37
    %v158 = vand.u32 %v131, 2147483648
    %v159 = vor.u32 1.1754944e-38, %v158
    %v160 = vsel %vm157, %v159, %v155
    %v161 = vmul.f32 %v125, %v160
    %164 = vrot.lane.b32.xlu0 %v146, 16
    %v165 = vpop.permute.xlu0 %164
    %166 = vrot.lane.b32.xlu0 %v161, 16
    %v167 = vpop.permute.xlu0 %166
    %170 = vrot.lane.b32.xlu0 %v146, 32
    %v171 = vpop.permute.xlu0 %170
    %172 = vrot.lane.b32.xlu0 %v161, 32
    %v173 = vpop.permute.xlu0 %172
    %176 = vrot.lane.b32.xlu0 %v146, 48
    %v177 = vpop.permute.xlu0 %176
    %178 = vrot.lane.b32.xlu0 %v161, 48
    %v179 = vpop.permute.xlu0 %178
    %182 = vrot.lane.b32.xlu0 %v146, 64
    %v183 = vpop.permute.xlu0 %182
    %184 = vrot.lane.b32.xlu0 %v161, 64
    %v185 = vpop.permute.xlu0 %184
    %188 = vrot.lane.b32.xlu0 %v146, 80
    %v189 = vpop.permute.xlu0 %188
    %190 = vrot.lane.b32.xlu0 %v161, 80
    %v191 = vpop.permute.xlu0 %190
    %194 = vrot.lane.b32.xlu0 %v146, 96
    %v195 = vpop.permute.xlu0 %194
    %196 = vrot.lane.b32.xlu0 %v161, 96
    %v197 = vpop.permute.xlu0 %196
    %200 = vrot.lane.b32.xlu0 %v146, 112
    %v201 = vpop.permute.xlu0 %200
    %202 = vrot.lane.b32.xlu0 %v161, 112
    %v203 = vpop.permute.xlu0 %202
    %v206 = vsel %vm113, %v146, %v165
    %v207 = vsel %vm113, %v161, %v167
    %vm208 = vcmask 261120
    %v209 = vsel %vm208, %v206, %v171
    %v210 = vsel %vm208, %v207, %v173
    %vm211 = vcmask 392192
    %v212 = vsel %vm211, %v209, %v177
    %v213 = vsel %vm211, %v210, %v179
    %vm214 = vcmask 523264
    %v215 = vsel %vm214, %v212, %v183
    %v216 = vsel %vm214, %v213, %v185
    %vm217 = vcmask 654336
    %v218 = vsel %vm217, %v215, %v189
    %v219 = vsel %vm217, %v216, %v191
    %vm220 = vcmask 785408
    %v221 = vsel %vm220, %v218, %v195
    %v222 = vsel %vm220, %v219, %v197
    %vm223 = vcmask 916480
    %v224 = vsel %vm223, %v221, %v201
    %v225 = vsel %vm223, %v222, %v203
    %v226 = vld [vmem:[#allocation3] sm:$0xff]
    %v227 = vld [vmem:[#allocation3 + $0x8] sm:$0xff]
    %v228 = vld [vmem:[#allocation3 + $0x10] sm:$0xff]
    %v229 = vld [vmem:[#allocation3 + $0x18] sm:$0xff]
    %v230 = vld [vmem:[#allocation3 + $0x20] sm:$0xff]
    %v231 = vld [vmem:[#allocation3 + $0x28] sm:$0xff]
    %v232 = vld [vmem:[#allocation3 + $0x30] sm:$0xff]
    %v233 = vld [vmem:[#allocation3 + $0x38] sm:$0xff]
    %v234 = vld [vmem:[#allocation3 + $0x40] sm:$0xff]
    %v235 = vld [vmem:[#allocation3 + $0x48] sm:$0xff]
    %v236 = vld [vmem:[#allocation3 + $0x50] sm:$0xff]
    %v237 = vld [vmem:[#allocation3 + $0x58] sm:$0xff]
    %v238 = vld [vmem:[#allocation3 + $0x60] sm:$0xff]
    %v239 = vld [vmem:[#allocation3 + $0x68] sm:$0xff]
    %v240 = vld [vmem:[#allocation3 + $0x70] sm:$0xff]
    %v241 = vld [vmem:[#allocation3 + $0x78] sm:$0xff]
    %v242 = vld [vmem:[#allocation3 + $0x80] sm:$0xff]
    %v243 = vld [vmem:[#allocation3 + $0x88] sm:$0xff]
    %v244 = vld [vmem:[#allocation3 + $0x90] sm:$0xff]
    %v245 = vld [vmem:[#allocation3 + $0x98] sm:$0xff]
    %v246 = vld [vmem:[#allocation3 + $0xa0] sm:$0xff]
    %v247 = vld [vmem:[#allocation3 + $0xa8] sm:$0xff]
    %v248 = vld [vmem:[#allocation3 + $0xb0] sm:$0xff]
    %v249 = vld [vmem:[#allocation3 + $0xb8] sm:$0xff]
    %v250 = vld [vmem:[#allocation3 + $0xc0] sm:$0xff]
    %v251 = vld [vmem:[#allocation3 + $0xc8] sm:$0xff]
    %v252 = vld [vmem:[#allocation3 + $0xd0] sm:$0xff]
    %v253 = vld [vmem:[#allocation3 + $0xd8] sm:$0xff]
    %v254 = vld [vmem:[#allocation3 + $0xe0] sm:$0xff]
    %v255 = vld [vmem:[#allocation3 + $0xe8] sm:$0xff]
    %v256 = vld [vmem:[#allocation3 + $0xf0] sm:$0xff]
    %v257 = vld [vmem:[#allocation3 + $0xf8] sm:$0xff]
    %v258 = vld [vmem:[#allocation3 + $0x100] sm:$0xff]
    %v259 = vld [vmem:[#allocation3 + $0x108] sm:$0xff]
    %v260 = vld [vmem:[#allocation3 + $0x110] sm:$0xff]
    %v261 = vld [vmem:[#allocation3 + $0x118] sm:$0xff]
    %v262 = vld [vmem:[#allocation3 + $0x120] sm:$0xff]
    %v263 = vld [vmem:[#allocation3 + $0x128] sm:$0xff]
    %v264 = vld [vmem:[#allocation3 + $0x130] sm:$0xff]
    %v265 = vld [vmem:[#allocation3 + $0x138] sm:$0xff]
    %v266 = vld [vmem:[#allocation3 + $0x140] sm:$0xff]
    %v267 = vld [vmem:[#allocation3 + $0x148] sm:$0xff]
    %v268 = vld [vmem:[#allocation3 + $0x150] sm:$0xff]
    %v269 = vld [vmem:[#allocation3 + $0x158] sm:$0xff]
    %v270 = vld [vmem:[#allocation3 + $0x160] sm:$0xff]
    %v271 = vld [vmem:[#allocation3 + $0x168] sm:$0xff]
    %v272 = vld [vmem:[#allocation3 + $0x170] sm:$0xff]
    %v273 = vld [vmem:[#allocation3 + $0x178] sm:$0xff]
    %v274 = vld [vmem:[#allocation3 + $0x180] sm:$0xff]
    %v275 = vld [vmem:[#allocation3 + $0x188] sm:$0xff]
    %v276 = vld [vmem:[#allocation3 + $0x190] sm:$0xff]
    %v277 = vld [vmem:[#allocation3 + $0x198] sm:$0xff]
    %v278 = vld [vmem:[#allocation3 + $0x1a0] sm:$0xff]
    %v279 = vld [vmem:[#allocation3 + $0x1a8] sm:$0xff]
    %v280 = vld [vmem:[#allocation3 + $0x1b0] sm:$0xff]
    %v281 = vld [vmem:[#allocation3 + $0x1b8] sm:$0xff]
    %v282 = vld [vmem:[#allocation3 + $0x1c0] sm:$0xff]
    %v283 = vld [vmem:[#allocation3 + $0x1c8] sm:$0xff]
    %v284 = vld [vmem:[#allocation3 + $0x1d0] sm:$0xff]
    %v285 = vld [vmem:[#allocation3 + $0x1d8] sm:$0xff]
    %v286 = vld [vmem:[#allocation3 + $0x1e0] sm:$0xff]
    %v287 = vld [vmem:[#allocation3 + $0x1e8] sm:$0xff]
    %v288 = vld [vmem:[#allocation3 + $0x1f0] sm:$0xff]
    %v289 = vld [vmem:[#allocation3 + $0x1f8] sm:$0xff]
    %v290 = vmul.f32 %v224, %v226
    %v291 = vmul.f32 %v224, %v227
    %v292 = vmul.f32 %v225, %v228
    %v293 = vmul.f32 %v225, %v229
    %v294 = vmul.f32 %v224, %v230
    %v295 = vmul.f32 %v224, %v231
    %v296 = vmul.f32 %v225, %v232
    %v297 = vmul.f32 %v225, %v233
    %v298 = vmul.f32 %v224, %v234
    %v299 = vmul.f32 %v224, %v235
    %v300 = vmul.f32 %v225, %v236
    %v301 = vmul.f32 %v225, %v237
    %v302 = vmul.f32 %v224, %v238
    %v303 = vmul.f32 %v224, %v239
    %v304 = vmul.f32 %v225, %v240
    %v305 = vmul.f32 %v225, %v241
    %v306 = vmul.f32 %v224, %v242
    %v307 = vmul.f32 %v224, %v243
    %v308 = vmul.f32 %v225, %v244
    %v309 = vmul.f32 %v225, %v245
    %v310 = vmul.f32 %v224, %v246
    %v311 = vmul.f32 %v224, %v247
    %v312 = vmul.f32 %v225, %v248
    %v313 = vmul.f32 %v225, %v249
    %v314 = vmul.f32 %v224, %v250
    %v315 = vmul.f32 %v224, %v251
    %v316 = vmul.f32 %v225, %v252
    %v317 = vmul.f32 %v225, %v253
    %v318 = vmul.f32 %v224, %v254
    %v319 = vmul.f32 %v224, %v255
    %v320 = vmul.f32 %v225, %v256
    %v321 = vmul.f32 %v225, %v257
    %v322 = vmul.f32 %v224, %v258
    %v323 = vmul.f32 %v224, %v259
    %v324 = vmul.f32 %v225, %v260
    %v325 = vmul.f32 %v225, %v261
    %v326 = vmul.f32 %v224, %v262
    %v327 = vmul.f32 %v224, %v263
    %v328 = vmul.f32 %v225, %v264
    %v329 = vmul.f32 %v225, %v265
    %v330 = vmul.f32 %v224, %v266
    %v331 = vmul.f32 %v224, %v267
    %v332 = vmul.f32 %v225, %v268
    %v333 = vmul.f32 %v225, %v269
    %v334 = vmul.f32 %v224, %v270
    %v335 = vmul.f32 %v224, %v271
    %v336 = vmul.f32 %v225, %v272
    %v337 = vmul.f32 %v225, %v273
    %v338 = vmul.f32 %v224, %v274
    %v339 = vmul.f32 %v224, %v275
    %v340 = vmul.f32 %v225, %v276
    %v341 = vmul.f32 %v225, %v277
    %v342 = vmul.f32 %v224, %v278
    %v343 = vmul.f32 %v224, %v279
    %v344 = vmul.f32 %v225, %v280
    %v345 = vmul.f32 %v225, %v281
    %v346 = vmul.f32 %v224, %v282
    %v347 = vmul.f32 %v224, %v283
    %v348 = vmul.f32 %v225, %v284
    %v349 = vmul.f32 %v225, %v285
    %v350 = vmul.f32 %v224, %v286
    %v351 = vmul.f32 %v224, %v287
    %v352 = vmul.f32 %v225, %v288
    %v353 = vmul.f32 %v225, %v289
    %v354 = vpack.c.bf16 %v291, %v290
    %v355 = vpack.c.bf16 %v293, %v292
    %v356 = vpack.c.bf16 %v295, %v294
    %v357 = vpack.c.bf16 %v297, %v296
    %v358 = vpack.c.bf16 %v299, %v298
    %v359 = vpack.c.bf16 %v301, %v300
    %v360 = vpack.c.bf16 %v303, %v302
    %v361 = vpack.c.bf16 %v305, %v304
    %v362 = vpack.c.bf16 %v307, %v306
    %v363 = vpack.c.bf16 %v309, %v308
    %v364 = vpack.c.bf16 %v311, %v310
    %v365 = vpack.c.bf16 %v313, %v312
    %v366 = vpack.c.bf16 %v315, %v314
    %v367 = vpack.c.bf16 %v317, %v316
    %v368 = vpack.c.bf16 %v319, %v318
    %v369 = vpack.c.bf16 %v321, %v320
    %v370 = vpack.c.bf16 %v323, %v322
    %v371 = vpack.c.bf16 %v325, %v324
    %v372 = vpack.c.bf16 %v327, %v326
    %v373 = vpack.c.bf16 %v329, %v328
    %v374 = vpack.c.bf16 %v331, %v330
    %v375 = vpack.c.bf16 %v333, %v332
    %v376 = vpack.c.bf16 %v335, %v334
    %v377 = vpack.c.bf16 %v337, %v336
    %v378 = vpack.c.bf16 %v339, %v338
    %v379 = vpack.c.bf16 %v341, %v340
    %v380 = vpack.c.bf16 %v343, %v342
    %v381 = vpack.c.bf16 %v345, %v344
    %v382 = vpack.c.bf16 %v347, %v346
    %v383 = vpack.c.bf16 %v349, %v348
    %v384 = vpack.c.bf16 %v351, %v350
    %v385 = vpack.c.bf16 %v353, %v352
    %386 = vst [vmem:[#allocation2] sm:$0xff] %v354
    %387 = vst [vmem:[#allocation2 + $0x8] sm:$0xff] %v355
    %388 = vst [vmem:[#allocation2 + $0x10] sm:$0xff] %v356
    %389 = vst [vmem:[#allocation2 + $0x18] sm:$0xff] %v357
    %390 = vst [vmem:[#allocation2 + $0x20] sm:$0xff] %v358
    %391 = vst [vmem:[#allocation2 + $0x28] sm:$0xff] %v359
    %392 = vst [vmem:[#allocation2 + $0x30] sm:$0xff] %v360
    %393 = vst [vmem:[#allocation2 + $0x38] sm:$0xff] %v361
    %394 = vst [vmem:[#allocation2 + $0x40] sm:$0xff] %v362
    %395 = vst [vmem:[#allocation2 + $0x48] sm:$0xff] %v363
    %396 = vst [vmem:[#allocation2 + $0x50] sm:$0xff] %v364
    %397 = vst [vmem:[#allocation2 + $0x58] sm:$0xff] %v365
    %398 = vst [vmem:[#allocation2 + $0x60] sm:$0xff] %v366
    %399 = vst [vmem:[#allocation2 + $0x68] sm:$0xff] %v367
    %400 = vst [vmem:[#allocation2 + $0x70] sm:$0xff] %v368
    %401 = vst [vmem:[#allocation2 + $0x78] sm:$0xff] %v369
    %402 = vst [vmem:[#allocation2 + $0x80] sm:$0xff] %v370
    %403 = vst [vmem:[#allocation2 + $0x88] sm:$0xff] %v371
    %404 = vst [vmem:[#allocation2 + $0x90] sm:$0xff] %v372
    %405 = vst [vmem:[#allocation2 + $0x98] sm:$0xff] %v373
    %406 = vst [vmem:[#allocation2 + $0xa0] sm:$0xff] %v374
    %407 = vst [vmem:[#allocation2 + $0xa8] sm:$0xff] %v375
    %408 = vst [vmem:[#allocation2 + $0xb0] sm:$0xff] %v376
    %409 = vst [vmem:[#allocation2 + $0xb8] sm:$0xff] %v377
    %410 = vst [vmem:[#allocation2 + $0xc0] sm:$0xff] %v378
    %411 = vst [vmem:[#allocation2 + $0xc8] sm:$0xff] %v379
    %412 = vst [vmem:[#allocation2 + $0xd0] sm:$0xff] %v380
    %413 = vst [vmem:[#allocation2 + $0xd8] sm:$0xff] %v381
    %414 = vst [vmem:[#allocation2 + $0xe0] sm:$0xff] %v382
    %415 = vst [vmem:[#allocation2 + $0xe8] sm:$0xff] %v383
    %416 = vst [vmem:[#allocation2 + $0xf0] sm:$0xff] %v384
    %417 = vst [vmem:[#allocation2 + $0xf8] sm:$0xff] %v385
    %v418 = vld [vmem:[%s4] sm:$0xf]
    %v419 = vld [vmem:[%s4 + $0x4] sm:$0xf]
    %v420 = vld [vmem:[%s0] sm:$0xf]
    %422 = vst [vmem:[#allocation1] ss:$4 sm:$0xff] %v420
    %v423 = vld.sshfl [vmem:[#allocation1] sm:$0xff pattern:$0x73625140]
    %v424 = vld.sshfl [vmem:[#allocation1 + $0x8] sm:$0xff pattern:$0x73625140]
    %v427 = vpack.c.bf16 %v423, %v423
    %v428 = vpack.c.bf16 %v424, %v424
    %v429 = vld [vmem:[%s5] sm:$0xff]
    %v430 = vld [vmem:[%s5 + $0x8] sm:$0xff]
    %432 = vset.pattern.permute.xlu0 0
    %433 = vperm.xlu0 %432, %v429
    %v434 = vpop.permute.xlu0 %433
    %437 = vset.pattern.permute.xlu0 0
    %438 = vperm.xlu0 %437, %v430
    %v439 = vpop.permute.xlu0 %438
    %v443 = vunpack.c.l.b16 %v418
    %v444 = vunpack.c.l.b16 %v419
    %v445 = vpack.c.b16 %v444, %v443
    %vm446 = vcmask 15360
    %v448 = vsel %vm446, %v445, 0
    %vm450 = vcmask 1040384
    %v452 = vsel %vm450, %v427, 0
    %v455 = vsel %vm450, %v428, 0
    %457 = vmatpush.bf16.msra.mxu0 0
    %458 = vmatpush.bf16.msra.mxu0 0
    %459 = vmatpush.bf16.msra.mxu0 0
    %460 = vmatpush.bf16.msra.mxu0 0
    %461 = vmatpush.bf16.msra.mxu0 0
    %462 = vmatpush.bf16.msra.mxu0 0
    %463 = vmatpush.bf16.msra.mxu0 0
    %464 = vmatpush.bf16.msra.mxu0 %v452
    %465 = vmatmul.bf16.gmra.mxu0 %v448
    %v466 = vpop.f32.mrf.mxu0
    %v467 = vadd.f32 %v434, %v466
    %v468 = vpop.f32.mrf.mxu0
    %v469 = vadd.f32 %v439, %v468
    %470 = vdwg.mxu0
    %471 = vmatpush.bf16.msra.mxu0 0
    %472 = vmatpush.bf16.msra.mxu0 0
    %473 = vmatpush.bf16.msra.mxu0 0
    %474 = vmatpush.bf16.msra.mxu0 0
    %475 = vmatpush.bf16.msra.mxu0 0
    %476 = vmatpush.bf16.msra.mxu0 0
    %477 = vmatpush.bf16.msra.mxu0 0
    %478 = vmatpush.bf16.msra.mxu0 %v455
    %479 = vmatmul.bf16.gmra.mxu0 %v448
    %v480 = vpop.f32.mrf.mxu0
    %v481 = vadd.f32 %v434, %v480
    %v482 = vpop.f32.mrf.mxu0
    %v483 = vadd.f32 %v439, %v482
    %484 = vdwg.mxu0
    %v485 = vld [vmem:[%s6] sm:$0xf]
    %v486 = vld [vmem:[%s6 + $0x4] sm:$0xf]
    %v487 = vld [vmem:[%s6 + $0x8] sm:$0xf]
    %v488 = vld [vmem:[%s6 + $0xc] sm:$0xf]
    %v489 = vpack.c.bf16 %v469, %v467
    %v490 = vpack.c.bf16 %v483, %v481
    %v491 = vld [vmem:[%s7] sm:$0xf]
    %v492 = vld [vmem:[%s7 + $0x4] sm:$0xf]
    %v493 = vld [vmem:[%s7 + $0x8] sm:$0xf]
    %v494 = vld [vmem:[%s7 + $0xc] sm:$0xf]
    %v499 = vunpack.c.l.b16 %v491
    %v500 = vunpack.c.l.b16 %v492
    %v501 = vunpack.c.l.b16 %v493
    %v502 = vunpack.c.l.b16 %v494
    %v503 = vpack.c.b16 %v500, %v499
    %v504 = vpack.c.b16 %v502, %v501
    %507 = vrot.lane.b32.xlu0 %v489, 96
    %v508 = vpop.permute.xlu0 %507
    %509 = vrot.lane.b32.xlu0 %v490, 96
    %v510 = vpop.permute.xlu0 %509
    %vm511 = vcmask 785408
    %v512 = vsel %vm511, %v508, %v510
    %v516 = vsel %vm113, %v503, 0
    %v519 = vsel %vm113, %v504, 0
    %521 = vmatpush.bf16.msra.mxu0 0
    %522 = vmatpush.bf16.msra.mxu0 0
    %523 = vmatpush.bf16.msra.mxu0 0
    %524 = vmatpush.bf16.msra.mxu0 0
    %525 = vmatpush.bf16.msra.mxu0 0
    %526 = vmatpush.bf16.msra.mxu0 0
    %527 = vmatpush.bf16.msra.mxu0 0
    %528 = vmatpush.bf16.msra.mxu0 %v512
    %529 = vmatmul.bf16.gmra.mxu0 %v516
    %v530 = vpop.f32.mrf.mxu0
    %v531 = vadd.f32 0.0, %v530
    %v532 = vpop.f32.mrf.mxu0
    %v533 = vadd.f32 0.0, %v532
    %534 = vmatmul.bf16.gmra.mxu0 %v519
    %v535 = vpop.f32.mrf.mxu0
    %v536 = vadd.f32 0.0, %v535
    %v537 = vpop.f32.mrf.mxu0
    %v538 = vadd.f32 0.0, %v537
    %539 = vdwg.mxu0
    %540 = vmatpush.bf16.msra.mxu0 0
    %541 = vmatpush.bf16.msra.mxu0 0
    %542 = vmatpush.bf16.msra.mxu0 0
    %543 = vmatpush.bf16.msra.mxu0 0
    %544 = vmatpush.bf16.msra.mxu0 0
    %545 = vmatpush.bf16.msra.mxu0 0
    %546 = vmatpush.bf16.msra.mxu0 0
    %547 = vmatpush.bf16.msra.mxu0 %v510
    %548 = vmatmul.bf16.gmra.mxu0 %v516
    %v549 = vpop.f32.mrf.mxu0
    %v550 = vadd.f32 0.0, %v549
    %v551 = vpop.f32.mrf.mxu0
    %v552 = vadd.f32 0.0, %v551
    %553 = vmatmul.bf16.gmra.mxu0 %v519
    %v554 = vpop.f32.mrf.mxu0
    %v555 = vadd.f32 0.0, %v554
    %v556 = vpop.f32.mrf.mxu0
    %v557 = vadd.f32 0.0, %v556
    %558 = vdwg.mxu0
    %v563 = vunpack.c.l.b16 %v485
    %v564 = vunpack.c.l.b16 %v486
    %v565 = vunpack.c.l.b16 %v487
    %v566 = vunpack.c.l.b16 %v488
    %v567 = vpack.c.b16 %v564, %v563
    %v568 = vpack.c.b16 %v566, %v565
    %v570 = vsel %vm113, %v567, 0
    %v573 = vsel %vm113, %v568, 0
    %575 = vmatpush.bf16.msra.mxu0 0
    %576 = vmatpush.bf16.msra.mxu0 0
    %577 = vmatpush.bf16.msra.mxu0 0
    %578 = vmatpush.bf16.msra.mxu0 0
    %579 = vmatpush.bf16.msra.mxu0 0
    %580 = vmatpush.bf16.msra.mxu0 0
    %581 = vmatpush.bf16.msra.mxu0 0
    %582 = vmatpush.bf16.msra.mxu0 %v489
    %583 = vmatmul.bf16.gmra.mxu0 %v570
    %v584 = vpop.f32.mrf.mxu0
    %v585 = vadd.f32 %v531, %v584
    %v586 = vpop.f32.mrf.mxu0
    %v587 = vadd.f32 %v533, %v586
    %588 = vmatmul.bf16.gmra.mxu0 %v573
    %v589 = vpop.f32.mrf.mxu0
    %v590 = vadd.f32 %v536, %v589
    %v591 = vpop.f32.mrf.mxu0
    %v592 = vadd.f32 %v538, %v591
    %593 = vdwg.mxu0
    %594 = vmatpush.bf16.msra.mxu0 0
    %595 = vmatpush.bf16.msra.mxu0 0
    %596 = vmatpush.bf16.msra.mxu0 0
    %597 = vmatpush.bf16.msra.mxu0 0
    %598 = vmatpush.bf16.msra.mxu0 0
    %599 = vmatpush.bf16.msra.mxu0 0
    %600 = vmatpush.bf16.msra.mxu0 0
    %601 = vmatpush.bf16.msra.mxu0 %v490
    %602 = vmatmul.bf16.gmra.mxu0 %v570
    %v603 = vpop.f32.mrf.mxu0
    %v604 = vadd.f32 %v550, %v603
    %v605 = vpop.f32.mrf.mxu0
    %v606 = vadd.f32 %v552, %v605
    %607 = vmatmul.bf16.gmra.mxu0 %v573
    %v608 = vpop.f32.mrf.mxu0
    %v609 = vadd.f32 %v555, %v608
    %v610 = vpop.f32.mrf.mxu0
    %v611 = vadd.f32 %v557, %v610
    %612 = vdwg.mxu0
    %v613 = vld [vmem:[%s8] sm:$0xff]
    %v614 = vld [vmem:[%s8 + $0x8] sm:$0xff]
    %v615 = vld [vmem:[%s8 + $0x10] sm:$0xff]
    %v616 = vld [vmem:[%s8 + $0x18] sm:$0xff]
    %618 = vset.pattern.permute.xlu0 0
    %619 = vperm.xlu0 %618, %v613
    %v620 = vpop.permute.xlu0 %619
    %623 = vset.pattern.permute.xlu0 0
    %624 = vperm.xlu0 %623, %v614
    %v625 = vpop.permute.xlu0 %624
    %628 = vset.pattern.permute.xlu0 0
    %629 = vperm.xlu0 %628, %v615
    %v630 = vpop.permute.xlu0 %629
    %633 = vset.pattern.permute.xlu0 0
    %634 = vperm.xlu0 %633, %v616
    %v635 = vpop.permute.xlu0 %634
    %v637 = vadd.f32 %v585, %v620
    %v638 = vadd.f32 %v604, %v620
    %v639 = vadd.f32 %v587, %v625
    %v640 = vadd.f32 %v606, %v625
    %v641 = vadd.f32 %v590, %v630
    %v642 = vadd.f32 %v609, %v630
    %v643 = vadd.f32 %v592, %v635
    %v644 = vadd.f32 %v611, %v635
    %v645 = vtanh.pop %v637
    %v646 = vtanh.pop %v638
    %v647 = vtanh.pop %v639
    %v648 = vtanh.pop %v640
    %v649 = vxor.u32 %v641, 2147483648
    %v650 = vxor.u32 %v642, 2147483648
    %v651 = vxor.u32 %v643, 2147483648
    %v652 = vxor.u32 %v644, 2147483648
    %v653 = vmul.f32 %v649, 1.442695
    %v654 = vpow.pop %v653
    %v655 = vmul.f32 %v650, 1.442695
    %v656 = vpow.pop %v655
    %v657 = vmul.f32 %v651, 1.442695
    %v658 = vpow.pop %v657
    %v659 = vmul.f32 %v652, 1.442695
    %v660 = vpow.pop %v659
    %v661 = vadd.f32 %v654, 1.0
    %v662 = vadd.f32 %v656, 1.0
    %v663 = vadd.f32 %v658, 1.0
    %v664 = vadd.f32 %v660, 1.0
    %v665 = vrcp.pop %v661
    %v666 = vmul.f32 %v661, %v665
    %v667 = vsub.f32 1.0, %v666
    %v668 = vmul.f32 %v665, %v667
    %v669 = vadd.f32 %v665, %v668
    %vm670 = vweird.f32 %v661
    %vm671 = vweird.f32 %v665
    %vm672 = vmor %vm670, %vm671
    %v673 = vsel %vm672, %v665, %v669
    %v674 = vand.u32 2147483647, %v661
    %vm675 = vcmp.eq.f32.partialorder %v674, 8.507059e+37
    %v676 = vand.u32 %v661, 2147483648
    %v677 = vor.u32 1.1754944e-38, %v676
    %v678 = vsel %vm675, %v677, %v673
    %v679 = vmul.f32 1.0, %v678
    %v680 = vrcp.pop %v662
    %v681 = vmul.f32 %v662, %v680
    %v682 = vsub.f32 1.0, %v681
    %v683 = vmul.f32 %v680, %v682
    %v684 = vadd.f32 %v680, %v683
    %vm685 = vweird.f32 %v662
    %vm686 = vweird.f32 %v680
    %vm687 = vmor %vm685, %vm686
    %v688 = vsel %vm687, %v680, %v684
    %v689 = vand.u32 2147483647, %v662
    %vm690 = vcmp.eq.f32.partialorder %v689, 8.507059e+37
    %v691 = vand.u32 %v662, 2147483648
    %v692 = vor.u32 1.1754944e-38, %v691
    %v693 = vsel %vm690, %v692, %v688
    %v694 = vmul.f32 1.0, %v693
    %v695 = vrcp.pop %v663
    %v696 = vmul.f32 %v663, %v695
    %v697 = vsub.f32 1.0, %v696
    %v698 = vmul.f32 %v695, %v697
    %v699 = vadd.f32 %v695, %v698
    %vm700 = vweird.f32 %v663
    %vm701 = vweird.f32 %v695
    %vm702 = vmor %vm700, %vm701
    %v703 = vsel %vm702, %v695, %v699
    %v704 = vand.u32 2147483647, %v663
    %vm705 = vcmp.eq.f32.partialorder %v704, 8.507059e+37
    %v706 = vand.u32 %v663, 2147483648
    %v707 = vor.u32 1.1754944e-38, %v706
    %v708 = vsel %vm705, %v707, %v703
    %v709 = vmul.f32 1.0, %v708
    %v710 = vrcp.pop %v664
    %v711 = vmul.f32 %v664, %v710
    %v712 = vsub.f32 1.0, %v711
    %v713 = vmul.f32 %v710, %v712
    %v714 = vadd.f32 %v710, %v713
    %vm715 = vweird.f32 %v664
    %vm716 = vweird.f32 %v710
    %vm717 = vmor %vm715, %vm716
    %v718 = vsel %vm717, %v710, %v714
    %v719 = vand.u32 2147483647, %v664
    %vm720 = vcmp.eq.f32.partialorder %v719, 8.507059e+37
    %v721 = vand.u32 %v664, 2147483648
    %v722 = vor.u32 1.1754944e-38, %v721
    %v723 = vsel %vm720, %v722, %v718
    %v724 = vmul.f32 1.0, %v723
    %v725 = vmul.f32 %v645, %v679
    %v726 = vmul.f32 %v646, %v694
    %v727 = vmul.f32 %v647, %v709
    %v728 = vmul.f32 %v648, %v724
    %v729 = vld [vmem:[%s9] sm:$0xf]
    %v730 = vld [vmem:[%s9 + $0x4] sm:$0xf]
    %v731 = vld [vmem:[%s9 + $0x8] sm:$0xf]
    %v732 = vld [vmem:[%s9 + $0xc] sm:$0xf]
    %v733 = vld [vmem:[%s9 + $0x10] sm:$0xf]
    %v734 = vld [vmem:[%s9 + $0x14] sm:$0xf]
    %v735 = vld [vmem:[%s9 + $0x18] sm:$0xf]
    %v736 = vld [vmem:[%s9 + $0x1c] sm:$0xf]
    %v737 = vld [vmem:[%s9 + $0x20] sm:$0xf]
    %v738 = vld [vmem:[%s9 + $0x24] sm:$0xf]
    %v739 = vpack.c.bf16 %v727, %v725
    %v740 = vpack.c.bf16 %v728, %v726
    %v751 = vunpack.c.l.b16 %v729
    %v752 = vunpack.c.l.b16 %v730
    %v753 = vunpack.c.l.b16 %v731
    %v754 = vunpack.c.l.b16 %v732
    %v755 = vunpack.c.l.b16 %v733
    %v756 = vunpack.c.l.b16 %v734
    %v757 = vunpack.c.l.b16 %v735
    %v758 = vunpack.c.l.b16 %v736
    %v759 = vunpack.c.l.b16 %v737
    %v760 = vunpack.c.l.b16 %v738
    %v761 = vpack.c.b16 %v752, %v751
    %v762 = vpack.c.b16 %v754, %v753
    %v763 = vpack.c.b16 %v756, %v755
    %v764 = vpack.c.b16 %v758, %v757
    %v765 = vpack.c.b16 %v760, %v759
    %v767 = vsel %vm113, %v761, 0
    %v770 = vsel %vm113, %v762, 0
    %v773 = vsel %vm113, %v763, 0
    %v776 = vsel %vm113, %v764, 0
    %v779 = vsel %vm113, %v765, 0
    %781 = vmatpush.bf16.msra.mxu0 0
    %782 = vmatpush.bf16.msra.mxu0 0
    %783 = vmatpush.bf16.msra.mxu0 0
    %784 = vmatpush.bf16.msra.mxu0 0
    %785 = vmatpush.bf16.msra.mxu0 0
    %786 = vmatpush.bf16.msra.mxu0 0
    %787 = vmatpush.bf16.msra.mxu0 0
    %788 = vmatpush.bf16.msra.mxu0 %v739
    %789 = vmatmul.bf16.gmra.mxu0 %v767
    %v790 = vpop.f32.mrf.mxu0
    %v791 = vadd.f32 0.0, %v790
    %v792 = vpop.f32.mrf.mxu0
    %v793 = vadd.f32 0.0, %v792
    %794 = vmatmul.bf16.gmra.mxu0 %v770
    %v795 = vpop.f32.mrf.mxu0
    %v796 = vadd.f32 0.0, %v795
    %v797 = vpop.f32.mrf.mxu0
    %v798 = vadd.f32 0.0, %v797
    %799 = vmatmul.bf16.gmra.mxu0 %v773
    %v800 = vpop.f32.mrf.mxu0
    %v801 = vadd.f32 0.0, %v800
    %v802 = vpop.f32.mrf.mxu0
    %v803 = vadd.f32 0.0, %v802
    %804 = vmatmul.bf16.gmra.mxu0 %v776
    %v805 = vpop.f32.mrf.mxu0
    %v806 = vadd.f32 0.0, %v805
    %v807 = vpop.f32.mrf.mxu0
    %v808 = vadd.f32 0.0, %v807
    %809 = vmatmul.bf16.gmra.mxu0 %v779
    %v810 = vpop.f32.mrf.mxu0
    %v811 = vadd.f32 0.0, %v810
    %v812 = vpop.f32.mrf.mxu0
    %v813 = vadd.f32 0.0, %v812
    %814 = vdwg.mxu0
    %815 = vmatpush.bf16.msra.mxu0 0
    %816 = vmatpush.bf16.msra.mxu0 0
    %817 = vmatpush.bf16.msra.mxu0 0
    %818 = vmatpush.bf16.msra.mxu0 0
    %819 = vmatpush.bf16.msra.mxu0 0
    %820 = vmatpush.bf16.msra.mxu0 0
    %821 = vmatpush.bf16.msra.mxu0 0
    %822 = vmatpush.bf16.msra.mxu0 %v740
    %823 = vmatmul.bf16.gmra.mxu0 %v767
    %v824 = vpop.f32.mrf.mxu0
    %v825 = vadd.f32 0.0, %v824
    %v826 = vpop.f32.mrf.mxu0
    %v827 = vadd.f32 0.0, %v826
    %828 = vmatmul.bf16.gmra.mxu0 %v770
    %v829 = vpop.f32.mrf.mxu0
    %v830 = vadd.f32 0.0, %v829
    %v831 = vpop.f32.mrf.mxu0
    %v832 = vadd.f32 0.0, %v831
    %833 = vmatmul.bf16.gmra.mxu0 %v773
    %v834 = vpop.f32.mrf.mxu0
    %v835 = vadd.f32 0.0, %v834
    %v836 = vpop.f32.mrf.mxu0
    %v837 = vadd.f32 0.0, %v836
    %838 = vmatmul.bf16.gmra.mxu0 %v776
    %v839 = vpop.f32.mrf.mxu0
    %v840 = vadd.f32 0.0, %v839
    %v841 = vpop.f32.mrf.mxu0
    %v842 = vadd.f32 0.0, %v841
    %843 = vmatmul.bf16.gmra.mxu0 %v779
    %v844 = vpop.f32.mrf.mxu0
    %v845 = vadd.f32 0.0, %v844
    %v846 = vpop.f32.mrf.mxu0
    %v847 = vadd.f32 0.0, %v846
    %848 = vdwg.mxu0
    %v849 = vld [vmem:[%s11] sm:$0xff]
    %v850 = vld [vmem:[%s11 + $0x8] sm:$0xff]
    %v851 = vld [vmem:[%s11 + $0x10] sm:$0xff]
    %v852 = vld [vmem:[%s11 + $0x18] sm:$0xff]
    %854 = vset.pattern.permute.xlu0 0
    %855 = vperm.xlu0 %854, %v849
    %v856 = vpop.permute.xlu0 %855
    %859 = vset.pattern.permute.xlu0 0
    %860 = vperm.xlu0 %859, %v850
    %v861 = vpop.permute.xlu0 %860
    %864 = vset.pattern.permute.xlu0 0
    %865 = vperm.xlu0 %864, %v851
    %v866 = vpop.permute.xlu0 %865
    %869 = vset.pattern.permute.xlu0 0
    %870 = vperm.xlu0 %869, %v852
    %v871 = vpop.permute.xlu0 %870
    %v873 = vadd.f32 %v806, %v856
    %v874 = vadd.f32 %v840, %v856
    %v875 = vadd.f32 %v808, %v861
    %v876 = vadd.f32 %v842, %v861
    %v877 = vadd.f32 %v811, %v866
    %v878 = vadd.f32 %v845, %v866
    %v879 = vadd.f32 %v813, %v871
    %v880 = vadd.f32 %v847, %v871
    %v881 = vld [vmem:[#allocation2] sm:$0xff]
    %v882 = vld [vmem:[#allocation2 + $0x8] sm:$0xff]
    %v883 = vld [vmem:[#allocation2 + $0x10] sm:$0xff]
    %v884 = vld [vmem:[#allocation2 + $0x18] sm:$0xff]
    %v885 = vld [vmem:[#allocation2 + $0x20] sm:$0xff]
    %v886 = vld [vmem:[#allocation2 + $0x28] sm:$0xff]
    %v887 = vld [vmem:[#allocation2 + $0x30] sm:$0xff]
    %v888 = vld [vmem:[#allocation2 + $0x38] sm:$0xff]
    %v889 = vld [vmem:[#allocation2 + $0x40] sm:$0xff]
    %v890 = vld [vmem:[#allocation2 + $0x48] sm:$0xff]
    %v891 = vld [vmem:[#allocation2 + $0x50] sm:$0xff]
    %v892 = vld [vmem:[#allocation2 + $0x58] sm:$0xff]
    %v893 = vld [vmem:[#allocation2 + $0x60] sm:$0xff]
    %v894 = vld [vmem:[#allocation2 + $0x68] sm:$0xff]
    %v895 = vld [vmem:[#allocation2 + $0x70] sm:$0xff]
    %v896 = vld [vmem:[#allocation2 + $0x78] sm:$0xff]
    %v897 = vld [vmem:[#allocation2 + $0x80] sm:$0xff]
    %v898 = vld [vmem:[#allocation2 + $0x88] sm:$0xff]
    %v899 = vld [vmem:[#allocation2 + $0x90] sm:$0xff]
    %v900 = vld [vmem:[#allocation2 + $0x98] sm:$0xff]
    %v901 = vld [vmem:[#allocation2 + $0xa0] sm:$0xff]
    %v902 = vld [vmem:[#allocation2 + $0xa8] sm:$0xff]
    %v903 = vld [vmem:[#allocation2 + $0xb0] sm:$0xff]
    %v904 = vld [vmem:[#allocation2 + $0xb8] sm:$0xff]
    %v905 = vld [vmem:[#allocation2 + $0xc0] sm:$0xff]
    %v906 = vld [vmem:[#allocation2 + $0xc8] sm:$0xff]
    %v907 = vld [vmem:[#allocation2 + $0xd0] sm:$0xff]
    %v908 = vld [vmem:[#allocation2 + $0xd8] sm:$0xff]
    %v909 = vpack.c.bf16 %v803, %v801
    %v910 = vpack.c.bf16 %v837, %v835
    %v939 = vunpack.c.l.b16 %v881
    %v940 = vunpack.c.h.b16 %v881
    %v941 = vunpack.c.l.b16 %v882
    %v942 = vunpack.c.h.b16 %v882
    %v943 = vunpack.c.l.b16 %v883
    %v944 = vunpack.c.h.b16 %v883
    %v945 = vunpack.c.l.b16 %v884
    %v946 = vunpack.c.h.b16 %v884
    %v947 = vunpack.c.l.b16 %v885
    %v948 = vunpack.c.h.b16 %v885
    %v949 = vunpack.c.l.b16 %v886
    %v950 = vunpack.c.h.b16 %v886
    %v951 = vunpack.c.l.b16 %v887
    %v952 = vunpack.c.h.b16 %v887
    %v953 = vunpack.c.l.b16 %v888
    %v954 = vunpack.c.h.b16 %v888
    %v955 = vunpack.c.l.b16 %v889
    %v956 = vunpack.c.h.b16 %v889
    %v957 = vunpack.c.l.b16 %v890
    %v958 = vunpack.c.h.b16 %v890
    %v959 = vunpack.c.l.b16 %v891
    %v960 = vunpack.c.h.b16 %v891
    %v961 = vunpack.c.l.b16 %v892
    %v962 = vunpack.c.h.b16 %v892
    %v963 = vunpack.c.l.b16 %v893
    %v964 = vunpack.c.h.b16 %v893
    %v965 = vunpack.c.l.b16 %v894
    %v966 = vunpack.c.h.b16 %v894
    %v967 = vunpack.c.l.b16 %v895
    %v968 = vunpack.c.h.b16 %v895
    %v969 = vunpack.c.l.b16 %v896
    %v970 = vunpack.c.h.b16 %v896
    %v971 = vunpack.c.l.b16 %v897
    %v972 = vunpack.c.h.b16 %v897
    %v973 = vunpack.c.l.b16 %v898
    %v974 = vunpack.c.h.b16 %v898
    %v975 = vunpack.c.l.b16 %v899
    %v976 = vunpack.c.h.b16 %v899
    %v977 = vunpack.c.l.b16 %v900
    %v978 = vunpack.c.h.b16 %v900
    %v979 = vunpack.c.l.b16 %v901
    %v980 = vunpack.c.h.b16 %v901
    %v981 = vunpack.c.l.b16 %v902
    %v982 = vunpack.c.h.b16 %v902
    %v983 = vunpack.c.l.b16 %v903
    %v984 = vunpack.c.h.b16 %v903
    %v985 = vunpack.c.l.b16 %v904
    %v986 = vunpack.c.h.b16 %v904
    %v987 = vunpack.c.l.b16 %v905
    %v988 = vunpack.c.h.b16 %v905
    %v989 = vunpack.c.l.b16 %v906
    %v990 = vunpack.c.h.b16 %v906
    %v991 = vunpack.c.l.b16 %v907
    %v992 = vunpack.c.h.b16 %v907
    %v993 = vunpack.c.l.b16 %v908
    %v994 = vunpack.c.h.b16 %v908
    %v995 = vpack.c.b16 %v941, %v939
    %v996 = vpack.c.b16 %v942, %v940
    %v997 = vpack.c.b16 %v945, %v943
    %v998 = vpack.c.b16 %v946, %v944
    %v999 = vpack.c.b16 %v949, %v947
    %v1000 = vpack.c.b16 %v950, %v948
    %v1001 = vpack.c.b16 %v953, %v951
    %v1002 = vpack.c.b16 %v954, %v952
    %v1003 = vpack.c.b16 %v957, %v955
    %v1004 = vpack.c.b16 %v958, %v956
    %v1005 = vpack.c.b16 %v961, %v959
    %v1006 = vpack.c.b16 %v962, %v960
    %v1007 = vpack.c.b16 %v965, %v963
    %v1008 = vpack.c.b16 %v966, %v964
    %v1009 = vpack.c.b16 %v969, %v967
    %v1010 = vpack.c.b16 %v970, %v968
    %v1011 = vpack.c.b16 %v973, %v971
    %v1012 = vpack.c.b16 %v974, %v972
    %v1013 = vpack.c.b16 %v977, %v975
    %v1014 = vpack.c.b16 %v978, %v976
    %v1015 = vpack.c.b16 %v981, %v979
    %v1016 = vpack.c.b16 %v982, %v980
    %v1017 = vpack.c.b16 %v985, %v983
    %v1018 = vpack.c.b16 %v986, %v984
    %v1019 = vpack.c.b16 %v989, %v987
    %v1020 = vpack.c.b16 %v990, %v988
    %v1021 = vpack.c.b16 %v993, %v991
    %v1022 = vpack.c.b16 %v994, %v992
    %v1052 = vsel %vm220, %v910, 0
    %1054 = vmatpush.bf16.msra.mxu0 %v1009
    %1055 = vmatpush.bf16.msra.mxu0 %v1007
    %1056 = vmatpush.bf16.msra.mxu0 %v1005
    %1057 = vmatpush.bf16.msra.mxu0 %v1003
    %1058 = vmatpush.bf16.msra.mxu0 %v1001
    %1059 = vmatpush.bf16.msra.mxu0 %v999
    %1060 = vmatpush.bf16.msra.mxu0 %v997
    %1061 = vmatpush.bf16.msra.mxu0 %v995
    %1062 = vmatmul.bf16.gmra.mxu0 %v909
    %v1063 = vpop.f32.mrf.mxu0
    %v1064 = vadd.f32 0.0, %v1063
    %v1065 = vpop.f32.mrf.mxu0
    %v1066 = vadd.f32 0.0, %v1065
    %1067 = vdwg.mxu0
    %1068 = vmatpush.bf16.msra.mxu0 0
    %1069 = vmatpush.bf16.msra.mxu0 0
    %1070 = vmatpush.bf16.msra.mxu0 %v1021
    %1071 = vmatpush.bf16.msra.mxu0 %v1019
    %1072 = vmatpush.bf16.msra.mxu0 %v1017
    %1073 = vmatpush.bf16.msra.mxu0 %v1015
    %1074 = vmatpush.bf16.msra.mxu0 %v1013
    %1075 = vmatpush.bf16.msra.mxu0 %v1011
    %1076 = vmatmul.bf16.gmra.mxu0 %v1052
    %v1077 = vpop.f32.mrf.mxu0
    %v1078 = vadd.f32 %v1064, %v1077
    %v1079 = vpop.f32.mrf.mxu0
    %v1080 = vadd.f32 %v1066, %v1079
    %1081 = vdwg.mxu0
    %1082 = vmatpush.bf16.msra.mxu0 %v1010
    %1083 = vmatpush.bf16.msra.mxu0 %v1008
    %1084 = vmatpush.bf16.msra.mxu0 %v1006
    %1085 = vmatpush.bf16.msra.mxu0 %v1004
    %1086 = vmatpush.bf16.msra.mxu0 %v1002
    %1087 = vmatpush.bf16.msra.mxu0 %v1000
    %1088 = vmatpush.bf16.msra.mxu0 %v998
    %1089 = vmatpush.bf16.msra.mxu0 %v996
    %1090 = vmatmul.bf16.gmra.mxu0 %v909
    %v1091 = vpop.f32.mrf.mxu0
    %v1092 = vadd.f32 0.0, %v1091
    %v1093 = vpop.f32.mrf.mxu0
    %v1094 = vadd.f32 0.0, %v1093
    %1095 = vdwg.mxu0
    %1096 = vmatpush.bf16.msra.mxu0 0
    %1097 = vmatpush.bf16.msra.mxu0 0
    %1098 = vmatpush.bf16.msra.mxu0 %v1022
    %1099 = vmatpush.bf16.msra.mxu0 %v1020
    %1100 = vmatpush.bf16.msra.mxu0 %v1018
    %1101 = vmatpush.bf16.msra.mxu0 %v1016
    %1102 = vmatpush.bf16.msra.mxu0 %v1014
    %1103 = vmatpush.bf16.msra.mxu0 %v1012
    %1104 = vmatmul.bf16.gmra.mxu0 %v1052
    %v1105 = vpop.f32.mrf.mxu0
    %v1106 = vadd.f32 %v1092, %v1105
    %v1107 = vpop.f32.mrf.mxu0
    %v1108 = vadd.f32 %v1094, %v1107
    %1109 = vdwg.mxu0
    %v1110 = vadd.f32 %v796, %v1078
    %v1111 = vadd.f32 %v830, %v1106
    %v1112 = vadd.f32 %v798, %v1080
    %v1113 = vadd.f32 %v832, %v1108
    %v1114 = vpack.c.bf16 %v1112, %v1110
    %v1115 = vpack.c.bf16 %v1113, %v1111
    %v1117 = vsel %vm220, %v1115, 0
    %1119 = vmatpush.bf16.msra.mxu0 %v1009
    %1120 = vmatpush.bf16.msra.mxu0 %v1007
    %1121 = vmatpush.bf16.msra.mxu0 %v1005
    %1122 = vmatpush.bf16.msra.mxu0 %v1003
    %1123 = vmatpush.bf16.msra.mxu0 %v1001
    %1124 = vmatpush.bf16.msra.mxu0 %v999
    %1125 = vmatpush.bf16.msra.mxu0 %v997
    %1126 = vmatpush.bf16.msra.mxu0 %v995
    %1127 = vmatmul.bf16.gmra.mxu0 %v1114
    %v1128 = vpop.f32.mrf.mxu0
    %v1129 = vadd.f32 0.0, %v1128
    %v1130 = vpop.f32.mrf.mxu0
    %v1131 = vadd.f32 0.0, %v1130
    %1132 = vdwg.mxu0
    %1133 = vmatpush.bf16.msra.mxu0 0
    %1134 = vmatpush.bf16.msra.mxu0 0
    %1135 = vmatpush.bf16.msra.mxu0 %v1021
    %1136 = vmatpush.bf16.msra.mxu0 %v1019
    %1137 = vmatpush.bf16.msra.mxu0 %v1017
    %1138 = vmatpush.bf16.msra.mxu0 %v1015
    %1139 = vmatpush.bf16.msra.mxu0 %v1013
    %1140 = vmatpush.bf16.msra.mxu0 %v1011
    %1141 = vmatmul.bf16.gmra.mxu0 %v1117
    %v1142 = vpop.f32.mrf.mxu0
    %v1143 = vadd.f32 %v1129, %v1142
    %v1144 = vpop.f32.mrf.mxu0
    %v1145 = vadd.f32 %v1131, %v1144
    %1146 = vdwg.mxu0
    %1147 = vmatpush.bf16.msra.mxu0 %v1010
    %1148 = vmatpush.bf16.msra.mxu0 %v1008
    %1149 = vmatpush.bf16.msra.mxu0 %v1006
    %1150 = vmatpush.bf16.msra.mxu0 %v1004
    %1151 = vmatpush.bf16.msra.mxu0 %v1002
    %1152 = vmatpush.bf16.msra.mxu0 %v1000
    %1153 = vmatpush.bf16.msra.mxu0 %v998
    %1154 = vmatpush.bf16.msra.mxu0 %v996
    %1155 = vmatmul.bf16.gmra.mxu0 %v1114
    %v1156 = vpop.f32.mrf.mxu0
    %v1157 = vadd.f32 0.0, %v1156
    %v1158 = vpop.f32.mrf.mxu0
    %v1159 = vadd.f32 0.0, %v1158
    %1160 = vdwg.mxu0
    %1161 = vmatpush.bf16.msra.mxu0 0
    %1162 = vmatpush.bf16.msra.mxu0 0
    %1163 = vmatpush.bf16.msra.mxu0 %v1022
    %1164 = vmatpush.bf16.msra.mxu0 %v1020
    %1165 = vmatpush.bf16.msra.mxu0 %v1018
    %1166 = vmatpush.bf16.msra.mxu0 %v1016
    %1167 = vmatpush.bf16.msra.mxu0 %v1014
    %1168 = vmatpush.bf16.msra.mxu0 %v1012
    %1169 = vmatmul.bf16.gmra.mxu0 %v1117
    %v1170 = vpop.f32.mrf.mxu0
    %v1171 = vadd.f32 %v1157, %v1170
    %v1172 = vpop.f32.mrf.mxu0
    %v1173 = vadd.f32 %v1159, %v1172
    %1174 = vdwg.mxu0
    %v1175 = vadd.f32 %v791, %v1143
    %v1176 = vadd.f32 %v825, %v1171
    %v1177 = vadd.f32 %v793, %v1145
    %v1178 = vadd.f32 %v827, %v1173
    %v1179 = vld [vmem:[%s10] sm:$0xff]
    %v1180 = vld [vmem:[%s10 + $0x8] sm:$0xff]
    %1182 = vset.pattern.permute.xlu0 0
    %1183 = vperm.xlu0 %1182, %v1179
    %v1184 = vpop.permute.xlu0 %1183
    %1187 = vset.pattern.permute.xlu0 0
    %1188 = vperm.xlu0 %1187, %v1180
    %v1189 = vpop.permute.xlu0 %1188
    %v1191 = vadd.f32 %v1175, %v1184
    %v1192 = vadd.f32 %v1176, %v1184
    %v1193 = vadd.f32 %v1177, %v1189
    %v1194 = vadd.f32 %v1178, %v1189
    %v1195 = vld [vmem:[%s12] sm:$0xff]
    %v1196 = vld [vmem:[%s12 + $0x8] sm:$0xff]
    %1198 = vset.pattern.permute.xlu0 0
    %1199 = vperm.xlu0 %1198, %v1195
    %v1200 = vpop.permute.xlu0 %1199
    %1203 = vset.pattern.permute.xlu0 0
    %1204 = vperm.xlu0 %1203, %v1196
    %v1205 = vpop.permute.xlu0 %1204
    %v1207 = vmul.f32 %v1200, %v467
    %v1208 = vmul.f32 %v1200, %v481
    %v1209 = vmul.f32 %v1205, %v469
    %v1210 = vmul.f32 %v1205, %v483
    %1215 = vrot.lane.b32.xlu0 %v1207, 96
    %v1216 = vpop.permute.xlu0 %1215
    %1217 = vrot.lane.b32.xlu0 %v1208, 96
    %v1218 = vpop.permute.xlu0 %1217
    %1219 = vrot.lane.b32.xlu0 %v1209, 96
    %v1220 = vpop.permute.xlu0 %1219
    %1221 = vrot.lane.b32.xlu0 %v1210, 96
    %v1222 = vpop.permute.xlu0 %1221
    %v1223 = vsel %vm220, %v1216, %v1218
    %v1224 = vsel %vm220, %v1220, %v1222
    %v1229 = vadd.f32 %v1191, %v1223
    %v1230 = vadd.f32 %v1192, %v1218
    %v1231 = vadd.f32 %v1193, %v1224
    %v1232 = vadd.f32 %v1194, %v1222
    %s1233 = scalar_lea.vmem %s6, 16
    %v1234 = vld [vmem:[%s1233] sm:$0xf]
    %v1235 = vld [vmem:[%s1233 + $0x4] sm:$0xf]
    %v1236 = vld [vmem:[%s1233 + $0x8] sm:$0xf]
    %v1237 = vld [vmem:[%s1233 + $0xc] sm:$0xf]
    %v1238 = vpack.c.bf16 %v1231, %v1229
    %v1239 = vpack.c.bf16 %v1232, %v1230
    %s1240 = scalar_lea.vmem %s7, 16
    %v1241 = vld [vmem:[%s1240] sm:$0xf]
    %v1242 = vld [vmem:[%s1240 + $0x4] sm:$0xf]
    %v1243 = vld [vmem:[%s1240 + $0x8] sm:$0xf]
    %v1244 = vld [vmem:[%s1240 + $0xc] sm:$0xf]
    %v1249 = vunpack.c.l.b16 %v1241
    %v1250 = vunpack.c.l.b16 %v1242
    %v1251 = vunpack.c.l.b16 %v1243
    %v1252 = vunpack.c.l.b16 %v1244
    %v1253 = vpack.c.b16 %v1250, %v1249
    %v1254 = vpack.c.b16 %v1252, %v1251
    %1257 = vrot.lane.b32.xlu0 %v1238, 64
    %v1258 = vpop.permute.xlu0 %1257
    %1259 = vrot.lane.b32.xlu0 %v1239, 64
    %v1260 = vpop.permute.xlu0 %1259
    %vm1261 = vcmask 523264
    %v1262 = vsel %vm1261, %v1258, %v1260
    %v1266 = vsel %vm113, %v1253, 0
    %v1269 = vsel %vm113, %v1254, 0
    %1271 = vmatpush.bf16.msra.mxu0 0
    %1272 = vmatpush.bf16.msra.mxu0 0
    %1273 = vmatpush.bf16.msra.mxu0 0
    %1274 = vmatpush.bf16.msra.mxu0 0
    %1275 = vmatpush.bf16.msra.mxu0 0
    %1276 = vmatpush.bf16.msra.mxu0 0
    %1277 = vmatpush.bf16.msra.mxu0 0
    %1278 = vmatpush.bf16.msra.mxu0 %v1262
    %1279 = vmatmul.bf16.gmra.mxu0 %v1266
    %v1280 = vpop.f32.mrf.mxu0
    %v1281 = vadd.f32 0.0, %v1280
    %v1282 = vpop.f32.mrf.mxu0
    %v1283 = vadd.f32 0.0, %v1282
    %1284 = vmatmul.bf16.gmra.mxu0 %v1269
    %v1285 = vpop.f32.mrf.mxu0
    %v1286 = vadd.f32 0.0, %v1285
    %v1287 = vpop.f32.mrf.mxu0
    %v1288 = vadd.f32 0.0, %v1287
    %1289 = vdwg.mxu0
    %1290 = vmatpush.bf16.msra.mxu0 0
    %1291 = vmatpush.bf16.msra.mxu0 0
    %1292 = vmatpush.bf16.msra.mxu0 0
    %1293 = vmatpush.bf16.msra.mxu0 0
    %1294 = vmatpush.bf16.msra.mxu0 0
    %1295 = vmatpush.bf16.msra.mxu0 0
    %1296 = vmatpush.bf16.msra.mxu0 0
    %1297 = vmatpush.bf16.msra.mxu0 %v1260
    %1298 = vmatmul.bf16.gmra.mxu0 %v1266
    %v1299 = vpop.f32.mrf.mxu0
    %v1300 = vadd.f32 0.0, %v1299
    %v1301 = vpop.f32.mrf.mxu0
    %v1302 = vadd.f32 0.0, %v1301
    %1303 = vmatmul.bf16.gmra.mxu0 %v1269
    %v1304 = vpop.f32.mrf.mxu0
    %v1305 = vadd.f32 0.0, %v1304
    %v1306 = vpop.f32.mrf.mxu0
    %v1307 = vadd.f32 0.0, %v1306
    %1308 = vdwg.mxu0
    %v1313 = vunpack.c.l.b16 %v1234
    %v1314 = vunpack.c.l.b16 %v1235
    %v1315 = vunpack.c.l.b16 %v1236
    %v1316 = vunpack.c.l.b16 %v1237
    %v1317 = vpack.c.b16 %v1314, %v1313
    %v1318 = vpack.c.b16 %v1316, %v1315
    %v1320 = vsel %vm113, %v1317, 0
    %v1323 = vsel %vm113, %v1318, 0
    %1325 = vmatpush.bf16.msra.mxu0 0
    %1326 = vmatpush.bf16.msra.mxu0 0
    %1327 = vmatpush.bf16.msra.mxu0 0
    %1328 = vmatpush.bf16.msra.mxu0 0
    %1329 = vmatpush.bf16.msra.mxu0 0
    %1330 = vmatpush.bf16.msra.mxu0 0
    %1331 = vmatpush.bf16.msra.mxu0 0
    %1332 = vmatpush.bf16.msra.mxu0 %v1238
    %1333 = vmatmul.bf16.gmra.mxu0 %v1320
    %v1334 = vpop.f32.mrf.mxu0
    %v1335 = vadd.f32 %v1281, %v1334
    %v1336 = vpop.f32.mrf.mxu0
    %v1337 = vadd.f32 %v1283, %v1336
    %1338 = vmatmul.bf16.gmra.mxu0 %v1323
    %v1339 = vpop.f32.mrf.mxu0
    %v1340 = vadd.f32 %v1286, %v1339
    %v1341 = vpop.f32.mrf.mxu0
    %v1342 = vadd.f32 %v1288, %v1341
    %1343 = vdwg.mxu0
    %1344 = vmatpush.bf16.msra.mxu0 0
    %1345 = vmatpush.bf16.msra.mxu0 0
    %1346 = vmatpush.bf16.msra.mxu0 0
    %1347 = vmatpush.bf16.msra.mxu0 0
    %1348 = vmatpush.bf16.msra.mxu0 0
    %1349 = vmatpush.bf16.msra.mxu0 0
    %1350 = vmatpush.bf16.msra.mxu0 0
    %1351 = vmatpush.bf16.msra.mxu0 %v1239
    %1352 = vmatmul.bf16.gmra.mxu0 %v1320
    %v1353 = vpop.f32.mrf.mxu0
    %v1354 = vadd.f32 %v1300, %v1353
    %v1355 = vpop.f32.mrf.mxu0
    %v1356 = vadd.f32 %v1302, %v1355
    %1357 = vmatmul.bf16.gmra.mxu0 %v1323
    %v1358 = vpop.f32.mrf.mxu0
    %v1359 = vadd.f32 %v1305, %v1358
    %v1360 = vpop.f32.mrf.mxu0
    %v1361 = vadd.f32 %v1307, %v1360
    %1362 = vdwg.mxu0
    %s1363 = scalar_lea.vmem %s8, 32
    %v1364 = vld [vmem:[%s1363] sm:$0xff]
    %v1365 = vld [vmem:[%s1363 + $0x8] sm:$0xff]
    %v1366 = vld [vmem:[%s1363 + $0x10] sm:$0xff]
    %v1367 = vld [vmem:[%s1363 + $0x18] sm:$0xff]
    %1369 = vset.pattern.permute.xlu0 0
    %1370 = vperm.xlu0 %1369, %v1364
    %v1371 = vpop.permute.xlu0 %1370
    %1374 = vset.pattern.permute.xlu0 0
    %1375 = vperm.xlu0 %1374, %v1365
    %v1376 = vpop.permute.xlu0 %1375
    %1379 = vset.pattern.permute.xlu0 0
    %1380 = vperm.xlu0 %1379, %v1366
    %v1381 = vpop.permute.xlu0 %1380
    %1384 = vset.pattern.permute.xlu0 0
    %1385 = vperm.xlu0 %1384, %v1367
    %v1386 = vpop.permute.xlu0 %1385
    %v1388 = vadd.f32 %v1335, %v1371
    %v1389 = vadd.f32 %v1354, %v1371
    %v1390 = vadd.f32 %v1337, %v1376
    %v1391 = vadd.f32 %v1356, %v1376
    %v1392 = vadd.f32 %v1340, %v1381
    %v1393 = vadd.f32 %v1359, %v1381
    %v1394 = vadd.f32 %v1342, %v1386
    %v1395 = vadd.f32 %v1361, %v1386
    %v1396 = vtanh.pop %v1388
    %v1397 = vtanh.pop %v1389
    %v1398 = vtanh.pop %v1390
    %v1399 = vtanh.pop %v1391
    %v1400 = vxor.u32 %v1392, 2147483648
    %v1401 = vxor.u32 %v1393, 2147483648
    %v1402 = vxor.u32 %v1394, 2147483648
    %v1403 = vxor.u32 %v1395, 2147483648
    %v1404 = vmul.f32 %v1400, 1.442695
    %v1405 = vpow.pop %v1404
    %v1406 = vmul.f32 %v1401, 1.442695
    %v1407 = vpow.pop %v1406
    %v1408 = vmul.f32 %v1402, 1.442695
    %v1409 = vpow.pop %v1408
    %v1410 = vmul.f32 %v1403, 1.442695
    %v1411 = vpow.pop %v1410
    %v1412 = vadd.f32 %v1405, 1.0
    %v1413 = vadd.f32 %v1407, 1.0
    %v1414 = vadd.f32 %v1409, 1.0
    %v1415 = vadd.f32 %v1411, 1.0
    %v1416 = vrcp.pop %v1412
    %v1417 = vmul.f32 %v1412, %v1416
    %v1418 = vsub.f32 1.0, %v1417
    %v1419 = vmul.f32 %v1416, %v1418
    %v1420 = vadd.f32 %v1416, %v1419
    %vm1421 = vweird.f32 %v1412
    %vm1422 = vweird.f32 %v1416
    %vm1423 = vmor %vm1421, %vm1422
    %v1424 = vsel %vm1423, %v1416, %v1420
    %v1425 = vand.u32 2147483647, %v1412
    %vm1426 = vcmp.eq.f32.partialorder %v1425, 8.507059e+37
    %v1427 = vand.u32 %v1412, 2147483648
    %v1428 = vor.u32 1.1754944e-38, %v1427
    %v1429 = vsel %vm1426, %v1428, %v1424
    %v1430 = vmul.f32 1.0, %v1429
    %v1431 = vrcp.pop %v1413
    %v1432 = vmul.f32 %v1413, %v1431
    %v1433 = vsub.f32 1.0, %v1432
    %v1434 = vmul.f32 %v1431, %v1433
    %v1435 = vadd.f32 %v1431, %v1434
    %vm1436 = vweird.f32 %v1413
    %vm1437 = vweird.f32 %v1431
    %vm1438 = vmor %vm1436, %vm1437
    %v1439 = vsel %vm1438, %v1431, %v1435
    %v1440 = vand.u32 2147483647, %v1413
    %vm1441 = vcmp.eq.f32.partialorder %v1440, 8.507059e+37
    %v1442 = vand.u32 %v1413, 2147483648
    %v1443 = vor.u32 1.1754944e-38, %v1442
    %v1444 = vsel %vm1441, %v1443, %v1439
    %v1445 = vmul.f32 1.0, %v1444
    %v1446 = vrcp.pop %v1414
    %v1447 = vmul.f32 %v1414, %v1446
    %v1448 = vsub.f32 1.0, %v1447
    %v1449 = vmul.f32 %v1446, %v1448
    %v1450 = vadd.f32 %v1446, %v1449
    %vm1451 = vweird.f32 %v1414
    %vm1452 = vweird.f32 %v1446
    %vm1453 = vmor %vm1451, %vm1452
    %v1454 = vsel %vm1453, %v1446, %v1450
    %v1455 = vand.u32 2147483647, %v1414
    %vm1456 = vcmp.eq.f32.partialorder %v1455, 8.507059e+37
    %v1457 = vand.u32 %v1414, 2147483648
    %v1458 = vor.u32 1.1754944e-38, %v1457
    %v1459 = vsel %vm1456, %v1458, %v1454
    %v1460 = vmul.f32 1.0, %v1459
    %v1461 = vrcp.pop %v1415
    %v1462 = vmul.f32 %v1415, %v1461
    %v1463 = vsub.f32 1.0, %v1462
    %v1464 = vmul.f32 %v1461, %v1463
    %v1465 = vadd.f32 %v1461, %v1464
    %vm1466 = vweird.f32 %v1415
    %vm1467 = vweird.f32 %v1461
    %vm1468 = vmor %vm1466, %vm1467
    %v1469 = vsel %vm1468, %v1461, %v1465
    %v1470 = vand.u32 2147483647, %v1415
    %vm1471 = vcmp.eq.f32.partialorder %v1470, 8.507059e+37
    %v1472 = vand.u32 %v1415, 2147483648
    %v1473 = vor.u32 1.1754944e-38, %v1472
    %v1474 = vsel %vm1471, %v1473, %v1469
    %v1475 = vmul.f32 1.0, %v1474
    %v1476 = vmul.f32 %v1396, %v1430
    %v1477 = vmul.f32 %v1397, %v1445
    %v1478 = vmul.f32 %v1398, %v1460
    %v1479 = vmul.f32 %v1399, %v1475
    %s1480 = scalar_lea.vmem %s9, 40
    %v1481 = vld [vmem:[%s1480] sm:$0xf]
    %v1482 = vld [vmem:[%s1480 + $0x4] sm:$0xf]
    %v1483 = vld [vmem:[%s1480 + $0x8] sm:$0xf]
    %v1484 = vld [vmem:[%s1480 + $0xc] sm:$0xf]
    %v1485 = vld [vmem:[%s1480 + $0x10] sm:$0xf]
    %v1486 = vld [vmem:[%s1480 + $0x14] sm:$0xf]
    %v1487 = vld [vmem:[%s1480 + $0x18] sm:$0xf]
    %v1488 = vld [vmem:[%s1480 + $0x1c] sm:$0xf]
    %v1489 = vld [vmem:[%s1480 + $0x20] sm:$0xf]
    %v1490 = vld [vmem:[%s1480 + $0x24] sm:$0xf]
    %v1491 = vpack.c.bf16 %v1478, %v1476
    %v1492 = vpack.c.bf16 %v1479, %v1477
    %v1503 = vunpack.c.l.b16 %v1481
    %v1504 = vunpack.c.l.b16 %v1482
    %v1505 = vunpack.c.l.b16 %v1483
    %v1506 = vunpack.c.l.b16 %v1484
    %v1507 = vunpack.c.l.b16 %v1485
    %v1508 = vunpack.c.l.b16 %v1486
    %v1509 = vunpack.c.l.b16 %v1487
    %v1510 = vunpack.c.l.b16 %v1488
    %v1511 = vunpack.c.l.b16 %v1489
    %v1512 = vunpack.c.l.b16 %v1490
    %v1513 = vpack.c.b16 %v1504, %v1503
    %v1514 = vpack.c.b16 %v1506, %v1505
    %v1515 = vpack.c.b16 %v1508, %v1507
    %v1516 = vpack.c.b16 %v1510, %v1509
    %v1517 = vpack.c.b16 %v1512, %v1511
    %v1519 = vsel %vm113, %v1513, 0
    %v1522 = vsel %vm113, %v1514, 0
    %v1525 = vsel %vm113, %v1515, 0
    %v1528 = vsel %vm113, %v1516, 0
    %v1531 = vsel %vm113, %v1517, 0
    %1533 = vmatpush.bf16.msra.mxu0 0
    %1534 = vmatpush.bf16.msra.mxu0 0
    %1535 = vmatpush.bf16.msra.mxu0 0
    %1536 = vmatpush.bf16.msra.mxu0 0
    %1537 = vmatpush.bf16.msra.mxu0 0
    %1538 = vmatpush.bf16.msra.mxu0 0
    %1539 = vmatpush.bf16.msra.mxu0 0
    %1540 = vmatpush.bf16.msra.mxu0 %v1491
    %1541 = vmatmul.bf16.gmra.mxu0 %v1519
    %v1542 = vpop.f32.mrf.mxu0
    %v1543 = vadd.f32 0.0, %v1542
    %v1544 = vpop.f32.mrf.mxu0
    %v1545 = vadd.f32 0.0, %v1544
    %1546 = vmatmul.bf16.gmra.mxu0 %v1522
    %v1547 = vpop.f32.mrf.mxu0
    %v1548 = vadd.f32 0.0, %v1547
    %v1549 = vpop.f32.mrf.mxu0
    %v1550 = vadd.f32 0.0, %v1549
    %1551 = vmatmul.bf16.gmra.mxu0 %v1525
    %v1552 = vpop.f32.mrf.mxu0
    %v1553 = vadd.f32 0.0, %v1552
    %v1554 = vpop.f32.mrf.mxu0
    %v1555 = vadd.f32 0.0, %v1554
    %1556 = vmatmul.bf16.gmra.mxu0 %v1528
    %v1557 = vpop.f32.mrf.mxu0
    %v1558 = vadd.f32 0.0, %v1557
    %v1559 = vpop.f32.mrf.mxu0
    %v1560 = vadd.f32 0.0, %v1559
    %1561 = vmatmul.bf16.gmra.mxu0 %v1531
    %v1562 = vpop.f32.mrf.mxu0
    %v1563 = vadd.f32 0.0, %v1562
    %v1564 = vpop.f32.mrf.mxu0
    %v1565 = vadd.f32 0.0, %v1564
    %1566 = vdwg.mxu0
    %1567 = vmatpush.bf16.msra.mxu0 0
    %1568 = vmatpush.bf16.msra.mxu0 0
    %1569 = vmatpush.bf16.msra.mxu0 0
    %1570 = vmatpush.bf16.msra.mxu0 0
    %1571 = vmatpush.bf16.msra.mxu0 0
    %1572 = vmatpush.bf16.msra.mxu0 0
    %1573 = vmatpush.bf16.msra.mxu0 0
    %1574 = vmatpush.bf16.msra.mxu0 %v1492
    %1575 = vmatmul.bf16.gmra.mxu0 %v1519
    %v1576 = vpop.f32.mrf.mxu0
    %v1577 = vadd.f32 0.0, %v1576
    %v1578 = vpop.f32.mrf.mxu0
    %v1579 = vadd.f32 0.0, %v1578
    %1580 = vmatmul.bf16.gmra.mxu0 %v1522
    %v1581 = vpop.f32.mrf.mxu0
    %v1582 = vadd.f32 0.0, %v1581
    %v1583 = vpop.f32.mrf.mxu0
    %v1584 = vadd.f32 0.0, %v1583
    %1585 = vmatmul.bf16.gmra.mxu0 %v1525
    %v1586 = vpop.f32.mrf.mxu0
    %v1587 = vadd.f32 0.0, %v1586
    %v1588 = vpop.f32.mrf.mxu0
    %v1589 = vadd.f32 0.0, %v1588
    %1590 = vmatmul.bf16.gmra.mxu0 %v1528
    %v1591 = vpop.f32.mrf.mxu0
    %v1592 = vadd.f32 0.0, %v1591
    %v1593 = vpop.f32.mrf.mxu0
    %v1594 = vadd.f32 0.0, %v1593
    %1595 = vmatmul.bf16.gmra.mxu0 %v1531
    %v1596 = vpop.f32.mrf.mxu0
    %v1597 = vadd.f32 0.0, %v1596
    %v1598 = vpop.f32.mrf.mxu0
    %v1599 = vadd.f32 0.0, %v1598
    %1600 = vdwg.mxu0
    %s1601 = scalar_lea.vmem %s11, 32
    %v1602 = vld [vmem:[%s1601] sm:$0xff]
    %v1603 = vld [vmem:[%s1601 + $0x8] sm:$0xff]
    %v1604 = vld [vmem:[%s1601 + $0x10] sm:$0xff]
    %v1605 = vld [vmem:[%s1601 + $0x18] sm:$0xff]
    %1607 = vset.pattern.permute.xlu0 0
    %1608 = vperm.xlu0 %1607, %v1602
    %v1609 = vpop.permute.xlu0 %1608
    %1612 = vset.pattern.permute.xlu0 0
    %1613 = vperm.xlu0 %1612, %v1603
    %v1614 = vpop.permute.xlu0 %1613
    %1617 = vset.pattern.permute.xlu0 0
    %1618 = vperm.xlu0 %1617, %v1604
    %v1619 = vpop.permute.xlu0 %1618
    %1622 = vset.pattern.permute.xlu0 0
    %1623 = vperm.xlu0 %1622, %v1605
    %v1624 = vpop.permute.xlu0 %1623
    %v1626 = vadd.f32 %v1558, %v1609
    %v1627 = vadd.f32 %v1592, %v1609
    %v1628 = vadd.f32 %v1560, %v1614
    %v1629 = vadd.f32 %v1594, %v1614
    %v1630 = vadd.f32 %v1563, %v1619
    %v1631 = vadd.f32 %v1597, %v1619
    %v1632 = vadd.f32 %v1565, %v1624
    %v1633 = vadd.f32 %v1599, %v1624
    %v1634 = vld [vmem:[#allocation2] sm:$0xff]
    %v1635 = vld [vmem:[#allocation2 + $0x8] sm:$0xff]
    %v1636 = vld [vmem:[#allocation2 + $0x10] sm:$0xff]
    %v1637 = vld [vmem:[#allocation2 + $0x18] sm:$0xff]
    %v1638 = vld [vmem:[#allocation2 + $0x20] sm:$0xff]
    %v1639 = vld [vmem:[#allocation2 + $0x28] sm:$0xff]
    %v1640 = vld [vmem:[#allocation2 + $0x30] sm:$0xff]
    %v1641 = vld [vmem:[#allocation2 + $0x38] sm:$0xff]
    %v1642 = vld [vmem:[#allocation2 + $0x40] sm:$0xff]
    %v1643 = vld [vmem:[#allocation2 + $0x48] sm:$0xff]
    %v1644 = vld [vmem:[#allocation2 + $0x50] sm:$0xff]
    %v1645 = vld [vmem:[#allocation2 + $0x58] sm:$0xff]
    %v1646 = vld [vmem:[#allocation2 + $0x60] sm:$0xff]
    %v1647 = vld [vmem:[#allocation2 + $0x68] sm:$0xff]
    %v1648 = vld [vmem:[#allocation2 + $0x70] sm:$0xff]
    %v1649 = vld [vmem:[#allocation2 + $0x78] sm:$0xff]
    %v1650 = vld [vmem:[#allocation2 + $0x80] sm:$0xff]
    %v1651 = vld [vmem:[#allocation2 + $0x88] sm:$0xff]
    %v1652 = vld [vmem:[#allocation2 + $0x90] sm:$0xff]
    %v1653 = vld [vmem:[#allocation2 + $0x98] sm:$0xff]
    %v1654 = vpack.c.bf16 %v1555, %v1553
    %v1655 = vpack.c.bf16 %v1589, %v1587
    %v1676 = vunpack.c.l.b16 %v1634
    %v1677 = vunpack.c.h.b16 %v1634
    %v1678 = vunpack.c.l.b16 %v1635
    %v1679 = vunpack.c.h.b16 %v1635
    %v1680 = vunpack.c.l.b16 %v1636
    %v1681 = vunpack.c.h.b16 %v1636
    %v1682 = vunpack.c.l.b16 %v1637
    %v1683 = vunpack.c.h.b16 %v1637
    %v1684 = vunpack.c.l.b16 %v1638
    %v1685 = vunpack.c.h.b16 %v1638
    %v1686 = vunpack.c.l.b16 %v1639
    %v1687 = vunpack.c.h.b16 %v1639
    %v1688 = vunpack.c.l.b16 %v1640
    %v1689 = vunpack.c.h.b16 %v1640
    %v1690 = vunpack.c.l.b16 %v1641
    %v1691 = vunpack.c.h.b16 %v1641
    %v1692 = vunpack.c.l.b16 %v1642
    %v1693 = vunpack.c.h.b16 %v1642
    %v1694 = vunpack.c.l.b16 %v1643
    %v1695 = vunpack.c.h.b16 %v1643
    %v1696 = vunpack.c.l.b16 %v1644
    %v1697 = vunpack.c.h.b16 %v1644
    %v1698 = vunpack.c.l.b16 %v1645
    %v1699 = vunpack.c.h.b16 %v1645
    %v1700 = vunpack.c.l.b16 %v1646
    %v1701 = vunpack.c.h.b16 %v1646
    %v1702 = vunpack.c.l.b16 %v1647
    %v1703 = vunpack.c.h.b16 %v1647
    %v1704 = vunpack.c.l.b16 %v1648
    %v1705 = vunpack.c.h.b16 %v1648
    %v1706 = vunpack.c.l.b16 %v1649
    %v1707 = vunpack.c.h.b16 %v1649
    %v1708 = vunpack.c.l.b16 %v1650
    %v1709 = vunpack.c.h.b16 %v1650
    %v1710 = vunpack.c.l.b16 %v1651
    %v1711 = vunpack.c.h.b16 %v1651
    %v1712 = vunpack.c.l.b16 %v1652
    %v1713 = vunpack.c.h.b16 %v1652
    %v1714 = vunpack.c.l.b16 %v1653
    %v1715 = vunpack.c.h.b16 %v1653
    %v1716 = vpack.c.b16 %v1678, %v1676
    %v1717 = vpack.c.b16 %v1679, %v1677
    %v1718 = vpack.c.b16 %v1682, %v1680
    %v1719 = vpack.c.b16 %v1683, %v1681
    %v1720 = vpack.c.b16 %v1686, %v1684
    %v1721 = vpack.c.b16 %v1687, %v1685
    %v1722 = vpack.c.b16 %v1690, %v1688
    %v1723 = vpack.c.b16 %v1691, %v1689
    %v1724 = vpack.c.b16 %v1694, %v1692
    %v1725 = vpack.c.b16 %v1695, %v1693
    %v1726 = vpack.c.b16 %v1698, %v1696
    %v1727 = vpack.c.b16 %v1699, %v1697
    %v1728 = vpack.c.b16 %v1702, %v1700
    %v1729 = vpack.c.b16 %v1703, %v1701
    %v1730 = vpack.c.b16 %v1706, %v1704
    %v1731 = vpack.c.b16 %v1707, %v1705
    %v1732 = vpack.c.b16 %v1710, %v1708
    %v1733 = vpack.c.b16 %v1711, %v1709
    %v1734 = vpack.c.b16 %v1714, %v1712
    %v1735 = vpack.c.b16 %v1715, %v1713
    %v1757 = vsel %vm208, %v1655, 0
    %1759 = vmatpush.bf16.msra.mxu0 %v1730
    %1760 = vmatpush.bf16.msra.mxu0 %v1728
    %1761 = vmatpush.bf16.msra.mxu0 %v1726
    %1762 = vmatpush.bf16.msra.mxu0 %v1724
    %1763 = vmatpush.bf16.msra.mxu0 %v1722
    %1764 = vmatpush.bf16.msra.mxu0 %v1720
    %1765 = vmatpush.bf16.msra.mxu0 %v1718
    %1766 = vmatpush.bf16.msra.mxu0 %v1716
    %1767 = vmatmul.bf16.gmra.mxu0 %v1654
    %v1768 = vpop.f32.mrf.mxu0
    %v1769 = vadd.f32 0.0, %v1768
    %v1770 = vpop.f32.mrf.mxu0
    %v1771 = vadd.f32 0.0, %v1770
    %1772 = vdwg.mxu0
    %1773 = vmatpush.bf16.msra.mxu0 0
    %1774 = vmatpush.bf16.msra.mxu0 0
    %1775 = vmatpush.bf16.msra.mxu0 0
    %1776 = vmatpush.bf16.msra.mxu0 0
    %1777 = vmatpush.bf16.msra.mxu0 0
    %1778 = vmatpush.bf16.msra.mxu0 0
    %1779 = vmatpush.bf16.msra.mxu0 %v1734
    %1780 = vmatpush.bf16.msra.mxu0 %v1732
    %1781 = vmatmul.bf16.gmra.mxu0 %v1757
    %v1782 = vpop.f32.mrf.mxu0
    %v1783 = vadd.f32 %v1769, %v1782
    %v1784 = vpop.f32.mrf.mxu0
    %v1785 = vadd.f32 %v1771, %v1784
    %1786 = vdwg.mxu0
    %1787 = vmatpush.bf16.msra.mxu0 %v1731
    %1788 = vmatpush.bf16.msra.mxu0 %v1729
    %1789 = vmatpush.bf16.msra.mxu0 %v1727
    %1790 = vmatpush.bf16.msra.mxu0 %v1725
    %1791 = vmatpush.bf16.msra.mxu0 %v1723
    %1792 = vmatpush.bf16.msra.mxu0 %v1721
    %1793 = vmatpush.bf16.msra.mxu0 %v1719
    %1794 = vmatpush.bf16.msra.mxu0 %v1717
    %1795 = vmatmul.bf16.gmra.mxu0 %v1654
    %v1796 = vpop.f32.mrf.mxu0
    %v1797 = vadd.f32 0.0, %v1796
    %v1798 = vpop.f32.mrf.mxu0
    %v1799 = vadd.f32 0.0, %v1798
    %1800 = vdwg.mxu0
    %1801 = vmatpush.bf16.msra.mxu0 0
    %1802 = vmatpush.bf16.msra.mxu0 0
    %1803 = vmatpush.bf16.msra.mxu0 0
    %1804 = vmatpush.bf16.msra.mxu0 0
    %1805 = vmatpush.bf16.msra.mxu0 0
    %1806 = vmatpush.bf16.msra.mxu0 0
    %1807 = vmatpush.bf16.msra.mxu0 %v1735
    %1808 = vmatpush.bf16.msra.mxu0 %v1733
    %1809 = vmatmul.bf16.gmra.mxu0 %v1757
    %v1810 = vpop.f32.mrf.mxu0
    %v1811 = vadd.f32 %v1797, %v1810
    %v1812 = vpop.f32.mrf.mxu0
    %v1813 = vadd.f32 %v1799, %v1812
    %1814 = vdwg.mxu0
    %v1815 = vadd.f32 %v1548, %v1783
    %v1816 = vadd.f32 %v1582, %v1811
    %v1817 = vadd.f32 %v1550, %v1785
    %v1818 = vadd.f32 %v1584, %v1813
    %v1819 = vpack.c.bf16 %v1817, %v1815
    %v1820 = vpack.c.bf16 %v1818, %v1816
    %v1822 = vsel %vm208, %v1820, 0
    %1824 = vmatpush.bf16.msra.mxu0 %v1730
    %1825 = vmatpush.bf16.msra.mxu0 %v1728
    %1826 = vmatpush.bf16.msra.mxu0 %v1726
    %1827 = vmatpush.bf16.msra.mxu0 %v1724
    %1828 = vmatpush.bf16.msra.mxu0 %v1722
    %1829 = vmatpush.bf16.msra.mxu0 %v1720
    %1830 = vmatpush.bf16.msra.mxu0 %v1718
    %1831 = vmatpush.bf16.msra.mxu0 %v1716
    %1832 = vmatmul.bf16.gmra.mxu0 %v1819
    %v1833 = vpop.f32.mrf.mxu0
    %v1834 = vadd.f32 0.0, %v1833
    %v1835 = vpop.f32.mrf.mxu0
    %v1836 = vadd.f32 0.0, %v1835
    %1837 = vdwg.mxu0
    %1838 = vmatpush.bf16.msra.mxu0 0
    %1839 = vmatpush.bf16.msra.mxu0 0
    %1840 = vmatpush.bf16.msra.mxu0 0
    %1841 = vmatpush.bf16.msra.mxu0 0
    %1842 = vmatpush.bf16.msra.mxu0 0
    %1843 = vmatpush.bf16.msra.mxu0 0
    %1844 = vmatpush.bf16.msra.mxu0 %v1734
    %1845 = vmatpush.bf16.msra.mxu0 %v1732
    %1846 = vmatmul.bf16.gmra.mxu0 %v1822
    %v1847 = vpop.f32.mrf.mxu0
    %v1848 = vadd.f32 %v1834, %v1847
    %v1849 = vpop.f32.mrf.mxu0
    %v1850 = vadd.f32 %v1836, %v1849
    %1851 = vdwg.mxu0
    %1852 = vmatpush.bf16.msra.mxu0 %v1731
    %1853 = vmatpush.bf16.msra.mxu0 %v1729
    %1854 = vmatpush.bf16.msra.mxu0 %v1727
    %1855 = vmatpush.bf16.msra.mxu0 %v1725
    %1856 = vmatpush.bf16.msra.mxu0 %v1723
    %1857 = vmatpush.bf16.msra.mxu0 %v1721
    %1858 = vmatpush.bf16.msra.mxu0 %v1719
    %1859 = vmatpush.bf16.msra.mxu0 %v1717
    %1860 = vmatmul.bf16.gmra.mxu0 %v1819
    %v1861 = vpop.f32.mrf.mxu0
    %v1862 = vadd.f32 0.0, %v1861
    %v1863 = vpop.f32.mrf.mxu0
    %v1864 = vadd.f32 0.0, %v1863
    %1865 = vdwg.mxu0
    %1866 = vmatpush.bf16.msra.mxu0 0
    %1867 = vmatpush.bf16.msra.mxu0 0
    %1868 = vmatpush.bf16.msra.mxu0 0
    %1869 = vmatpush.bf16.msra.mxu0 0
    %1870 = vmatpush.bf16.msra.mxu0 0
    %1871 = vmatpush.bf16.msra.mxu0 0
    %1872 = vmatpush.bf16.msra.mxu0 %v1735
    %1873 = vmatpush.bf16.msra.mxu0 %v1733
    %1874 = vmatmul.bf16.gmra.mxu0 %v1822
    %v1875 = vpop.f32.mrf.mxu0
    %v1876 = vadd.f32 %v1862, %v1875
    %v1877 = vpop.f32.mrf.mxu0
    %v1878 = vadd.f32 %v1864, %v1877
    %1879 = vdwg.mxu0
    %v1880 = vadd.f32 %v1543, %v1848
    %v1881 = vadd.f32 %v1577, %v1876
    %v1882 = vadd.f32 %v1545, %v1850
    %v1883 = vadd.f32 %v1579, %v1878
    %s1884 = scalar_lea.vmem %s10, 16
    %v1885 = vld [vmem:[%s1884] sm:$0xff]
    %v1886 = vld [vmem:[%s1884 + $0x8] sm:$0xff]
    %1888 = vset.pattern.permute.xlu0 0
    %1889 = vperm.xlu0 %1888, %v1885
    %v1890 = vpop.permute.xlu0 %1889
    %1893 = vset.pattern.permute.xlu0 0
    %1894 = vperm.xlu0 %1893, %v1886
    %v1895 = vpop.permute.xlu0 %1894
    %v1897 = vadd.f32 %v1880, %v1890
    %v1898 = vadd.f32 %v1881, %v1890
    %v1899 = vadd.f32 %v1882, %v1895
    %v1900 = vadd.f32 %v1883, %v1895
    %s1901 = scalar_lea.vmem %s12, 16
    %v1902 = vld [vmem:[%s1901] sm:$0xff]
    %v1903 = vld [vmem:[%s1901 + $0x8] sm:$0xff]
    %1905 = vset.pattern.permute.xlu0 0
    %1906 = vperm.xlu0 %1905, %v1902
    %v1907 = vpop.permute.xlu0 %1906
    %1910 = vset.pattern.permute.xlu0 0
    %1911 = vperm.xlu0 %1910, %v1903
    %v1912 = vpop.permute.xlu0 %1911
    %v1914 = vmul.f32 %v1907, %v1229
    %v1915 = vmul.f32 %v1907, %v1230
    %v1916 = vmul.f32 %v1912, %v1231
    %v1917 = vmul.f32 %v1912, %v1232
    %1922 = vrot.lane.b32.xlu0 %v1914, 64
    %v1923 = vpop.permute.xlu0 %1922
    %1924 = vrot.lane.b32.xlu0 %v1915, 64
    %v1925 = vpop.permute.xlu0 %1924
    %1926 = vrot.lane.b32.xlu0 %v1916, 64
    %v1927 = vpop.permute.xlu0 %1926
    %1928 = vrot.lane.b32.xlu0 %v1917, 64
    %v1929 = vpop.permute.xlu0 %1928
    %v1930 = vsel %vm214, %v1923, %v1925
    %v1931 = vsel %vm214, %v1927, %v1929
    %v1936 = vadd.f32 %v1897, %v1930
    %v1937 = vadd.f32 %v1898, %v1925
    %v1938 = vadd.f32 %v1899, %v1931
    %v1939 = vadd.f32 %v1900, %v1929
    %1948 = vrot.lane.b32.xlu0 %v873, 64
    %v1949 = vpop.permute.xlu0 %1948
    %1950 = vrot.lane.b32.xlu0 %v874, 64
    %v1951 = vpop.permute.xlu0 %1950
    %1952 = vrot.lane.b32.xlu0 %v875, 64
    %v1953 = vpop.permute.xlu0 %1952
    %1954 = vrot.lane.b32.xlu0 %v876, 64
    %v1955 = vpop.permute.xlu0 %1954
    %1956 = vrot.lane.b32.xlu0 %v877, 64
    %v1957 = vpop.permute.xlu0 %1956
    %1958 = vrot.lane.b32.xlu0 %v878, 64
    %v1959 = vpop.permute.xlu0 %1958
    %1960 = vrot.lane.b32.xlu0 %v879, 64
    %v1961 = vpop.permute.xlu0 %1960
    %1962 = vrot.lane.b32.xlu0 %v880, 64
    %v1963 = vpop.permute.xlu0 %1962
    %v1964 = vsel %vm214, %v1949, %v1951
    %v1965 = vsel %vm214, %v1953, %v1955
    %v1966 = vsel %vm214, %v1957, %v1959
    %v1967 = vsel %vm214, %v1961, %v1963
    %v1976 = vadd.f32 %v1626, %v1964
    %v1977 = vadd.f32 %v1627, %v1951
    %v1978 = vadd.f32 %v1628, %v1965
    %v1979 = vadd.f32 %v1629, %v1955
    %v1980 = vadd.f32 %v1630, %v1966
    %v1981 = vadd.f32 %v1631, %v1959
    %v1982 = vadd.f32 %v1632, %v1967
    %v1983 = vadd.f32 %v1633, %v1963
    %s1984 = scalar_lea.vmem %s6, 32
    %v1985 = vld [vmem:[%s1984] sm:$0xf]
    %v1986 = vld [vmem:[%s1984 + $0x4] sm:$0xf]
    %v1987 = vld [vmem:[%s1984 + $0x8] sm:$0xf]
    %v1988 = vld [vmem:[%s1984 + $0xc] sm:$0xf]
    %v1989 = vpack.c.bf16 %v1938, %v1936
    %s1990 = scalar_lea.vmem %s7, 32
    %v1991 = vld [vmem:[%s1990] sm:$0xf]
    %v1992 = vld [vmem:[%s1990 + $0x4] sm:$0xf]
    %v1993 = vld [vmem:[%s1990 + $0x8] sm:$0xf]
    %v1994 = vld [vmem:[%s1990 + $0xc] sm:$0xf]
    %v1995 = vpack.c.bf16 %v1939, %v1937
    %v2000 = vunpack.c.l.b16 %v1991
    %v2001 = vunpack.c.l.b16 %v1992
    %v2002 = vunpack.c.l.b16 %v1993
    %v2003 = vunpack.c.l.b16 %v1994
    %v2004 = vpack.c.b16 %v2001, %v2000
    %v2005 = vpack.c.b16 %v2003, %v2002
    %2008 = vrot.lane.b32.xlu0 %v1989, 96
    %v2009 = vpop.permute.xlu0 %2008
    %2010 = vrot.lane.b32.xlu0 %v1995, 96
    %v2011 = vpop.permute.xlu0 %2010
    %v2012 = vsel %vm511, %v2009, %v2011
    %v2015 = vsel %vm113, %v2004, 0
    %v2018 = vsel %vm113, %v2005, 0
    %2020 = vmatpush.bf16.msra.mxu0 0
    %2021 = vmatpush.bf16.msra.mxu0 0
    %2022 = vmatpush.bf16.msra.mxu0 0
    %2023 = vmatpush.bf16.msra.mxu0 0
    %2024 = vmatpush.bf16.msra.mxu0 0
    %2025 = vmatpush.bf16.msra.mxu0 0
    %2026 = vmatpush.bf16.msra.mxu0 0
    %2027 = vmatpush.bf16.msra.mxu0 %v2012
    %2028 = vmatmul.bf16.gmra.mxu0 %v2015
    %v2029 = vpop.f32.mrf.mxu0
    %v2030 = vadd.f32 0.0, %v2029
    %v2031 = vpop.f32.mrf.mxu0
    %v2032 = vadd.f32 0.0, %v2031
    %2033 = vmatmul.bf16.gmra.mxu0 %v2018
    %v2034 = vpop.f32.mrf.mxu0
    %v2035 = vadd.f32 0.0, %v2034
    %v2036 = vpop.f32.mrf.mxu0
    %v2037 = vadd.f32 0.0, %v2036
    %2038 = vdwg.mxu0
    %v2043 = vunpack.c.l.b16 %v1985
    %v2044 = vunpack.c.l.b16 %v1986
    %v2045 = vunpack.c.l.b16 %v1987
    %v2046 = vunpack.c.l.b16 %v1988
    %v2047 = vpack.c.b16 %v2044, %v2043
    %v2048 = vpack.c.b16 %v2046, %v2045
    %v2050 = vsel %vm113, %v2047, 0
    %v2053 = vsel %vm113, %v2048, 0
    %2055 = vmatpush.bf16.msra.mxu0 0
    %2056 = vmatpush.bf16.msra.mxu0 0
    %2057 = vmatpush.bf16.msra.mxu0 0
    %2058 = vmatpush.bf16.msra.mxu0 0
    %2059 = vmatpush.bf16.msra.mxu0 0
    %2060 = vmatpush.bf16.msra.mxu0 0
    %2061 = vmatpush.bf16.msra.mxu0 0
    %2062 = vmatpush.bf16.msra.mxu0 %v1989
    %2063 = vmatmul.bf16.gmra.mxu0 %v2050
    %v2064 = vpop.f32.mrf.mxu0
    %v2065 = vadd.f32 %v2030, %v2064
    %v2066 = vpop.f32.mrf.mxu0
    %v2067 = vadd.f32 %v2032, %v2066
    %2068 = vmatmul.bf16.gmra.mxu0 %v2053
    %v2069 = vpop.f32.mrf.mxu0
    %v2070 = vadd.f32 %v2035, %v2069
    %v2071 = vpop.f32.mrf.mxu0
    %v2072 = vadd.f32 %v2037, %v2071
    %2073 = vdwg.mxu0
    %s2074 = scalar_lea.vmem %s8, 64
    %v2075 = vld [vmem:[%s2074] sm:$0xff]
    %v2076 = vld [vmem:[%s2074 + $0x8] sm:$0xff]
    %v2077 = vld [vmem:[%s2074 + $0x10] sm:$0xff]
    %v2078 = vld [vmem:[%s2074 + $0x18] sm:$0xff]
    %2080 = vset.pattern.permute.xlu0 0
    %2081 = vperm.xlu0 %2080, %v2075
    %v2082 = vpop.permute.xlu0 %2081
    %2085 = vset.pattern.permute.xlu0 0
    %2086 = vperm.xlu0 %2085, %v2076
    %v2087 = vpop.permute.xlu0 %2086
    %2090 = vset.pattern.permute.xlu0 0
    %2091 = vperm.xlu0 %2090, %v2077
    %v2092 = vpop.permute.xlu0 %2091
    %2095 = vset.pattern.permute.xlu0 0
    %2096 = vperm.xlu0 %2095, %v2078
    %v2097 = vpop.permute.xlu0 %2096
    %v2099 = vadd.f32 %v2065, %v2082
    %v2100 = vadd.f32 %v2067, %v2087
    %v2101 = vadd.f32 %v2070, %v2092
    %v2102 = vadd.f32 %v2072, %v2097
    %v2103 = vtanh.pop %v2099
    %v2104 = vtanh.pop %v2100
    %v2105 = vxor.u32 %v2101, 2147483648
    %v2106 = vxor.u32 %v2102, 2147483648
    %v2107 = vmul.f32 %v2105, 1.442695
    %v2108 = vpow.pop %v2107
    %v2109 = vmul.f32 %v2106, 1.442695
    %v2110 = vpow.pop %v2109
    %v2111 = vadd.f32 %v2108, 1.0
    %v2112 = vadd.f32 %v2110, 1.0
    %v2113 = vrcp.pop %v2111
    %v2114 = vmul.f32 %v2111, %v2113
    %v2115 = vsub.f32 1.0, %v2114
    %v2116 = vmul.f32 %v2113, %v2115
    %v2117 = vadd.f32 %v2113, %v2116
    %vm2118 = vweird.f32 %v2111
    %vm2119 = vweird.f32 %v2113
    %vm2120 = vmor %vm2118, %vm2119
    %v2121 = vsel %vm2120, %v2113, %v2117
    %v2122 = vand.u32 2147483647, %v2111
    %vm2123 = vcmp.eq.f32.partialorder %v2122, 8.507059e+37
    %v2124 = vand.u32 %v2111, 2147483648
    %v2125 = vor.u32 1.1754944e-38, %v2124
    %v2126 = vsel %vm2123, %v2125, %v2121
    %v2127 = vmul.f32 1.0, %v2126
    %v2128 = vrcp.pop %v2112
    %v2129 = vmul.f32 %v2112, %v2128
    %v2130 = vsub.f32 1.0, %v2129
    %v2131 = vmul.f32 %v2128, %v2130
    %v2132 = vadd.f32 %v2128, %v2131
    %vm2133 = vweird.f32 %v2112
    %vm2134 = vweird.f32 %v2128
    %vm2135 = vmor %vm2133, %vm2134
    %v2136 = vsel %vm2135, %v2128, %v2132
    %v2137 = vand.u32 2147483647, %v2112
    %vm2138 = vcmp.eq.f32.partialorder %v2137, 8.507059e+37
    %v2139 = vand.u32 %v2112, 2147483648
    %v2140 = vor.u32 1.1754944e-38, %v2139
    %v2141 = vsel %vm2138, %v2140, %v2136
    %v2142 = vmul.f32 1.0, %v2141
    %v2143 = vmul.f32 %v2103, %v2127
    %v2144 = vmul.f32 %v2104, %v2142
    %s2145 = scalar_lea.vmem %s9, 80
    %v2146 = vld [vmem:[%s2145] sm:$0xf]
    %v2147 = vld [vmem:[%s2145 + $0x4] sm:$0xf]
    %v2148 = vld [vmem:[%s2145 + $0x8] sm:$0xf]
    %v2149 = vld [vmem:[%s2145 + $0xc] sm:$0xf]
    %v2150 = vld [vmem:[%s2145 + $0x10] sm:$0xf]
    %v2151 = vld [vmem:[%s2145 + $0x14] sm:$0xf]
    %v2152 = vld [vmem:[%s2145 + $0x18] sm:$0xf]
    %v2153 = vld [vmem:[%s2145 + $0x1c] sm:$0xf]
    %v2154 = vld [vmem:[%s2145 + $0x20] sm:$0xf]
    %v2155 = vld [vmem:[%s2145 + $0x24] sm:$0xf]
    %v2156 = vpack.c.bf16 %v2144, %v2143
    %v2167 = vunpack.c.l.b16 %v2146
    %v2168 = vunpack.c.l.b16 %v2147
    %v2169 = vunpack.c.l.b16 %v2148
    %v2170 = vunpack.c.l.b16 %v2149
    %v2171 = vunpack.c.l.b16 %v2150
    %v2172 = vunpack.c.l.b16 %v2151
    %v2173 = vunpack.c.l.b16 %v2152
    %v2174 = vunpack.c.l.b16 %v2153
    %v2175 = vunpack.c.l.b16 %v2154
    %v2176 = vunpack.c.l.b16 %v2155
    %v2177 = vpack.c.b16 %v2168, %v2167
    %v2178 = vpack.c.b16 %v2170, %v2169
    %v2179 = vpack.c.b16 %v2172, %v2171
    %v2180 = vpack.c.b16 %v2174, %v2173
    %v2181 = vpack.c.b16 %v2176, %v2175
    %v2183 = vsel %vm113, %v2177, 0
    %v2186 = vsel %vm113, %v2178, 0
    %v2189 = vsel %vm113, %v2179, 0
    %v2192 = vsel %vm113, %v2180, 0
    %v2195 = vsel %vm113, %v2181, 0
    %2197 = vmatpush.bf16.msra.mxu0 0
    %2198 = vmatpush.bf16.msra.mxu0 0
    %2199 = vmatpush.bf16.msra.mxu0 0
    %2200 = vmatpush.bf16.msra.mxu0 0
    %2201 = vmatpush.bf16.msra.mxu0 0
    %2202 = vmatpush.bf16.msra.mxu0 0
    %2203 = vmatpush.bf16.msra.mxu0 0
    %2204 = vmatpush.bf16.msra.mxu0 %v2156
    %2205 = vmatmul.bf16.gmra.mxu0 %v2183
    %v2206 = vpop.f32.mrf.mxu0
    %v2207 = vadd.f32 0.0, %v2206
    %v2208 = vpop.f32.mrf.mxu0
    %v2209 = vadd.f32 0.0, %v2208
    %2210 = vmatmul.bf16.gmra.mxu0 %v2186
    %v2211 = vpop.f32.mrf.mxu0
    %v2212 = vadd.f32 0.0, %v2211
    %v2213 = vpop.f32.mrf.mxu0
    %v2214 = vadd.f32 0.0, %v2213
    %2215 = vmatmul.bf16.gmra.mxu0 %v2189
    %v2216 = vpop.f32.mrf.mxu0
    %v2217 = vadd.f32 0.0, %v2216
    %v2218 = vpop.f32.mrf.mxu0
    %v2219 = vadd.f32 0.0, %v2218
    %2220 = vmatmul.bf16.gmra.mxu0 %v2192
    %v2221 = vpop.f32.mrf.mxu0
    %v2222 = vadd.f32 0.0, %v2221
    %v2223 = vpop.f32.mrf.mxu0
    %v2224 = vadd.f32 0.0, %v2223
    %2225 = vmatmul.bf16.gmra.mxu0 %v2195
    %v2226 = vpop.f32.mrf.mxu0
    %v2227 = vadd.f32 0.0, %v2226
    %v2228 = vpop.f32.mrf.mxu0
    %v2229 = vadd.f32 0.0, %v2228
    %2230 = vdwg.mxu0
    %s2231 = scalar_lea.vmem %s11, 64
    %v2232 = vld [vmem:[%s2231] sm:$0xff]
    %v2233 = vld [vmem:[%s2231 + $0x8] sm:$0xff]
    %v2234 = vld [vmem:[%s2231 + $0x10] sm:$0xff]
    %v2235 = vld [vmem:[%s2231 + $0x18] sm:$0xff]
    %2237 = vset.pattern.permute.xlu0 0
    %2238 = vperm.xlu0 %2237, %v2232
    %v2239 = vpop.permute.xlu0 %2238
    %2242 = vset.pattern.permute.xlu0 0
    %2243 = vperm.xlu0 %2242, %v2233
    %v2244 = vpop.permute.xlu0 %2243
    %2247 = vset.pattern.permute.xlu0 0
    %2248 = vperm.xlu0 %2247, %v2234
    %v2249 = vpop.permute.xlu0 %2248
    %2252 = vset.pattern.permute.xlu0 0
    %2253 = vperm.xlu0 %2252, %v2235
    %v2254 = vpop.permute.xlu0 %2253
    %v2256 = vadd.f32 %v2222, %v2239
    %v2257 = vadd.f32 %v2224, %v2244
    %v2258 = vadd.f32 %v2227, %v2249
    %v2259 = vadd.f32 %v2229, %v2254
    %v2260 = vld [vmem:[#allocation2] sm:$0xf]
    %v2261 = vld [vmem:[#allocation2 + $0x8] sm:$0xf]
    %v2262 = vld [vmem:[#allocation2 + $0x10] sm:$0xf]
    %v2263 = vld [vmem:[#allocation2 + $0x18] sm:$0xf]
    %v2264 = vld [vmem:[#allocation2 + $0x20] sm:$0xf]
    %v2265 = vld [vmem:[#allocation2 + $0x28] sm:$0xf]
    %v2266 = vld [vmem:[#allocation2 + $0x30] sm:$0xf]
    %v2267 = vld [vmem:[#allocation2 + $0x38] sm:$0xf]
    %v2268 = vld [vmem:[#allocation2 + $0x40] sm:$0xf]
    %v2269 = vld [vmem:[#allocation2 + $0x48] sm:$0xf]
    %v2270 = vld [vmem:[#allocation2 + $0x50] sm:$0xf]
    %v2271 = vld [vmem:[#allocation2 + $0x58] sm:$0xf]
    %v2272 = vld [vmem:[#allocation2 + $0x60] sm:$0xf]
    %v2273 = vld [vmem:[#allocation2 + $0x68] sm:$0xf]
    %v2274 = vld [vmem:[#allocation2 + $0x70] sm:$0xf]
    %v2275 = vld [vmem:[#allocation2 + $0x78] sm:$0xf]
    %v2276 = vpack.c.bf16 %v2219, %v2217
    %v2293 = vunpack.c.l.b16 %v2260
    %v2294 = vunpack.c.l.b16 %v2261
    %v2295 = vunpack.c.l.b16 %v2262
    %v2296 = vunpack.c.l.b16 %v2263
    %v2297 = vunpack.c.l.b16 %v2264
    %v2298 = vunpack.c.l.b16 %v2265
    %v2299 = vunpack.c.l.b16 %v2266
    %v2300 = vunpack.c.l.b16 %v2267
    %v2301 = vunpack.c.l.b16 %v2268
    %v2302 = vunpack.c.l.b16 %v2269
    %v2303 = vunpack.c.l.b16 %v2270
    %v2304 = vunpack.c.l.b16 %v2271
    %v2305 = vunpack.c.l.b16 %v2272
    %v2306 = vunpack.c.l.b16 %v2273
    %v2307 = vunpack.c.l.b16 %v2274
    %v2308 = vunpack.c.l.b16 %v2275
    %v2309 = vpack.c.b16 %v2294, %v2293
    %v2310 = vpack.c.b16 %v2296, %v2295
    %v2311 = vpack.c.b16 %v2298, %v2297
    %v2312 = vpack.c.b16 %v2300, %v2299
    %v2313 = vpack.c.b16 %v2302, %v2301
    %v2314 = vpack.c.b16 %v2304, %v2303
    %v2315 = vpack.c.b16 %v2306, %v2305
    %v2316 = vpack.c.b16 %v2308, %v2307
    %2325 = vmatpush.bf16.msra.mxu0 %v2316
    %2326 = vmatpush.bf16.msra.mxu0 %v2315
    %2327 = vmatpush.bf16.msra.mxu0 %v2314
    %2328 = vmatpush.bf16.msra.mxu0 %v2313
    %2329 = vmatpush.bf16.msra.mxu0 %v2312
    %2330 = vmatpush.bf16.msra.mxu0 %v2311
    %2331 = vmatpush.bf16.msra.mxu0 %v2310
    %2332 = vmatpush.bf16.msra.mxu0 %v2309
    %2333 = vmatmul.bf16.gmra.mxu0 %v2276
    %v2334 = vpop.f32.mrf.mxu0
    %v2335 = vadd.f32 0.0, %v2334
    %v2336 = vpop.f32.mrf.mxu0
    %v2337 = vadd.f32 0.0, %v2336
    %2338 = vdwg.mxu0
    %v2339 = vadd.f32 %v2212, %v2335
    %v2340 = vadd.f32 %v2214, %v2337
    %v2341 = vpack.c.bf16 %v2340, %v2339
    %2342 = vmatpush.bf16.msra.mxu0 %v2316
    %2343 = vmatpush.bf16.msra.mxu0 %v2315
    %2344 = vmatpush.bf16.msra.mxu0 %v2314
    %2345 = vmatpush.bf16.msra.mxu0 %v2313
    %2346 = vmatpush.bf16.msra.mxu0 %v2312
    %2347 = vmatpush.bf16.msra.mxu0 %v2311
    %2348 = vmatpush.bf16.msra.mxu0 %v2310
    %2349 = vmatpush.bf16.msra.mxu0 %v2309
    %2350 = vmatmul.bf16.gmra.mxu0 %v2341
    %v2351 = vpop.f32.mrf.mxu0
    %v2352 = vadd.f32 0.0, %v2351
    %v2353 = vpop.f32.mrf.mxu0
    %v2354 = vadd.f32 0.0, %v2353
    %2355 = vdwg.mxu0
    %v2356 = vadd.f32 %v2207, %v2352
    %v2357 = vadd.f32 %v2209, %v2354
    %s2358 = scalar_lea.vmem %s10, 32
    %v2359 = vld [vmem:[%s2358] sm:$0xff]
    %v2360 = vld [vmem:[%s2358 + $0x8] sm:$0xff]
    %2362 = vset.pattern.permute.xlu0 0
    %2363 = vperm.xlu0 %2362, %v2359
    %v2364 = vpop.permute.xlu0 %2363
    %2367 = vset.pattern.permute.xlu0 0
    %2368 = vperm.xlu0 %2367, %v2360
    %v2369 = vpop.permute.xlu0 %2368
    %v2371 = vadd.f32 %v2356, %v2364
    %v2372 = vadd.f32 %v2357, %v2369
    %s2373 = scalar_lea.vmem %s12, 32
    %v2374 = vld [vmem:[%s2373] sm:$0xff]
    %v2375 = vld [vmem:[%s2373 + $0x8] sm:$0xff]
    %2377 = vset.pattern.permute.xlu0 0
    %2378 = vperm.xlu0 %2377, %v2374
    %v2379 = vpop.permute.xlu0 %2378
    %2382 = vset.pattern.permute.xlu0 0
    %2383 = vperm.xlu0 %2382, %v2375
    %v2384 = vpop.permute.xlu0 %2383
    %v2386 = vmul.f32 %v2379, %v1936
    %v2387 = vmul.f32 %v2379, %v1937
    %v2388 = vmul.f32 %v2384, %v1938
    %v2389 = vmul.f32 %v2384, %v1939
    %2394 = vrot.lane.b32.xlu0 %v2386, 96
    %v2395 = vpop.permute.xlu0 %2394
    %2396 = vrot.lane.b32.xlu0 %v2387, 96
    %v2397 = vpop.permute.xlu0 %2396
    %2398 = vrot.lane.b32.xlu0 %v2388, 96
    %v2399 = vpop.permute.xlu0 %2398
    %2400 = vrot.lane.b32.xlu0 %v2389, 96
    %v2401 = vpop.permute.xlu0 %2400
    %v2402 = vsel %vm220, %v2395, %v2397
    %v2403 = vsel %vm220, %v2399, %v2401
    %v2406 = vadd.f32 %v2371, %v2402
    %v2407 = vadd.f32 %v2372, %v2403
    %2416 = vrot.lane.b32.xlu0 %v1976, 96
    %v2417 = vpop.permute.xlu0 %2416
    %2418 = vrot.lane.b32.xlu0 %v1977, 96
    %v2419 = vpop.permute.xlu0 %2418
    %2420 = vrot.lane.b32.xlu0 %v1978, 96
    %v2421 = vpop.permute.xlu0 %2420
    %2422 = vrot.lane.b32.xlu0 %v1979, 96
    %v2423 = vpop.permute.xlu0 %2422
    %2424 = vrot.lane.b32.xlu0 %v1980, 96
    %v2425 = vpop.permute.xlu0 %2424
    %2426 = vrot.lane.b32.xlu0 %v1981, 96
    %v2427 = vpop.permute.xlu0 %2426
    %2428 = vrot.lane.b32.xlu0 %v1982, 96
    %v2429 = vpop.permute.xlu0 %2428
    %2430 = vrot.lane.b32.xlu0 %v1983, 96
    %v2431 = vpop.permute.xlu0 %2430
    %v2432 = vsel %vm220, %v2417, %v2419
    %v2433 = vsel %vm220, %v2421, %v2423
    %v2434 = vsel %vm220, %v2425, %v2427
    %v2435 = vsel %vm220, %v2429, %v2431
    %v2440 = vadd.f32 %v2256, %v2432
    %v2441 = vadd.f32 %v2257, %v2433
    %v2442 = vadd.f32 %v2258, %v2434
    %v2443 = vadd.f32 %v2259, %v2435
    %s2444 = scalar_lea.vmem %s6, 48
    %v2445 = vld [vmem:[%s2444] sm:$0xf]
    %v2446 = vld [vmem:[%s2444 + $0x4] sm:$0xf]
    %v2447 = vld [vmem:[%s2444 + $0x8] sm:$0xf]
    %v2448 = vld [vmem:[%s2444 + $0xc] sm:$0xf]
    %v2449 = vpack.c.bf16 %v2407, %v2406
    %s2450 = scalar_lea.vmem %s7, 48
    %v2451 = vld [vmem:[%s2450] sm:$0xf]
    %v2452 = vld [vmem:[%s2450 + $0x4] sm:$0xf]
    %v2453 = vld [vmem:[%s2450 + $0x8] sm:$0xf]
    %v2454 = vld [vmem:[%s2450 + $0xc] sm:$0xf]
    %v2459 = vunpack.c.l.b16 %v2451
    %v2460 = vunpack.c.l.b16 %v2452
    %v2461 = vunpack.c.l.b16 %v2453
    %v2462 = vunpack.c.l.b16 %v2454
    %v2463 = vpack.c.b16 %v2460, %v2459
    %v2464 = vpack.c.b16 %v2462, %v2461
    %2466 = vrot.lane.b32.xlu0 %v2449, 64
    %v2467 = vpop.permute.xlu0 %2466
    %v2470 = vsel %vm113, %v2463, 0
    %v2473 = vsel %vm113, %v2464, 0
    %2475 = vmatpush.bf16.msra.mxu0 0
    %2476 = vmatpush.bf16.msra.mxu0 0
    %2477 = vmatpush.bf16.msra.mxu0 0
    %2478 = vmatpush.bf16.msra.mxu0 0
    %2479 = vmatpush.bf16.msra.mxu0 0
    %2480 = vmatpush.bf16.msra.mxu0 0
    %2481 = vmatpush.bf16.msra.mxu0 0
    %2482 = vmatpush.bf16.msra.mxu0 %v2467
    %2483 = vmatmul.bf16.gmra.mxu0 %v2470
    %v2484 = vpop.f32.mrf.mxu0
    %v2485 = vadd.f32 0.0, %v2484
    %v2486 = vpop.f32.mrf.mxu0
    %v2487 = vadd.f32 0.0, %v2486
    %2488 = vmatmul.bf16.gmra.mxu0 %v2473
    %v2489 = vpop.f32.mrf.mxu0
    %v2490 = vadd.f32 0.0, %v2489
    %v2491 = vpop.f32.mrf.mxu0
    %v2492 = vadd.f32 0.0, %v2491
    %2493 = vdwg.mxu0
    %v2498 = vunpack.c.l.b16 %v2445
    %v2499 = vunpack.c.l.b16 %v2446
    %v2500 = vunpack.c.l.b16 %v2447
    %v2501 = vunpack.c.l.b16 %v2448
    %v2502 = vpack.c.b16 %v2499, %v2498
    %v2503 = vpack.c.b16 %v2501, %v2500
    %v2505 = vsel %vm113, %v2502, 0
    %v2508 = vsel %vm113, %v2503, 0
    %2510 = vmatpush.bf16.msra.mxu0 0
    %2511 = vmatpush.bf16.msra.mxu0 0
    %2512 = vmatpush.bf16.msra.mxu0 0
    %2513 = vmatpush.bf16.msra.mxu0 0
    %2514 = vmatpush.bf16.msra.mxu0 0
    %2515 = vmatpush.bf16.msra.mxu0 0
    %2516 = vmatpush.bf16.msra.mxu0 0
    %2517 = vmatpush.bf16.msra.mxu0 %v2449
    %2518 = vmatmul.bf16.gmra.mxu0 %v2505
    %v2519 = vpop.f32.mrf.mxu0
    %v2520 = vadd.f32 %v2485, %v2519
    %v2521 = vpop.f32.mrf.mxu0
    %v2522 = vadd.f32 %v2487, %v2521
    %2523 = vmatmul.bf16.gmra.mxu0 %v2508
    %v2524 = vpop.f32.mrf.mxu0
    %v2525 = vadd.f32 %v2490, %v2524
    %v2526 = vpop.f32.mrf.mxu0
    %v2527 = vadd.f32 %v2492, %v2526
    %2528 = vdwg.mxu0
    %s2529 = scalar_lea.vmem %s8, 96
    %v2530 = vld [vmem:[%s2529] sm:$0xff]
    %v2531 = vld [vmem:[%s2529 + $0x8] sm:$0xff]
    %v2532 = vld [vmem:[%s2529 + $0x10] sm:$0xff]
    %v2533 = vld [vmem:[%s2529 + $0x18] sm:$0xff]
    %2535 = vset.pattern.permute.xlu0 0
    %2536 = vperm.xlu0 %2535, %v2530
    %v2537 = vpop.permute.xlu0 %2536
    %2540 = vset.pattern.permute.xlu0 0
    %2541 = vperm.xlu0 %2540, %v2531
    %v2542 = vpop.permute.xlu0 %2541
    %2545 = vset.pattern.permute.xlu0 0
    %2546 = vperm.xlu0 %2545, %v2532
    %v2547 = vpop.permute.xlu0 %2546
    %2550 = vset.pattern.permute.xlu0 0
    %2551 = vperm.xlu0 %2550, %v2533
    %v2552 = vpop.permute.xlu0 %2551
    %v2554 = vadd.f32 %v2520, %v2537
    %v2555 = vadd.f32 %v2522, %v2542
    %v2556 = vadd.f32 %v2525, %v2547
    %v2557 = vadd.f32 %v2527, %v2552
    %v2558 = vtanh.pop %v2554
    %v2559 = vtanh.pop %v2555
    %v2560 = vxor.u32 %v2556, 2147483648
    %v2561 = vxor.u32 %v2557, 2147483648
    %v2562 = vmul.f32 %v2560, 1.442695
    %v2563 = vpow.pop %v2562
    %v2564 = vmul.f32 %v2561, 1.442695
    %v2565 = vpow.pop %v2564
    %v2566 = vadd.f32 %v2563, 1.0
    %v2567 = vadd.f32 %v2565, 1.0
    %v2568 = vrcp.pop %v2566
    %v2569 = vmul.f32 %v2566, %v2568
    %v2570 = vsub.f32 1.0, %v2569
    %v2571 = vmul.f32 %v2568, %v2570
    %v2572 = vadd.f32 %v2568, %v2571
    %vm2573 = vweird.f32 %v2566
    %vm2574 = vweird.f32 %v2568
    %vm2575 = vmor %vm2573, %vm2574
    %v2576 = vsel %vm2575, %v2568, %v2572
    %v2577 = vand.u32 2147483647, %v2566
    %vm2578 = vcmp.eq.f32.partialorder %v2577, 8.507059e+37
    %v2579 = vand.u32 %v2566, 2147483648
    %v2580 = vor.u32 1.1754944e-38, %v2579
    %v2581 = vsel %vm2578, %v2580, %v2576
    %v2582 = vmul.f32 1.0, %v2581
    %v2583 = vrcp.pop %v2567
    %v2584 = vmul.f32 %v2567, %v2583
    %v2585 = vsub.f32 1.0, %v2584
    %v2586 = vmul.f32 %v2583, %v2585
    %v2587 = vadd.f32 %v2583, %v2586
    %vm2588 = vweird.f32 %v2567
    %vm2589 = vweird.f32 %v2583
    %vm2590 = vmor %vm2588, %vm2589
    %v2591 = vsel %vm2590, %v2583, %v2587
    %v2592 = vand.u32 2147483647, %v2567
    %vm2593 = vcmp.eq.f32.partialorder %v2592, 8.507059e+37
    %v2594 = vand.u32 %v2567, 2147483648
    %v2595 = vor.u32 1.1754944e-38, %v2594
    %v2596 = vsel %vm2593, %v2595, %v2591
    %v2597 = vmul.f32 1.0, %v2596
    %v2598 = vmul.f32 %v2558, %v2582
    %v2599 = vmul.f32 %v2559, %v2597
    %s2600 = scalar_lea.vmem %s9, 120
    %v2601 = vld [vmem:[%s2600] sm:$0xf]
    %v2602 = vld [vmem:[%s2600 + $0x4] sm:$0xf]
    %v2603 = vld [vmem:[%s2600 + $0x8] sm:$0xf]
    %v2604 = vld [vmem:[%s2600 + $0xc] sm:$0xf]
    %v2605 = vld [vmem:[%s2600 + $0x10] sm:$0xf]
    %v2606 = vld [vmem:[%s2600 + $0x14] sm:$0xf]
    %v2607 = vld [vmem:[%s2600 + $0x18] sm:$0xf]
    %v2608 = vld [vmem:[%s2600 + $0x1c] sm:$0xf]
    %v2609 = vld [vmem:[%s2600 + $0x20] sm:$0xf]
    %v2610 = vld [vmem:[%s2600 + $0x24] sm:$0xf]
    %v2611 = vpack.c.bf16 %v2599, %v2598
    %v2622 = vunpack.c.l.b16 %v2601
    %v2623 = vunpack.c.l.b16 %v2602
    %v2624 = vunpack.c.l.b16 %v2603
    %v2625 = vunpack.c.l.b16 %v2604
    %v2626 = vunpack.c.l.b16 %v2605
    %v2627 = vunpack.c.l.b16 %v2606
    %v2628 = vunpack.c.l.b16 %v2607
    %v2629 = vunpack.c.l.b16 %v2608
    %v2630 = vunpack.c.l.b16 %v2609
    %v2631 = vunpack.c.l.b16 %v2610
    %v2632 = vpack.c.b16 %v2623, %v2622
    %v2633 = vpack.c.b16 %v2625, %v2624
    %v2634 = vpack.c.b16 %v2627, %v2626
    %v2635 = vpack.c.b16 %v2629, %v2628
    %v2636 = vpack.c.b16 %v2631, %v2630
    %v2638 = vsel %vm113, %v2632, 0
    %v2641 = vsel %vm113, %v2633, 0
    %v2644 = vsel %vm113, %v2634, 0
    %v2647 = vsel %vm113, %v2635, 0
    %v2650 = vsel %vm113, %v2636, 0
    %2652 = vmatpush.bf16.msra.mxu0 0
    %2653 = vmatpush.bf16.msra.mxu0 0
    %2654 = vmatpush.bf16.msra.mxu0 0
    %2655 = vmatpush.bf16.msra.mxu0 0
    %2656 = vmatpush.bf16.msra.mxu0 0
    %2657 = vmatpush.bf16.msra.mxu0 0
    %2658 = vmatpush.bf16.msra.mxu0 0
    %2659 = vmatpush.bf16.msra.mxu0 %v2611
    %2660 = vmatmul.bf16.gmra.mxu0 %v2638
    %v2661 = vpop.f32.mrf.mxu0
    %v2662 = vpop.f32.mrf.mxu0
    %2663 = vmatmul.bf16.gmra.mxu0 %v2641
    %v2664 = vpop.f32.mrf.mxu0
    %v2665 = vpop.f32.mrf.mxu0
    %2666 = vmatmul.bf16.gmra.mxu0 %v2644
    %v2667 = vpop.f32.mrf.mxu0
    %v2668 = vpop.f32.mrf.mxu0
    %2669 = vmatmul.bf16.gmra.mxu0 %v2647
    %v2670 = vpop.f32.mrf.mxu0
    %v2671 = vadd.f32 0.0, %v2670
    %v2672 = vpop.f32.mrf.mxu0
    %v2673 = vadd.f32 0.0, %v2672
    %2674 = vmatmul.bf16.gmra.mxu0 %v2650
    %v2675 = vpop.f32.mrf.mxu0
    %v2676 = vadd.f32 0.0, %v2675
    %v2677 = vpop.f32.mrf.mxu0
    %v2678 = vadd.f32 0.0, %v2677
    %2679 = vdwg.mxu0
    %s2680 = scalar_lea.vmem %s11, 96
    %v2681 = vld [vmem:[%s2680] sm:$0xff]
    %v2682 = vld [vmem:[%s2680 + $0x8] sm:$0xff]
    %v2683 = vld [vmem:[%s2680 + $0x10] sm:$0xff]
    %v2684 = vld [vmem:[%s2680 + $0x18] sm:$0xff]
    %2686 = vset.pattern.permute.xlu0 0
    %2687 = vperm.xlu0 %2686, %v2681
    %v2688 = vpop.permute.xlu0 %2687
    %2691 = vset.pattern.permute.xlu0 0
    %2692 = vperm.xlu0 %2691, %v2682
    %v2693 = vpop.permute.xlu0 %2692
    %2696 = vset.pattern.permute.xlu0 0
    %2697 = vperm.xlu0 %2696, %v2683
    %v2698 = vpop.permute.xlu0 %2697
    %2701 = vset.pattern.permute.xlu0 0
    %2702 = vperm.xlu0 %2701, %v2684
    %v2703 = vpop.permute.xlu0 %2702
    %v2705 = vadd.f32 %v2671, %v2688
    %v2706 = vadd.f32 %v2673, %v2693
    %v2707 = vadd.f32 %v2676, %v2698
    %v2708 = vadd.f32 %v2678, %v2703
    %2713 = vrot.lane.b32.xlu0 %v2440, 64
    %v2714 = vpop.permute.xlu0 %2713
    %2715 = vrot.lane.b32.xlu0 %v2441, 64
    %v2716 = vpop.permute.xlu0 %2715
    %2717 = vrot.lane.b32.xlu0 %v2442, 64
    %v2718 = vpop.permute.xlu0 %2717
    %2719 = vrot.lane.b32.xlu0 %v2443, 64
    %v2720 = vpop.permute.xlu0 %2719
    %v2725 = vadd.f32 %v2705, %v2714
    %v2726 = vadd.f32 %v2706, %v2716
    %v2727 = vadd.f32 %v2707, %v2718
    %v2728 = vadd.f32 %v2708, %v2720
    %v2729 = vmax.f32 %v2725, 0.0
    %v2730 = vmax.f32 %v2726, 0.0
    %v2731 = vmax.f32 %v2727, 0.0
    %v2732 = vmax.f32 %v2728, 0.0
    %v2733 = vld [vmem:[%s13] sm:$0xf]
    %v2734 = vld [vmem:[%s13 + $0x4] sm:$0xf]
    %v2735 = vld [vmem:[%s13 + $0x8] sm:$0xf]
    %v2736 = vld [vmem:[%s13 + $0xc] sm:$0xf]
    %v2737 = vpack.c.bf16 %v2730, %v2729
    %v2738 = vpack.c.bf16 %v2732, %v2731
    %v2739 = vld [vmem:[%s14] sm:$0xff]
    %v2740 = vld [vmem:[%s14 + $0x8] sm:$0xff]
    %v2741 = vld [vmem:[%s14 + $0x10] sm:$0xff]
    %v2742 = vld [vmem:[%s14 + $0x18] sm:$0xff]
    %2744 = vset.pattern.permute.xlu0 0
    %2745 = vperm.xlu0 %2744, %v2739
    %v2746 = vpop.permute.xlu0 %2745
    %2749 = vset.pattern.permute.xlu0 0
    %2750 = vperm.xlu0 %2749, %v2740
    %v2751 = vpop.permute.xlu0 %2750
    %2754 = vset.pattern.permute.xlu0 0
    %2755 = vperm.xlu0 %2754, %v2741
    %v2756 = vpop.permute.xlu0 %2755
    %2759 = vset.pattern.permute.xlu0 0
    %2760 = vperm.xlu0 %2759, %v2742
    %v2761 = vpop.permute.xlu0 %2760
    %v2767 = vunpack.c.l.b16 %v2733
    %v2768 = vunpack.c.l.b16 %v2734
    %v2769 = vunpack.c.l.b16 %v2735
    %v2770 = vunpack.c.l.b16 %v2736
    %v2771 = vpack.c.b16 %v2768, %v2767
    %v2772 = vpack.c.b16 %v2770, %v2769
    %v2774 = vsel %vm208, %v2771, 0
    %v2777 = vsel %vm208, %v2772, 0
    %2779 = vmatpush.bf16.msra.mxu0 0
    %2780 = vmatpush.bf16.msra.mxu0 0
    %2781 = vmatpush.bf16.msra.mxu0 0
    %2782 = vmatpush.bf16.msra.mxu0 0
    %2783 = vmatpush.bf16.msra.mxu0 0
    %2784 = vmatpush.bf16.msra.mxu0 0
    %2785 = vmatpush.bf16.msra.mxu0 %v2738
    %2786 = vmatpush.bf16.msra.mxu0 %v2737
    %2787 = vmatmul.bf16.gmra.mxu0 %v2774
    %v2788 = vpop.f32.mrf.mxu0
    %v2789 = vadd.f32 %v2746, %v2788
    %v2790 = vpop.f32.mrf.mxu0
    %v2791 = vadd.f32 %v2751, %v2790
    %2792 = vmatmul.bf16.gmra.mxu0 %v2777
    %v2793 = vpop.f32.mrf.mxu0
    %v2794 = vadd.f32 %v2756, %v2793
    %v2795 = vpop.f32.mrf.mxu0
    %v2796 = vadd.f32 %v2761, %v2795
    %2797 = vdwg.mxu0
    %v2798 = vmax.f32 %v2789, 0.0
    %v2799 = vmax.f32 %v2791, 0.0
    %v2800 = vmax.f32 %v2794, 0.0
    %v2801 = vmax.f32 %v2796, 0.0
    %v2802 = vld [vmem:[%s15] sm:$0x3]
    %v2803 = vpack.c.bf16 %v2799, %v2798
    %v2804 = vpack.c.bf16 %v2801, %v2800
    %v2805 = vld [vmem:[%s16] sm:$0xf]
    %2807 = vset.pattern.permute.xlu0 0
    %2808 = vperm.xlu0 %2807, %v2805
    %v2809 = vpop.permute.xlu0 %2808
    %v2812 = vsel %vm208, %v2802, 0
    %2814 = vmatpush.bf16.msra.mxu0 0
    %2815 = vmatpush.bf16.msra.mxu0 0
    %2816 = vmatpush.bf16.msra.mxu0 0
    %2817 = vmatpush.bf16.msra.mxu0 0
    %2818 = vmatpush.bf16.msra.mxu0 0
    %2819 = vmatpush.bf16.msra.mxu0 0
    %2820 = vmatpush.bf16.msra.mxu0 %v2804
    %2821 = vmatpush.bf16.msra.mxu0 %v2803
    %2822 = vmatmul.bf16.gmra.mxu0 %v2812
    %v2823 = vpop.f32.mrf.mxu0
    %v2824 = vadd.f32 %v2809, %v2823
    %v2825 = vpop.f32.mrf.mxu0
    %2826 = vdwg.mxu0
    %vm2827 = vcmask 519168
    %2828 = vst.msk [vmem:[%s17] sm:$0xf] %vm2827, %v2824
    // Predicated region
    $region74: #{graph_wavenet_forward.1} parent=1 // pred_check
      _
    $region75: #{graph_wavenet_forward.1} parent=1 // pred_check_branch
      %2830 = sbr.rel (0) target = $region77
    $region76: #{graph_wavenet_forward.1} parent=1 // pred_region
      _
    $region77: #{graph_wavenet_forward.1} parent=1 // pred_fallthru
      _
    // Predicated region
    $region78: #{graph_wavenet_forward.1} parent=1 // pred_check
      _
    $region79: #{graph_wavenet_forward.1} parent=1 // pred_check_branch
      %2832 = sbr.rel (0) target = $region81
    $region80: #{graph_wavenet_forward.1} parent=1 // pred_region
      _
    $region81: #{graph_wavenet_forward.1} parent=1 // pred_fallthru
      _
    %2833 = vsyncpa [#allocation4], 1

</llo_original>
